<compile_context>
chip_gen: v7x
topology: tpu7x:2x2x1
jax: 0.10.0
libtpu: 0.0.40
codegen_flags: <defaults>
</compile_context>

<pallas_src>
import functools

import jax
import jax.numpy as jnp
from jax import lax
from jax.experimental import pallas as pl
from jax.experimental.pallas import tpu as pltpu


def encoder_layer_kernel(x_ref, wqkv_ref, wo_ref,
                         g1_ref, be1_ref,
                         w1_ref, bf1_ref, w2_ref, bf2_ref,
                         g2_ref, be2_ref,
                         o_ref, *, num_heads, head_dim):
    x = x_ref[0]                               # (S, E) — current batch element
    E = num_heads * head_dim

    # ---- fused QKV projection: one big MXU matmul ------------------------
    qkv = jnp.dot(x, wqkv_ref[...], preferred_element_type=jnp.float32)  # (S, 3E)
    inv_scale = jnp.float32(1.0) / jnp.sqrt(jnp.float32(head_dim))
    q = qkv[:, :E] * inv_scale                 # fold 1/sqrt(d) into q once
    k = qkv[:, E:2 * E]
    v = qkv[:, 2 * E:]
    wo = wo_ref[...]                           # (E, E), loaded once

    # ---- multi-head attention + fused output projection --------------------
    # TODO(synk): attention mask (masked_fill with -inf) not wired in; the
    # reference forward is called with mask=None, which is what we implement.
    attn = None
    for h in range(num_heads):                 # static unroll — H is small
        sl = slice(h * head_dim, (h + 1) * head_dim)
        qh, kh, vh = q[:, sl], k[:, sl], v[:, sl]
        # scores[i, j] = <q_i, k_j> : contract on d of both operands (no kh.T)
        scores = lax.dot_general(qh, kh, (((1,), (1,)), ((), ())),
                                 preferred_element_type=jnp.float32)      # (S, S)
        scores = scores - jnp.max(scores, axis=-1, keepdims=True)
        p = jnp.exp(scores)
        denom = jnp.sum(p, axis=-1, keepdims=True)
        p = p * pl.reciprocal(denom, approx=True)          # EUP, not VALU divide
        oh = jnp.dot(p, vh, preferred_element_type=jnp.float32)           # (S, d)
        # Distribute the output projection: concat(oh) @ Wo == sum_h oh @ Wo_h
        contrib = jnp.dot(oh, wo[sl, :], preferred_element_type=jnp.float32)
        attn = contrib if attn is None else attn + contrib

    # ---- residual + LayerNorm1 ---------------------------------------------
    y = attn + x
    mu = jnp.mean(y, axis=-1, keepdims=True)
    var = jnp.mean((y - mu) ** 2, axis=-1, keepdims=True)
    y = (y - mu) * lax.rsqrt(var + 1e-5) * g1_ref[...] + be1_ref[...]

    # ---- position-wise feed-forward (Linear -> ReLU -> Linear) ------------
    h1 = jnp.dot(y, w1_ref[...], preferred_element_type=jnp.float32) + bf1_ref[...]
    h1 = jnp.maximum(h1, 0.0)
    h2 = jnp.dot(h1, w2_ref[...], preferred_element_type=jnp.float32) + bf2_ref[...]

    # ---- residual + LayerNorm2 --------------------------------------------
    z = h2 + y
    mu2 = jnp.mean(z, axis=-1, keepdims=True)
    var2 = jnp.mean((z - mu2) ** 2, axis=-1, keepdims=True)
    z = (z - mu2) * lax.rsqrt(var2 + 1e-5) * g2_ref[...] + be2_ref[...]

    # Dropout is identity at inference time.
    # TODO(synk): training-mode dropout not implemented (eval-mode parity only).
    o_ref[0] = z.astype(o_ref.dtype)


def encoder_layer(x, params, *, num_heads):
    B, S, E = x.shape
    F = params["w1"].shape[1]
    assert E % num_heads == 0, "embedding dim must be divisible by num_heads"
    head_dim = E // num_heads

    kernel = functools.partial(encoder_layer_kernel,
                               num_heads=num_heads, head_dim=head_dim)

    # Weights / biases: constant block index across the batch grid
    # (Pallas skips re-DMA when the block index does not change).
    const2d = lambda shp: pl.BlockSpec(shp, lambda b: (0, 0))

    return pl.pallas_call(
        kernel,
        out_shape=jax.ShapeDtypeStruct((B, S, E), x.dtype),
        grid=(B,),
        in_specs=[
            pl.BlockSpec((1, S, E), lambda b: (b, 0, 0)),   # x
            const2d((E, 3 * E)),                            # fused Wqkv (pre-T)
            const2d((E, E)),                                # Wout (pre-T)
            const2d((1, E)),                                # LN1 gamma
            const2d((1, E)),                                # LN1 beta
            const2d((E, F)),                                # FF W1 (pre-T)
            const2d((1, F)),                                # FF b1
            const2d((F, E)),                                # FF W2 (pre-T)
            const2d((1, E)),                                # FF b2
            const2d((1, E)),                                # LN2 gamma
            const2d((1, E)),                                # LN2 beta
        ],
        out_specs=pl.BlockSpec((1, S, E), lambda b: (b, 0, 0)),
        compiler_params=pltpu.CompilerParams(
            dimension_semantics=("parallel",),
        ),
    )(x, params["wqkv"], params["wo"],
      params["g1"], params["be1"],
      params["w1"], params["bf1"], params["w2"], params["bf2"],
      params["g2"], params["be2"])


def init_params(key, embedding_dim, ff_dim):
    E, F = embedding_dim, ff_dim
    ks = jax.random.split(key, 4)
    s = 1.0 / jnp.sqrt(jnp.float32(E))
    sf = 1.0 / jnp.sqrt(jnp.float32(F))
    return {
        # Linear weights stored already transposed: y = x @ W.
        # Q, K, V weights concatenated along the output dim -> (E, 3E).
        "wqkv": jax.random.uniform(ks[0], (E, 3 * E), jnp.float32, -s, s),
        "wo": jax.random.uniform(ks[1], (E, E), jnp.float32, -s, s),
        "g1": jnp.ones((1, E), jnp.float32),
        "be1": jnp.zeros((1, E), jnp.float32),
        "w1": jax.random.uniform(ks[2], (E, F), jnp.float32, -s, s),
        "bf1": jnp.zeros((1, F), jnp.float32),
        "w2": jax.random.uniform(ks[3], (F, E), jnp.float32, -sf, sf),
        "bf2": jnp.zeros((1, E), jnp.float32),
        "g2": jnp.ones((1, E), jnp.float32),
        "be2": jnp.zeros((1, E), jnp.float32),
    }


def encoder_layer_reference(x, params, *, num_heads):
    """Pure-JAX reference mirroring the PyTorch EncoderLayer (eval mode)."""
    B, S, E = x.shape
    head_dim = E // num_heads
    hp = lambda a, b: jnp.matmul(a, b, precision="highest")

    qkv = hp(x, params["wqkv"])
    q, k, v = qkv[..., :E], qkv[..., E:2 * E], qkv[..., 2 * E:]
    split = lambda t: t.reshape(B, S, num_heads, head_dim).transpose(0, 2, 1, 3)
    q, k, v = split(q), split(k), split(v)
    scores = hp(q, k.transpose(0, 1, 3, 2)) / jnp.sqrt(jnp.float32(head_dim))
    p = jax.nn.softmax(scores, axis=-1)
    attn = hp(p, v).transpose(0, 2, 1, 3).reshape(B, S, E)
    attn = hp(attn, params["wo"])

    def ln(t, g, b):
        mu = t.mean(-1, keepdims=True)
        var = ((t - mu) ** 2).mean(-1, keepdims=True)
        return (t - mu) * lax.rsqrt(var + 1e-5) * g + b

    y = ln(attn + x, params["g1"], params["be1"])
    h1 = jnp.maximum(hp(y, params["w1"]) + params["bf1"], 0.0)
    h2 = hp(h1, params["w2"]) + params["bf2"]
    return ln(h2 + y, params["g2"], params["be2"])


if __name__ == "__main__":
    # 128-aligned small shapes: lane-dense matmuls and stores.
    B, S, E, H, FF = 2, 128, 128, 4, 256

    key = jax.random.PRNGKey(0)
    kx, kp = jax.random.split(key)
    x = jax.random.normal(kx, (B, S, E), jnp.float32)
    params = init_params(kp, E, FF)

    out = encoder_layer(x, params, num_heads=H)
    jax.block_until_ready(out)
    assert out.shape == (B, S, E)

    ref = encoder_layer_reference(x, params, num_heads=H)
    err = float(jnp.max(jnp.abs(out - ref)))
    assert err < 5e-2, f"kernel/reference mismatch, max abs err = {err}"

    print("KERNEL_OK")
</pallas_src>

<mosaic_0001>
module attributes {stable_mosaic.version = 11 : i64} {
  func.func @encoder_layer_kernel(%arg0: i32, %arg1: memref<1x128x128xf32, #tpu.memory_space<vmem>>, %arg2: memref<128x384xf32, #tpu.memory_space<vmem>>, %arg3: memref<128x128xf32, #tpu.memory_space<vmem>>, %arg4: memref<1x128xf32, #tpu.memory_space<vmem>>, %arg5: memref<1x128xf32, #tpu.memory_space<vmem>>, %arg6: memref<128x256xf32, #tpu.memory_space<vmem>>, %arg7: memref<1x256xf32, #tpu.memory_space<vmem>>, %arg8: memref<256x128xf32, #tpu.memory_space<vmem>>, %arg9: memref<1x128xf32, #tpu.memory_space<vmem>>, %arg10: memref<1x128xf32, #tpu.memory_space<vmem>>, %arg11: memref<1x128xf32, #tpu.memory_space<vmem>>, %arg12: memref<1x128x128xf32, #tpu.memory_space<vmem>>) attributes {dimension_semantics = [#tpu.dimension_semantics<parallel>], iteration_bounds = array<i64: 2>, scalar_prefetch = 0 : i64, scratch_operands = 0 : i64, tpu.core_type = #tpu.core_type<tc>, window_params = [{transform_indices = @transform_0, window_bounds = array<i64: 1, 128, 128>}, {pipeline_mode = #tpu.pipeline_mode<synchronous>, transform_indices = @transform_1, window_bounds = array<i64: 128, 384>}, {pipeline_mode = #tpu.pipeline_mode<synchronous>, transform_indices = @transform_2, window_bounds = array<i64: 128, 128>}, {pipeline_mode = #tpu.pipeline_mode<synchronous>, transform_indices = @transform_3, window_bounds = array<i64: 1, 128>}, {pipeline_mode = #tpu.pipeline_mode<synchronous>, transform_indices = @transform_4, window_bounds = array<i64: 1, 128>}, {pipeline_mode = #tpu.pipeline_mode<synchronous>, transform_indices = @transform_5, window_bounds = array<i64: 128, 256>}, {pipeline_mode = #tpu.pipeline_mode<synchronous>, transform_indices = @transform_6, window_bounds = array<i64: 1, 256>}, {pipeline_mode = #tpu.pipeline_mode<synchronous>, transform_indices = @transform_7, window_bounds = array<i64: 256, 128>}, {pipeline_mode = #tpu.pipeline_mode<synchronous>, transform_indices = @transform_8, window_bounds = array<i64: 1, 128>}, {pipeline_mode = #tpu.pipeline_mode<synchronous>, transform_indices = @transform_9, window_bounds = array<i64: 1, 128>}, {pipeline_mode = #tpu.pipeline_mode<synchronous>, transform_indices = @transform_10, window_bounds = array<i64: 1, 128>}, {transform_indices = @transform_11, window_bounds = array<i64: 1, 128, 128>}]} {
    %c0 = arith.constant 0 : index
    %c0_0 = arith.constant 0 : index
    %c0_1 = arith.constant 0 : index
    %0 = vector.load %arg1[%c0, %c0_0, %c0_1] : memref<1x128x128xf32, #tpu.memory_space<vmem>>, vector<1x128x128xf32>
    %1 = vector.shape_cast %0 : vector<1x128x128xf32> to vector<128x128xf32>
    %c0_2 = arith.constant 0 : index
    %c0_3 = arith.constant 0 : index
    %2 = vector.load %arg2[%c0_2, %c0_3] : memref<128x384xf32, #tpu.memory_space<vmem>>, vector<128x384xf32>
    %cst = arith.constant dense<0.000000e+00> : vector<128x384xf32>
    %3 = tpu.matmul %1, %2, %cst {dimension_numbers = #tpu.dot_dimension_numbers<[1], [0], [0], [1], [0, 0, 1, 1], [], []>} : vector<128x128xf32>, vector<128x384xf32>, vector<128x384xf32> -> vector<128x384xf32>
    %cst_4 = arith.constant 3.200000e+01 : f32
    %4 = math.sqrt %cst_4 : f32
    %cst_5 = arith.constant 1.000000e+00 : f32
    %5 = arith.divf %cst_5, %4 : f32
    %6 = vector.extract_strided_slice %3 {offsets = [0, 0], sizes = [128, 128], strides = [1, 1]} : vector<128x384xf32> to vector<128x128xf32>
    %7 = vector.broadcast %5 : f32 to vector<128x128xf32>
    %8 = arith.mulf %6, %7 : vector<128x128xf32>
    %9 = vector.extract_strided_slice %3 {offsets = [0, 128], sizes = [128, 128], strides = [1, 1]} : vector<128x384xf32> to vector<128x128xf32>
    %10 = vector.extract_strided_slice %3 {offsets = [0, 256], sizes = [128, 128], strides = [1, 1]} : vector<128x384xf32> to vector<128x128xf32>
    %c0_6 = arith.constant 0 : index
    %c0_7 = arith.constant 0 : index
    %11 = vector.load %arg3[%c0_6, %c0_7] : memref<128x128xf32, #tpu.memory_space<vmem>>, vector<128x128xf32>
    %12 = vector.extract_strided_slice %8 {offsets = [0, 0], sizes = [128, 32], strides = [1, 1]} : vector<128x128xf32> to vector<128x32xf32>
    %13 = vector.extract_strided_slice %9 {offsets = [0, 0], sizes = [128, 32], strides = [1, 1]} : vector<128x128xf32> to vector<128x32xf32>
    %14 = vector.extract_strided_slice %10 {offsets = [0, 0], sizes = [128, 32], strides = [1, 1]} : vector<128x128xf32> to vector<128x32xf32>
    %cst_8 = arith.constant dense<0.000000e+00> : vector<128x128xf32>
    %15 = tpu.matmul %12, %13, %cst_8 {dimension_numbers = #tpu.dot_dimension_numbers<[1], [1], [0], [0], [0, 0, 1, 0], [], []>} : vector<128x32xf32>, vector<128x32xf32>, vector<128x128xf32> -> vector<128x128xf32>
    %cst_9 = arith.constant dense<0xFF800000> : vector<128xf32>
    %16 = vector.multi_reduction <maximumf>, %15, %cst_9 [1] : vector<128x128xf32> to vector<128xf32>
    %17 = vector.shape_cast %16 : vector<128xf32> to vector<128x1xf32>
    %18 = vector.broadcast %17 : vector<128x1xf32> to vector<128x128xf32>
    %19 = arith.subf %15, %18 : vector<128x128xf32>
    %20 = math.exp %19 : vector<128x128xf32>
    %cst_10 = arith.constant dense<0.000000e+00> : vector<128xf32>
    %21 = vector.multi_reduction <add>, %20, %cst_10 [1] : vector<128x128xf32> to vector<128xf32>
    %22 = vector.shape_cast %21 : vector<128xf32> to vector<128x1xf32>
    %23 = tpu.reciprocal %22 {approx = true} : vector<128x1xf32> -> vector<128x1xf32>
    %24 = vector.broadcast %23 : vector<128x1xf32> to vector<128x128xf32>
    %25 = arith.mulf %20, %24 : vector<128x128xf32>
    %cst_11 = arith.constant dense<0.000000e+00> : vector<128x32xf32>
    %26 = tpu.matmul %25, %14, %cst_11 {dimension_numbers = #tpu.dot_dimension_numbers<[1], [0], [0], [1], [0, 0, 1, 1], [], []>} : vector<128x128xf32>, vector<128x32xf32>, vector<128x32xf32> -> vector<128x32xf32>
    %27 = vector.extract_strided_slice %11 {offsets = [0, 0], sizes = [32, 128], strides = [1, 1]} : vector<128x128xf32> to vector<32x128xf32>
    %cst_12 = arith.constant dense<0.000000e+00> : vector<128x128xf32>
    %28 = tpu.matmul %26, %27, %cst_12 {dimension_numbers = #tpu.dot_dimension_numbers<[1], [0], [0], [1], [0, 0, 1, 1], [], []>} : vector<128x32xf32>, vector<32x128xf32>, vector<128x128xf32> -> vector<128x128xf32>
    %29 = vector.extract_strided_slice %8 {offsets = [0, 32], sizes = [128, 32], strides = [1, 1]} : vector<128x128xf32> to vector<128x32xf32>
    %30 = vector.extract_strided_slice %9 {offsets = [0, 32], sizes = [128, 32], strides = [1, 1]} : vector<128x128xf32> to vector<128x32xf32>
    %31 = vector.extract_strided_slice %10 {offsets = [0, 32], sizes = [128, 32], strides = [1, 1]} : vector<128x128xf32> to vector<128x32xf32>
    %cst_13 = arith.constant dense<0.000000e+00> : vector<128x128xf32>
    %32 = tpu.matmul %29, %30, %cst_13 {dimension_numbers = #tpu.dot_dimension_numbers<[1], [1], [0], [0], [0, 0, 1, 0], [], []>} : vector<128x32xf32>, vector<128x32xf32>, vector<128x128xf32> -> vector<128x128xf32>
    %cst_14 = arith.constant dense<0xFF800000> : vector<128xf32>
    %33 = vector.multi_reduction <maximumf>, %32, %cst_14 [1] : vector<128x128xf32> to vector<128xf32>
    %34 = vector.shape_cast %33 : vector<128xf32> to vector<128x1xf32>
    %35 = vector.broadcast %34 : vector<128x1xf32> to vector<128x128xf32>
    %36 = arith.subf %32, %35 : vector<128x128xf32>
    %37 = math.exp %36 : vector<128x128xf32>
    %cst_15 = arith.constant dense<0.000000e+00> : vector<128xf32>
    %38 = vector.multi_reduction <add>, %37, %cst_15 [1] : vector<128x128xf32> to vector<128xf32>
    %39 = vector.shape_cast %38 : vector<128xf32> to vector<128x1xf32>
    %40 = tpu.reciprocal %39 {approx = true} : vector<128x1xf32> -> vector<128x1xf32>
    %41 = vector.broadcast %40 : vector<128x1xf32> to vector<128x128xf32>
    %42 = arith.mulf %37, %41 : vector<128x128xf32>
    %cst_16 = arith.constant dense<0.000000e+00> : vector<128x32xf32>
    %43 = tpu.matmul %42, %31, %cst_16 {dimension_numbers = #tpu.dot_dimension_numbers<[1], [0], [0], [1], [0, 0, 1, 1], [], []>} : vector<128x128xf32>, vector<128x32xf32>, vector<128x32xf32> -> vector<128x32xf32>
    %44 = vector.extract_strided_slice %11 {offsets = [32, 0], sizes = [32, 128], strides = [1, 1]} : vector<128x128xf32> to vector<32x128xf32>
    %cst_17 = arith.constant dense<0.000000e+00> : vector<128x128xf32>
    %45 = tpu.matmul %43, %44, %cst_17 {dimension_numbers = #tpu.dot_dimension_numbers<[1], [0], [0], [1], [0, 0, 1, 1], [], []>} : vector<128x32xf32>, vector<32x128xf32>, vector<128x128xf32> -> vector<128x128xf32>
    %46 = arith.addf %28, %45 : vector<128x128xf32>
    %47 = vector.extract_strided_slice %8 {offsets = [0, 64], sizes = [128, 32], strides = [1, 1]} : vector<128x128xf32> to vector<128x32xf32>
    %48 = vector.extract_strided_slice %9 {offsets = [0, 64], sizes = [128, 32], strides = [1, 1]} : vector<128x128xf32> to vector<128x32xf32>
    %49 = vector.extract_strided_slice %10 {offsets = [0, 64], sizes = [128, 32], strides = [1, 1]} : vector<128x128xf32> to vector<128x32xf32>
    %cst_18 = arith.constant dense<0.000000e+00> : vector<128x128xf32>
    %50 = tpu.matmul %47, %48, %cst_18 {dimension_numbers = #tpu.dot_dimension_numbers<[1], [1], [0], [0], [0, 0, 1, 0], [], []>} : vector<128x32xf32>, vector<128x32xf32>, vector<128x128xf32> -> vector<128x128xf32>
    %cst_19 = arith.constant dense<0xFF800000> : vector<128xf32>
    %51 = vector.multi_reduction <maximumf>, %50, %cst_19 [1] : vector<128x128xf32> to vector<128xf32>
    %52 = vector.shape_cast %51 : vector<128xf32> to vector<128x1xf32>
    %53 = vector.broadcast %52 : vector<128x1xf32> to vector<128x128xf32>
    %54 = arith.subf %50, %53 : vector<128x128xf32>
    %55 = math.exp %54 : vector<128x128xf32>
    %cst_20 = arith.constant dense<0.000000e+00> : vector<128xf32>
    %56 = vector.multi_reduction <add>, %55, %cst_20 [1] : vector<128x128xf32> to vector<128xf32>
    %57 = vector.shape_cast %56 : vector<128xf32> to vector<128x1xf32>
    %58 = tpu.reciprocal %57 {approx = true} : vector<128x1xf32> -> vector<128x1xf32>
    %59 = vector.broadcast %58 : vector<128x1xf32> to vector<128x128xf32>
    %60 = arith.mulf %55, %59 : vector<128x128xf32>
    %cst_21 = arith.constant dense<0.000000e+00> : vector<128x32xf32>
    %61 = tpu.matmul %60, %49, %cst_21 {dimension_numbers = #tpu.dot_dimension_numbers<[1], [0], [0], [1], [0, 0, 1, 1], [], []>} : vector<128x128xf32>, vector<128x32xf32>, vector<128x32xf32> -> vector<128x32xf32>
    %62 = vector.extract_strided_slice %11 {offsets = [64, 0], sizes = [32, 128], strides = [1, 1]} : vector<128x128xf32> to vector<32x128xf32>
    %cst_22 = arith.constant dense<0.000000e+00> : vector<128x128xf32>
    %63 = tpu.matmul %61, %62, %cst_22 {dimension_numbers = #tpu.dot_dimension_numbers<[1], [0], [0], [1], [0, 0, 1, 1], [], []>} : vector<128x32xf32>, vector<32x128xf32>, vector<128x128xf32> -> vector<128x128xf32>
    %64 = arith.addf %46, %63 : vector<128x128xf32>
    %65 = vector.extract_strided_slice %8 {offsets = [0, 96], sizes = [128, 32], strides = [1, 1]} : vector<128x128xf32> to vector<128x32xf32>
    %66 = vector.extract_strided_slice %9 {offsets = [0, 96], sizes = [128, 32], strides = [1, 1]} : vector<128x128xf32> to vector<128x32xf32>
    %67 = vector.extract_strided_slice %10 {offsets = [0, 96], sizes = [128, 32], strides = [1, 1]} : vector<128x128xf32> to vector<128x32xf32>
    %cst_23 = arith.constant dense<0.000000e+00> : vector<128x128xf32>
    %68 = tpu.matmul %65, %66, %cst_23 {dimension_numbers = #tpu.dot_dimension_numbers<[1], [1], [0], [0], [0, 0, 1, 0], [], []>} : vector<128x32xf32>, vector<128x32xf32>, vector<128x128xf32> -> vector<128x128xf32>
    %cst_24 = arith.constant dense<0xFF800000> : vector<128xf32>
    %69 = vector.multi_reduction <maximumf>, %68, %cst_24 [1] : vector<128x128xf32> to vector<128xf32>
    %70 = vector.shape_cast %69 : vector<128xf32> to vector<128x1xf32>
    %71 = vector.broadcast %70 : vector<128x1xf32> to vector<128x128xf32>
    %72 = arith.subf %68, %71 : vector<128x128xf32>
    %73 = math.exp %72 : vector<128x128xf32>
    %cst_25 = arith.constant dense<0.000000e+00> : vector<128xf32>
    %74 = vector.multi_reduction <add>, %73, %cst_25 [1] : vector<128x128xf32> to vector<128xf32>
    %75 = vector.shape_cast %74 : vector<128xf32> to vector<128x1xf32>
    %76 = tpu.reciprocal %75 {approx = true} : vector<128x1xf32> -> vector<128x1xf32>
    %77 = vector.broadcast %76 : vector<128x1xf32> to vector<128x128xf32>
    %78 = arith.mulf %73, %77 : vector<128x128xf32>
    %cst_26 = arith.constant dense<0.000000e+00> : vector<128x32xf32>
    %79 = tpu.matmul %78, %67, %cst_26 {dimension_numbers = #tpu.dot_dimension_numbers<[1], [0], [0], [1], [0, 0, 1, 1], [], []>} : vector<128x128xf32>, vector<128x32xf32>, vector<128x32xf32> -> vector<128x32xf32>
    %80 = vector.extract_strided_slice %11 {offsets = [96, 0], sizes = [32, 128], strides = [1, 1]} : vector<128x128xf32> to vector<32x128xf32>
    %cst_27 = arith.constant dense<0.000000e+00> : vector<128x128xf32>
    %81 = tpu.matmul %79, %80, %cst_27 {dimension_numbers = #tpu.dot_dimension_numbers<[1], [0], [0], [1], [0, 0, 1, 1], [], []>} : vector<128x32xf32>, vector<32x128xf32>, vector<128x128xf32> -> vector<128x128xf32>
    %82 = arith.addf %64, %81 : vector<128x128xf32>
    %83 = arith.addf %82, %1 : vector<128x128xf32>
    %cst_28 = arith.constant dense<0.000000e+00> : vector<128xf32>
    %84 = vector.multi_reduction <add>, %83, %cst_28 [1] : vector<128x128xf32> to vector<128xf32>
    %85 = vector.shape_cast %84 : vector<128xf32> to vector<128x1xf32>
    %cst_29 = arith.constant 1.280000e+02 : f32
    %86 = vector.broadcast %cst_29 : f32 to vector<128x1xf32>
    %87 = arith.divf %85, %86 : vector<128x1xf32>
    %88 = vector.broadcast %87 : vector<128x1xf32> to vector<128x128xf32>
    %89 = arith.subf %83, %88 : vector<128x128xf32>
    %90 = arith.mulf %89, %89 : vector<128x128xf32>
    %cst_30 = arith.constant dense<0.000000e+00> : vector<128xf32>
    %91 = vector.multi_reduction <add>, %90, %cst_30 [1] : vector<128x128xf32> to vector<128xf32>
    %92 = vector.shape_cast %91 : vector<128xf32> to vector<128x1xf32>
    %cst_31 = arith.constant 1.280000e+02 : f32
    %93 = vector.broadcast %cst_31 : f32 to vector<128x1xf32>
    %94 = arith.divf %92, %93 : vector<128x1xf32>
    %95 = vector.broadcast %87 : vector<128x1xf32> to vector<128x128xf32>
    %96 = arith.subf %83, %95 : vector<128x128xf32>
    %cst_32 = arith.constant 9.99999974E-6 : f32
    %97 = vector.broadcast %cst_32 : f32 to vector<128x1xf32>
    %98 = arith.addf %94, %97 : vector<128x1xf32>
    %99 = math.rsqrt %98 : vector<128x1xf32>
    %100 = vector.broadcast %99 : vector<128x1xf32> to vector<128x128xf32>
    %101 = arith.mulf %96, %100 : vector<128x128xf32>
    %c0_33 = arith.constant 0 : index
    %c0_34 = arith.constant 0 : index
    %102 = vector.load %arg4[%c0_33, %c0_34] : memref<1x128xf32, #tpu.memory_space<vmem>>, vector<1x128xf32>
    %103 = vector.broadcast %102 : vector<1x128xf32> to vector<128x128xf32>
    %104 = arith.mulf %101, %103 : vector<128x128xf32>
    %c0_35 = arith.constant 0 : index
    %c0_36 = arith.constant 0 : index
    %105 = vector.load %arg5[%c0_35, %c0_36] : memref<1x128xf32, #tpu.memory_space<vmem>>, vector<1x128xf32>
    %106 = vector.broadcast %105 : vector<1x128xf32> to vector<128x128xf32>
    %107 = arith.addf %104, %106 : vector<128x128xf32>
    %c0_37 = arith.constant 0 : index
    %c0_38 = arith.constant 0 : index
    %108 = vector.load %arg6[%c0_37, %c0_38] : memref<128x256xf32, #tpu.memory_space<vmem>>, vector<128x256xf32>
    %cst_39 = arith.constant dense<0.000000e+00> : vector<128x256xf32>
    %109 = tpu.matmul %107, %108, %cst_39 {dimension_numbers = #tpu.dot_dimension_numbers<[1], [0], [0], [1], [0, 0, 1, 1], [], []>} : vector<128x128xf32>, vector<128x256xf32>, vector<128x256xf32> -> vector<128x256xf32>
    %c0_40 = arith.constant 0 : index
    %c0_41 = arith.constant 0 : index
    %110 = vector.load %arg7[%c0_40, %c0_41] : memref<1x256xf32, #tpu.memory_space<vmem>>, vector<1x256xf32>
    %111 = vector.broadcast %110 : vector<1x256xf32> to vector<128x256xf32>
    %112 = arith.addf %109, %111 : vector<128x256xf32>
    %cst_42 = arith.constant 0.000000e+00 : f32
    %113 = vector.broadcast %cst_42 : f32 to vector<128x256xf32>
    %114 = arith.maximumf %112, %113 : vector<128x256xf32>
    %c0_43 = arith.constant 0 : index
    %c0_44 = arith.constant 0 : index
    %115 = vector.load %arg8[%c0_43, %c0_44] : memref<256x128xf32, #tpu.memory_space<vmem>>, vector<256x128xf32>
    %cst_45 = arith.constant dense<0.000000e+00> : vector<128x128xf32>
    %116 = tpu.matmul %114, %115, %cst_45 {dimension_numbers = #tpu.dot_dimension_numbers<[1], [0], [0], [1], [0, 0, 1, 1], [], []>} : vector<128x256xf32>, vector<256x128xf32>, vector<128x128xf32> -> vector<128x128xf32>
    %c0_46 = arith.constant 0 : index
    %c0_47 = arith.constant 0 : index
    %117 = vector.load %arg9[%c0_46, %c0_47] : memref<1x128xf32, #tpu.memory_space<vmem>>, vector<1x128xf32>
    %118 = vector.broadcast %117 : vector<1x128xf32> to vector<128x128xf32>
    %119 = arith.addf %116, %118 : vector<128x128xf32>
    %120 = arith.addf %119, %107 : vector<128x128xf32>
    %cst_48 = arith.constant dense<0.000000e+00> : vector<128xf32>
    %121 = vector.multi_reduction <add>, %120, %cst_48 [1] : vector<128x128xf32> to vector<128xf32>
    %122 = vector.shape_cast %121 : vector<128xf32> to vector<128x1xf32>
    %cst_49 = arith.constant 1.280000e+02 : f32
    %123 = vector.broadcast %cst_49 : f32 to vector<128x1xf32>
    %124 = arith.divf %122, %123 : vector<128x1xf32>
    %125 = vector.broadcast %124 : vector<128x1xf32> to vector<128x128xf32>
    %126 = arith.subf %120, %125 : vector<128x128xf32>
    %127 = arith.mulf %126, %126 : vector<128x128xf32>
    %cst_50 = arith.constant dense<0.000000e+00> : vector<128xf32>
    %128 = vector.multi_reduction <add>, %127, %cst_50 [1] : vector<128x128xf32> to vector<128xf32>
    %129 = vector.shape_cast %128 : vector<128xf32> to vector<128x1xf32>
    %cst_51 = arith.constant 1.280000e+02 : f32
    %130 = vector.broadcast %cst_51 : f32 to vector<128x1xf32>
    %131 = arith.divf %129, %130 : vector<128x1xf32>
    %132 = vector.broadcast %124 : vector<128x1xf32> to vector<128x128xf32>
    %133 = arith.subf %120, %132 : vector<128x128xf32>
    %cst_52 = arith.constant 9.99999974E-6 : f32
    %134 = vector.broadcast %cst_52 : f32 to vector<128x1xf32>
    %135 = arith.addf %131, %134 : vector<128x1xf32>
    %136 = math.rsqrt %135 : vector<128x1xf32>
    %137 = vector.broadcast %136 : vector<128x1xf32> to vector<128x128xf32>
    %138 = arith.mulf %133, %137 : vector<128x128xf32>
    %c0_53 = arith.constant 0 : index
    %c0_54 = arith.constant 0 : index
    %139 = vector.load %arg10[%c0_53, %c0_54] : memref<1x128xf32, #tpu.memory_space<vmem>>, vector<1x128xf32>
    %140 = vector.broadcast %139 : vector<1x128xf32> to vector<128x128xf32>
    %141 = arith.mulf %138, %140 : vector<128x128xf32>
    %c0_55 = arith.constant 0 : index
    %c0_56 = arith.constant 0 : index
    %142 = vector.load %arg11[%c0_55, %c0_56] : memref<1x128xf32, #tpu.memory_space<vmem>>, vector<1x128xf32>
    %143 = vector.broadcast %142 : vector<1x128xf32> to vector<128x128xf32>
    %144 = arith.addf %141, %143 : vector<128x128xf32>
    %c0_57 = arith.constant 0 : index
    %c0_58 = arith.constant 0 : index
    %c0_59 = arith.constant 0 : index
    %145 = vector.load %arg12[%c0_57, %c0_58, %c0_59] : memref<1x128x128xf32, #tpu.memory_space<vmem>>, vector<1x128x128xf32>
    %146 = vector.shape_cast %145 : vector<1x128x128xf32> to vector<128x128xf32>
    %147 = vector.shape_cast %144 : vector<128x128xf32> to vector<1x128x128xf32>
    tpu.vector_store %arg12[%c0_57, %c0_58, %c0_59], %147 {strides = array<i32>} : memref<1x128x128xf32, #tpu.memory_space<vmem>>, vector<1x128x128xf32>,
    return
  }
  func.func @transform_0(%arg0: i32) -> (i32, i32, i32) {
    %c0_i32 = arith.constant 0 : i32
    %c0_i32_0 = arith.constant 0 : i32
    %c0_i32_1 = arith.constant 0 : i32
    return %arg0, %c0_i32, %c0_i32_0 : i32, i32, i32
  }
  func.func @transform_1(%arg0: i32) -> (i32, i32) {
    %c0_i32 = arith.constant 0 : i32
    %c0_i32_0 = arith.constant 0 : i32
    %c0_i32_1 = arith.constant 0 : i32
    return %c0_i32, %c0_i32_0 : i32, i32
  }
  func.func @transform_2(%arg0: i32) -> (i32, i32) {
    %c0_i32 = arith.constant 0 : i32
    %c0_i32_0 = arith.constant 0 : i32
    %c0_i32_1 = arith.constant 0 : i32
    return %c0_i32, %c0_i32_0 : i32, i32
  }
  func.func @transform_3(%arg0: i32) -> (i32, i32) {
    %c0_i32 = arith.constant 0 : i32
    %c0_i32_0 = arith.constant 0 : i32
    %c0_i32_1 = arith.constant 0 : i32
    return %c0_i32, %c0_i32_0 : i32, i32
  }
  func.func @transform_4(%arg0: i32) -> (i32, i32) {
    %c0_i32 = arith.constant 0 : i32
    %c0_i32_0 = arith.constant 0 : i32
    %c0_i32_1 = arith.constant 0 : i32
    return %c0_i32, %c0_i32_0 : i32, i32
  }
  func.func @transform_5(%arg0: i32) -> (i32, i32) {
    %c0_i32 = arith.constant 0 : i32
    %c0_i32_0 = arith.constant 0 : i32
    %c0_i32_1 = arith.constant 0 : i32
    return %c0_i32, %c0_i32_0 : i32, i32
  }
  func.func @transform_6(%arg0: i32) -> (i32, i32) {
    %c0_i32 = arith.constant 0 : i32
    %c0_i32_0 = arith.constant 0 : i32
    %c0_i32_1 = arith.constant 0 : i32
    return %c0_i32, %c0_i32_0 : i32, i32
  }
  func.func @transform_7(%arg0: i32) -> (i32, i32) {
    %c0_i32 = arith.constant 0 : i32
    %c0_i32_0 = arith.constant 0 : i32
    %c0_i32_1 = arith.constant 0 : i32
    return %c0_i32, %c0_i32_0 : i32, i32
  }
  func.func @transform_8(%arg0: i32) -> (i32, i32) {
    %c0_i32 = arith.constant 0 : i32
    %c0_i32_0 = arith.constant 0 : i32
    %c0_i32_1 = arith.constant 0 : i32
    return %c0_i32, %c0_i32_0 : i32, i32
  }
  func.func @transform_9(%arg0: i32) -> (i32, i32) {
    %c0_i32 = arith.constant 0 : i32
    %c0_i32_0 = arith.constant 0 : i32
    %c0_i32_1 = arith.constant 0 : i32
    return %c0_i32, %c0_i32_0 : i32, i32
  }
  func.func @transform_10(%arg0: i32) -> (i32, i32) {
    %c0_i32 = arith.constant 0 : i32
    %c0_i32_0 = arith.constant 0 : i32
    %c0_i32_1 = arith.constant 0 : i32
    return %c0_i32, %c0_i32_0 : i32, i32
  }
  func.func @transform_11(%arg0: i32) -> (i32, i32, i32) {
    %c0_i32 = arith.constant 0 : i32
    %c0_i32_0 = arith.constant 0 : i32
    %c0_i32_1 = arith.constant 0 : i32
    return %arg0, %c0_i32, %c0_i32_0 : i32, i32, i32
  }
}

</mosaic_0001>

<llo_original>
// kernel: tpu_custom_call.1
$region0: #{tpu_custom_call.1}
  #allocation0 [shape = 'u32[]', space=smem, size = 0x4, offset = 0x4, fixed_abs, tag = 'smem constant byte address 0x4 - core index']
  #allocation1 [shape = 'u32[144,128]{1,0:T(1,128)}', space=vmem, size = 0x12000, scoped, tag = 'internal scratch']
  %s0 = inlined_call_operand.hbm [shape: f32[2,128,128], index: 0, kind: input, shape index: {}]
  %s1 = inlined_call_operand.hbm [shape: f32[128,384], index: 1, kind: input, shape index: {}]
  %s2 = inlined_call_operand.hbm [shape: f32[128,128], index: 2, kind: input, shape index: {}]
  %s3 = inlined_call_operand.vmem [shape: f32[1,128], index: 3, kind: input, shape index: {}]
  %s4 = inlined_call_operand.vmem [shape: f32[1,128], index: 4, kind: input, shape index: {}]
  %s5 = inlined_call_operand.hbm [shape: f32[128,256], index: 5, kind: input, shape index: {}]
  %s6 = inlined_call_operand.vmem [shape: f32[1,256], index: 6, kind: input, shape index: {}]
  %s7 = inlined_call_operand.hbm [shape: f32[256,128], index: 7, kind: input, shape index: {}]
  %s8 = inlined_call_operand.vmem [shape: f32[1,128], index: 8, kind: input, shape index: {}]
  %s9 = inlined_call_operand.vmem [shape: f32[1,128], index: 9, kind: input, shape index: {}]
  %s10 = inlined_call_operand.vmem [shape: f32[1,128], index: 10, kind: input, shape index: {}]
  %s11 = inlined_call_operand.hbm [shape: f32[2,128,128], index: 11, kind: output, shape index: {}]
  %s12 = sld [smem:[#allocation0]]
  $region97: #{tpu_custom_call.1} parent=0
    _
  %s14 = ssub.s32 1, %s12
  %s15 = scalar_select 0, %s14, %s12
  $region1: #{tpu_custom_call.1} parent=0
    #allocation2 [shape = 'u8[131072]{0}', space=vmem, size = 0x20000, scoped, tag = 'input window, operand 0']
    #allocation3 [shape = 's32[2]{0}', space=sflag, size = 0x8, scoped, tag = 'scoped memory for tpu_custom_call.1']
    #allocation4 [shape = 's32[2]{0}', space=sflag, size = 0x8, scoped, tag = 'scoped memory for tpu_custom_call.1']
    #allocation5 [shape = 'u8[196608]{0}', space=vmem, size = 0x30000, scoped, tag = 'input window, operand 1, single buffered']
    #allocation6 [shape = 's32[1]{0}', space=sflag, size = 0x4, scoped, tag = 'scoped memory for tpu_custom_call.1']
    #allocation7 [shape = 'u8[65536]{0}', space=vmem, size = 0x10000, scoped, tag = 'input window, operand 2, single buffered']
    #allocation8 [shape = 'u8[131072]{0}', space=vmem, size = 0x20000, scoped, tag = 'input window, operand 5, single buffered']
    #allocation9 [shape = 's32[1]{0}', space=sflag, size = 0x4, scoped, tag = 'scoped memory for tpu_custom_call.1']
    #allocation10 [shape = 'u8[131072]{0}', space=vmem, size = 0x20000, scoped, tag = 'input window, operand 7, single buffered']
    #allocation11 [shape = 'u8[131072]{0}', space=vmem, size = 0x20000, scoped, tag = 'output window, operand 0']
    %16 = vsyncpa [#allocation3], 0
    %s17 = scalar_lea.sflag [#allocation3], 1
    %18 = vsyncpa %s17, 0
    %19 = vsyncpa [#allocation6], 0
    %20 = vsyncpa [#allocation9], 0
    %21 = vsyncpa [#allocation4], 0
    %s22 = scalar_lea.sflag [#allocation4], 1
    %23 = vsyncpa %s22, 0
    loop: start=0, step=1, limit=4
    $region2: #{tpu_custom_call.1} parent=1 // loop_pre_header
      _
    $region3: #{tpu_custom_call.1} parent=1 // loop_header
      %s25 = sphi 0, %s29
      %p26 = scmp.ge.s32.totalorder %s25, 4
      %s35 = sphi 0, %s37
      %s38 = sphi 0, %s35
      %s39 = sphi 0, %s38
      %s55 = sphi 0, %s39
      %s59 = sphi 0, %s59
      %s61 = sphi 0, %s59
      %s62 = sphi 0, %s61
      %s76 = sphi 0, %s62
      %s80 = sphi 0, %s80
      %s82 = sphi 0, %s80
      %s83 = sphi 0, %s82
      %s97 = sphi 0, %s83
      %s101 = sphi 0, %s101
      %s103 = sphi 0, %s101
      %s104 = sphi 0, %s103
      %s118 = sphi 0, %s104
      %s122 = sphi 0, %s122
      %s124 = sphi 0, %s122
      %s125 = sphi 0, %s124
      %s139 = sphi 0, %s125
      %s143 = sphi 0, %s143
      %s145 = sphi 0, %s143
      %s146 = sphi 0, %s145
      %s160 = sphi 0, %s146
      %s164 = sphi 0, %s164
      %s166 = sphi 0, %s164
      %s167 = sphi 0, %s166
      %s181 = sphi 0, %s167
      %s185 = sphi 0, %s185
      %s187 = sphi 0, %s185
      %s188 = sphi 0, %s187
      %s202 = sphi 0, %s188
      %s206 = sphi 0, %s206
      %s208 = sphi 0, %s206
      %s209 = sphi 0, %s208
      %s223 = sphi 0, %s209
      %s227 = sphi 0, %s227
      %s229 = sphi 0, %s227
      %s230 = sphi 0, %s229
      %s244 = sphi 0, %s230
      %s248 = sphi 0, %s248
      %s250 = sphi 0, %s248
      %s251 = sphi 0, %s250
      %s265 = sphi 0, %s251
      %s271 = sphi 0, %s273
      %s274 = sphi 0, %s271
      %s275 = sphi 0, %s274
      %s291 = sphi 0, %s275
    $region4: #{tpu_custom_call.1} parent=1 // loop_header_branch
      %28 = sbr.rel (%p26) target = $region8
    $region5: #{tpu_custom_call.1} parent=1 // loop_body
      %s30 = ssub.s32 %s25, 1
      %s31 = ssub.s32 %s25, 2
      %s32 = sadd.s32 %s25, 1
      %s33 = ssub.s32 %s25, %s32
      %p34 = scmp.eq.s32.totalorder %s33, 0
      %s36 = sadd.s32 %s35, 1
      %s37 = scalar_select %p34, %s35, %s36
      %p40 = pneg %p34
      %p41 = scmp.eq.s32.totalorder %s25, 1
      %p42 = por %p40, %p41
      %p43 = scmp.ne.s32.totalorder %s35, %s38
      %p44 = scmp.eq.s32.totalorder %s25, 0
      %p45 = por %p43, %p44
      %p46 = scmp.ne.s32.totalorder %s35, %s38
      %p47 = scmp.eq.s32.totalorder %s30, 1
      %p48 = por %p46, %p47
      %p49 = scmp.ne.s32.totalorder %s38, %s39
      %p50 = scmp.eq.s32.totalorder %s30, 0
      %p51 = por %p49, %p50
      %p52 = scmp.ne.s32.totalorder %s38, %s39
      %p53 = scmp.eq.s32.totalorder %s31, 1
      %p54 = por %p52, %p53
      %p56 = scmp.ne.s32.totalorder %s39, %s55
      %p57 = scmp.eq.s32.totalorder %s31, 0
      %p58 = por %p56, %p57
      %s60 = sadd.s32 %s59, 1
      %p63 = scmp.eq.s32.totalorder %s25, 1
      %p64 = scmp.ne.s32.totalorder %s59, %s61
      %p65 = scmp.eq.s32.totalorder %s25, 0
      %p66 = por %p64, %p65
      %p67 = scmp.ne.s32.totalorder %s59, %s61
      %p68 = scmp.eq.s32.totalorder %s30, 1
      %p69 = por %p67, %p68
      %p70 = scmp.ne.s32.totalorder %s61, %s62
      %p71 = scmp.eq.s32.totalorder %s30, 0
      %p72 = por %p70, %p71
      %p73 = scmp.ne.s32.totalorder %s61, %s62
      %p74 = scmp.eq.s32.totalorder %s31, 1
      %p75 = por %p73, %p74
      %p77 = scmp.ne.s32.totalorder %s62, %s76
      %p78 = scmp.eq.s32.totalorder %s31, 0
      %p79 = por %p77, %p78
      %s81 = sadd.s32 %s80, 1
      %p84 = scmp.eq.s32.totalorder %s25, 1
      %p85 = scmp.ne.s32.totalorder %s80, %s82
      %p86 = scmp.eq.s32.totalorder %s25, 0
      %p87 = por %p85, %p86
      %p88 = scmp.ne.s32.totalorder %s80, %s82
      %p89 = scmp.eq.s32.totalorder %s30, 1
      %p90 = por %p88, %p89
      %p91 = scmp.ne.s32.totalorder %s82, %s83
      %p92 = scmp.eq.s32.totalorder %s30, 0
      %p93 = por %p91, %p92
      %p94 = scmp.ne.s32.totalorder %s82, %s83
      %p95 = scmp.eq.s32.totalorder %s31, 1
      %p96 = por %p94, %p95
      %p98 = scmp.ne.s32.totalorder %s83, %s97
      %p99 = scmp.eq.s32.totalorder %s31, 0
      %p100 = por %p98, %p99
      %s102 = sadd.s32 %s101, 1
      %p105 = scmp.eq.s32.totalorder %s25, 1
      %p106 = scmp.ne.s32.totalorder %s101, %s103
      %p107 = scmp.eq.s32.totalorder %s25, 0
      %p108 = por %p106, %p107
      %p109 = scmp.ne.s32.totalorder %s101, %s103
      %p110 = scmp.eq.s32.totalorder %s30, 1
      %p111 = por %p109, %p110
      %p112 = scmp.ne.s32.totalorder %s103, %s104
      %p113 = scmp.eq.s32.totalorder %s30, 0
      %p114 = por %p112, %p113
      %p115 = scmp.ne.s32.totalorder %s103, %s104
      %p116 = scmp.eq.s32.totalorder %s31, 1
      %p117 = por %p115, %p116
      %p119 = scmp.ne.s32.totalorder %s104, %s118
      %p120 = scmp.eq.s32.totalorder %s31, 0
      %p121 = por %p119, %p120
      %s123 = sadd.s32 %s122, 1
      %p126 = scmp.eq.s32.totalorder %s25, 1
      %p127 = scmp.ne.s32.totalorder %s122, %s124
      %p128 = scmp.eq.s32.totalorder %s25, 0
      %p129 = por %p127, %p128
      %p130 = scmp.ne.s32.totalorder %s122, %s124
      %p131 = scmp.eq.s32.totalorder %s30, 1
      %p132 = por %p130, %p131
      %p133 = scmp.ne.s32.totalorder %s124, %s125
      %p134 = scmp.eq.s32.totalorder %s30, 0
      %p135 = por %p133, %p134
      %p136 = scmp.ne.s32.totalorder %s124, %s125
      %p137 = scmp.eq.s32.totalorder %s31, 1
      %p138 = por %p136, %p137
      %p140 = scmp.ne.s32.totalorder %s125, %s139
      %p141 = scmp.eq.s32.totalorder %s31, 0
      %p142 = por %p140, %p141
      %s144 = sadd.s32 %s143, 1
      %p147 = scmp.eq.s32.totalorder %s25, 1
      %p148 = scmp.ne.s32.totalorder %s143, %s145
      %p149 = scmp.eq.s32.totalorder %s25, 0
      %p150 = por %p148, %p149
      %p151 = scmp.ne.s32.totalorder %s143, %s145
      %p152 = scmp.eq.s32.totalorder %s30, 1
      %p153 = por %p151, %p152
      %p154 = scmp.ne.s32.totalorder %s145, %s146
      %p155 = scmp.eq.s32.totalorder %s30, 0
      %p156 = por %p154, %p155
      %p157 = scmp.ne.s32.totalorder %s145, %s146
      %p158 = scmp.eq.s32.totalorder %s31, 1
      %p159 = por %p157, %p158
      %p161 = scmp.ne.s32.totalorder %s146, %s160
      %p162 = scmp.eq.s32.totalorder %s31, 0
      %p163 = por %p161, %p162
      %s165 = sadd.s32 %s164, 1
      %p168 = scmp.eq.s32.totalorder %s25, 1
      %p169 = scmp.ne.s32.totalorder %s164, %s166
      %p170 = scmp.eq.s32.totalorder %s25, 0
      %p171 = por %p169, %p170
      %p172 = scmp.ne.s32.totalorder %s164, %s166
      %p173 = scmp.eq.s32.totalorder %s30, 1
      %p174 = por %p172, %p173
      %p175 = scmp.ne.s32.totalorder %s166, %s167
      %p176 = scmp.eq.s32.totalorder %s30, 0
      %p177 = por %p175, %p176
      %p178 = scmp.ne.s32.totalorder %s166, %s167
      %p179 = scmp.eq.s32.totalorder %s31, 1
      %p180 = por %p178, %p179
      %p182 = scmp.ne.s32.totalorder %s167, %s181
      %p183 = scmp.eq.s32.totalorder %s31, 0
      %p184 = por %p182, %p183
      %s186 = sadd.s32 %s185, 1
      %p189 = scmp.eq.s32.totalorder %s25, 1
      %p190 = scmp.ne.s32.totalorder %s185, %s187
      %p191 = scmp.eq.s32.totalorder %s25, 0
      %p192 = por %p190, %p191
      %p193 = scmp.ne.s32.totalorder %s185, %s187
      %p194 = scmp.eq.s32.totalorder %s30, 1
      %p195 = por %p193, %p194
      %p196 = scmp.ne.s32.totalorder %s187, %s188
      %p197 = scmp.eq.s32.totalorder %s30, 0
      %p198 = por %p196, %p197
      %p199 = scmp.ne.s32.totalorder %s187, %s188
      %p200 = scmp.eq.s32.totalorder %s31, 1
      %p201 = por %p199, %p200
      %p203 = scmp.ne.s32.totalorder %s188, %s202
      %p204 = scmp.eq.s32.totalorder %s31, 0
      %p205 = por %p203, %p204
      %s207 = sadd.s32 %s206, 1
      %p210 = scmp.eq.s32.totalorder %s25, 1
      %p211 = scmp.ne.s32.totalorder %s206, %s208
      %p212 = scmp.eq.s32.totalorder %s25, 0
      %p213 = por %p211, %p212
      %p214 = scmp.ne.s32.totalorder %s206, %s208
      %p215 = scmp.eq.s32.totalorder %s30, 1
      %p216 = por %p214, %p215
      %p217 = scmp.ne.s32.totalorder %s208, %s209
      %p218 = scmp.eq.s32.totalorder %s30, 0
      %p219 = por %p217, %p218
      %p220 = scmp.ne.s32.totalorder %s208, %s209
      %p221 = scmp.eq.s32.totalorder %s31, 1
      %p222 = por %p220, %p221
      %p224 = scmp.ne.s32.totalorder %s209, %s223
      %p225 = scmp.eq.s32.totalorder %s31, 0
      %p226 = por %p224, %p225
      %s228 = sadd.s32 %s227, 1
      %p231 = scmp.eq.s32.totalorder %s25, 1
      %p232 = scmp.ne.s32.totalorder %s227, %s229
      %p233 = scmp.eq.s32.totalorder %s25, 0
      %p234 = por %p232, %p233
      %p235 = scmp.ne.s32.totalorder %s227, %s229
      %p236 = scmp.eq.s32.totalorder %s30, 1
      %p237 = por %p235, %p236
      %p238 = scmp.ne.s32.totalorder %s229, %s230
      %p239 = scmp.eq.s32.totalorder %s30, 0
      %p240 = por %p238, %p239
      %p241 = scmp.ne.s32.totalorder %s229, %s230
      %p242 = scmp.eq.s32.totalorder %s31, 1
      %p243 = por %p241, %p242
      %p245 = scmp.ne.s32.totalorder %s230, %s244
      %p246 = scmp.eq.s32.totalorder %s31, 0
      %p247 = por %p245, %p246
      %s249 = sadd.s32 %s248, 1
      %p252 = scmp.eq.s32.totalorder %s25, 1
      %p253 = scmp.ne.s32.totalorder %s248, %s250
      %p254 = scmp.eq.s32.totalorder %s25, 0
      %p255 = por %p253, %p254
      %p256 = scmp.ne.s32.totalorder %s248, %s250
      %p257 = scmp.eq.s32.totalorder %s30, 1
      %p258 = por %p256, %p257
      %p259 = scmp.ne.s32.totalorder %s250, %s251
      %p260 = scmp.eq.s32.totalorder %s30, 0
      %p261 = por %p259, %p260
      %p262 = scmp.ne.s32.totalorder %s250, %s251
      %p263 = scmp.eq.s32.totalorder %s31, 1
      %p264 = por %p262, %p263
      %p266 = scmp.ne.s32.totalorder %s251, %s265
      %p267 = scmp.eq.s32.totalorder %s31, 0
      %p268 = por %p266, %p267
      %s269 = ssub.s32 %s25, %s32
      %p270 = scmp.eq.s32.totalorder %s269, 0
      %s272 = sadd.s32 %s271, 1
      %s273 = scalar_select %p270, %s271, %s272
      %p276 = pneg %p270
      %p277 = scmp.eq.s32.totalorder %s25, 1
      %p278 = por %p276, %p277
      %p279 = scmp.ne.s32.totalorder %s271, %s274
      %p280 = scmp.eq.s32.totalorder %s25, 0
      %p281 = por %p279, %p280
      %p282 = scmp.ne.s32.totalorder %s271, %s274
      %p283 = scmp.eq.s32.totalorder %s30, 1
      %p284 = por %p282, %p283
      %p285 = scmp.ne.s32.totalorder %s274, %s275
      %p286 = scmp.eq.s32.totalorder %s30, 0
      %p287 = por %p285, %p286
      %p288 = scmp.ne.s32.totalorder %s274, %s275
      %p289 = scmp.eq.s32.totalorder %s31, 1
      %p290 = por %p288, %p289
      %p292 = scmp.ne.s32.totalorder %s275, %s291
      %p293 = scmp.eq.s32.totalorder %s31, 0
      %p294 = por %p292, %p293
      %p295 = scmp.le.s32.totalorder 1, %s25
      %p296 = scmp.lt.s32.totalorder %s25, 3
      %p297 = pnand %p295, %p296
      %p298 = pneg %p297
      // Predicated region
      $region9: #{tpu_custom_call.1} parent=5 // pred_check
        _
      $region10: #{tpu_custom_call.1} parent=5 // pred_check_branch
        %300 = sbr.rel (%p297) target = $region12
      $region11: #{tpu_custom_call.1} parent=5 // pred_region
        %s301 = ssub.s32 %s25, 1
        // Predicated region
        $region13: #{tpu_custom_call.1} parent=11 // pred_check
          %p302 = pneg %p72
        $region14: #{tpu_custom_call.1} parent=11 // pred_check_branch
          %304 = sbr.rel (%p302) target = $region16
        $region15: #{tpu_custom_call.1} parent=11 // pred_region
          %s306 = ssub.s32 6144, 6144
          %307 = vsyncadd [#allocation6], %s306
          %s308 = sshll.u32 [#allocation5], 4
          %s309 = int_to_ptr.vmem [resolvable:$true] %s308
          %314 = dma.hbm_to_vmem [thread:$0]  %s1, 6144, %s309, [#allocation6], 384, 384, 24
        $region16: #{tpu_custom_call.1} parent=11 // pred_fallthru
          _
        // Predicated region
        $region17: #{tpu_custom_call.1} parent=11 // pred_check
          %p315 = pneg %p93
        $region18: #{tpu_custom_call.1} parent=11 // pred_check_branch
          %317 = sbr.rel (%p315) target = $region20
        $region19: #{tpu_custom_call.1} parent=11 // pred_region
          %s319 = ssub.s32 2048, 2048
          %320 = vsyncadd [#allocation6], %s319
          %s321 = sshll.u32 [#allocation7], 4
          %s322 = int_to_ptr.vmem [resolvable:$true] %s321
          %327 = dma.hbm_to_vmem [thread:$0]  %s2, 2048, %s322, [#allocation6], 128, 128, 8
        $region20: #{tpu_custom_call.1} parent=11 // pred_fallthru
          _
        // Predicated region
        $region21: #{tpu_custom_call.1} parent=11 // pred_check
          %p328 = pneg %p114
        $region22: #{tpu_custom_call.1} parent=11 // pred_check_branch
          %330 = sbr.rel (%p328) target = $region24
        $region23: #{tpu_custom_call.1} parent=11 // pred_region
          _
        $region24: #{tpu_custom_call.1} parent=11 // pred_fallthru
          _
        // Predicated region
        $region25: #{tpu_custom_call.1} parent=11 // pred_check
          %p331 = pneg %p135
        $region26: #{tpu_custom_call.1} parent=11 // pred_check_branch
          %333 = sbr.rel (%p331) target = $region28
        $region27: #{tpu_custom_call.1} parent=11 // pred_region
          _
        $region28: #{tpu_custom_call.1} parent=11 // pred_fallthru
          _
        // Predicated region
        $region29: #{tpu_custom_call.1} parent=11 // pred_check
          %p334 = pneg %p156
        $region30: #{tpu_custom_call.1} parent=11 // pred_check_branch
          %336 = sbr.rel (%p334) target = $region32
        $region31: #{tpu_custom_call.1} parent=11 // pred_region
          %s338 = ssub.s32 4096, 4096
          %339 = vsyncadd [#allocation9], %s338
          %s340 = sshll.u32 [#allocation8], 4
          %s341 = int_to_ptr.vmem [resolvable:$true] %s340
          %346 = dma.hbm_to_vmem [thread:$0]  %s5, 4096, %s341, [#allocation9], 256, 256, 16
        $region32: #{tpu_custom_call.1} parent=11 // pred_fallthru
          _
        // Predicated region
        $region33: #{tpu_custom_call.1} parent=11 // pred_check
          %p347 = pneg %p177
        $region34: #{tpu_custom_call.1} parent=11 // pred_check_branch
          %349 = sbr.rel (%p347) target = $region36
        $region35: #{tpu_custom_call.1} parent=11 // pred_region
          _
        $region36: #{tpu_custom_call.1} parent=11 // pred_fallthru
          _
        // Predicated region
        $region37: #{tpu_custom_call.1} parent=11 // pred_check
          %p350 = pneg %p198
        $region38: #{tpu_custom_call.1} parent=11 // pred_check_branch
          %352 = sbr.rel (%p350) target = $region40
        $region39: #{tpu_custom_call.1} parent=11 // pred_region
          %s354 = ssub.s32 4096, 4096
          %355 = vsyncadd [#allocation9], %s354
          %s356 = sshll.u32 [#allocation10], 4
          %s357 = int_to_ptr.vmem [resolvable:$true] %s356
          %362 = dma.hbm_to_vmem [thread:$0]  %s7, 4096, %s357, [#allocation9], 128, 128, 8
        $region40: #{tpu_custom_call.1} parent=11 // pred_fallthru
          _
        // Predicated region
        $region41: #{tpu_custom_call.1} parent=11 // pred_check
          %p363 = pneg %p219
        $region42: #{tpu_custom_call.1} parent=11 // pred_check_branch
          %365 = sbr.rel (%p363) target = $region44
        $region43: #{tpu_custom_call.1} parent=11 // pred_region
          _
        $region44: #{tpu_custom_call.1} parent=11 // pred_fallthru
          _
        // Predicated region
        $region45: #{tpu_custom_call.1} parent=11 // pred_check
          %p366 = pneg %p240
        $region46: #{tpu_custom_call.1} parent=11 // pred_check_branch
          %368 = sbr.rel (%p366) target = $region48
        $region47: #{tpu_custom_call.1} parent=11 // pred_region
          _
        $region48: #{tpu_custom_call.1} parent=11 // pred_fallthru
          _
        // Predicated region
        $region49: #{tpu_custom_call.1} parent=11 // pred_check
          %p369 = pneg %p261
        $region50: #{tpu_custom_call.1} parent=11 // pred_check_branch
          %371 = sbr.rel (%p369) target = $region52
        $region51: #{tpu_custom_call.1} parent=11 // pred_region
          _
        $region52: #{tpu_custom_call.1} parent=11 // pred_fallthru
          _
      $region12: #{tpu_custom_call.1} parent=5 // pred_fallthru
        _
      %p372 = scmp.lt.s32.totalorder %s25, 2
      // Predicated region
      $region53: #{tpu_custom_call.1} parent=5 // pred_check
        %p373 = pneg %p372
      $region54: #{tpu_custom_call.1} parent=5 // pred_check_branch
        %375 = sbr.rel (%p373) target = $region56
      $region55: #{tpu_custom_call.1} parent=5 // pred_region
        // Predicated region
        $region57: #{tpu_custom_call.1} parent=55 // pred_check
          %p376 = pneg %p45
        $region58: #{tpu_custom_call.1} parent=55 // pred_check_branch
          %378 = sbr.rel (%p376) target = $region60
        $region59: #{tpu_custom_call.1} parent=55 // pred_region
          %s379 = sand.u32 %s35, 1
          %s380 = scalar_lea.sflag [#allocation3], %s379
          %s381 = sand.u32 %s35, 1
          %s382 = smul.addr %s381, 128
          %s383 = scalar_lea.vmem [#allocation2], %s382
          %s385 = ssub.s32 2048, 2048
          %386 = vsyncadd %s380, %s385
          %s387 = smul.addr %s25, 16
          %s388 = smul.addr %s387, 128
          %s389 = scalar_lea.hbm %s0, %s388
          %s390 = sshll.u32 %s383, 4
          %s391 = int_to_ptr.vmem [resolvable:$true] %s390
          %396 = dma.hbm_to_vmem [thread:$0]  %s389, 2048, %s391, %s380, 128, 128, 8
        $region60: #{tpu_custom_call.1} parent=55 // pred_fallthru
          _
      $region56: #{tpu_custom_call.1} parent=5 // pred_fallthru
        _
      %p397 = scmp.le.s32.totalorder 1, %s25
      %p398 = scmp.lt.s32.totalorder %s25, 3
      %p399 = pnand %p397, %p398
      %p400 = pneg %p399
      // Predicated region
      $region61: #{tpu_custom_call.1} parent=5 // pred_check
        _
      $region62: #{tpu_custom_call.1} parent=5 // pred_check_branch
        %402 = sbr.rel (%p399) target = $region64
      $region63: #{tpu_custom_call.1} parent=5 // pred_region
        %s403 = ssub.s32 %s25, 1
        %s404 = sand.u32 %s38, 1
        %s405 = scalar_lea.sflag [#allocation3], %s404
        %s406 = sand.u32 %s38, 1
        %s407 = smul.addr %s406, 128
        %s408 = scalar_lea.vmem [#allocation2], %s407
        // Predicated region
        $region65: #{tpu_custom_call.1} parent=63 // pred_check
          %p409 = pneg %p51
        $region66: #{tpu_custom_call.1} parent=63 // pred_check_branch
          %411 = sbr.rel (%p409) target = $region68
        $region67: #{tpu_custom_call.1} parent=63 // pred_region
          %412 = dma.done %s405, 2048
        $region68: #{tpu_custom_call.1} parent=63 // pred_fallthru
          _
        // Predicated region
        $region69: #{tpu_custom_call.1} parent=63 // pred_check
          %p413 = pneg %p72
        $region70: #{tpu_custom_call.1} parent=63 // pred_check_branch
          %415 = sbr.rel (%p413) target = $region72
        $region71: #{tpu_custom_call.1} parent=63 // pred_region
          %416 = dma.done [#allocation6], 6144
        $region72: #{tpu_custom_call.1} parent=63 // pred_fallthru
          _
        // Predicated region
        $region73: #{tpu_custom_call.1} parent=63 // pred_check
          %p417 = pneg %p93
        $region74: #{tpu_custom_call.1} parent=63 // pred_check_branch
          %419 = sbr.rel (%p417) target = $region76
        $region75: #{tpu_custom_call.1} parent=63 // pred_region
          %420 = dma.done [#allocation6], 2048
        $region76: #{tpu_custom_call.1} parent=63 // pred_fallthru
          _
        // Predicated region
        $region77: #{tpu_custom_call.1} parent=63 // pred_check
          %p421 = pneg %p156
        $region78: #{tpu_custom_call.1} parent=63 // pred_check_branch
          %423 = sbr.rel (%p421) target = $region80
        $region79: #{tpu_custom_call.1} parent=63 // pred_region
          %424 = dma.done [#allocation9], 4096
        $region80: #{tpu_custom_call.1} parent=63 // pred_fallthru
          _
        // Predicated region
        $region81: #{tpu_custom_call.1} parent=63 // pred_check
          %p425 = pneg %p198
        $region82: #{tpu_custom_call.1} parent=63 // pred_check_branch
          %427 = sbr.rel (%p425) target = $region84
        $region83: #{tpu_custom_call.1} parent=63 // pred_region
          %428 = dma.done [#allocation9], 4096
        $region84: #{tpu_custom_call.1} parent=63 // pred_fallthru
          _
        %s429 = sand.u32 %s38, 1
        %s430 = scalar_lea.sflag [#allocation3], %s429
        %s431 = sand.u32 %s38, 1
        %s432 = smul.addr %s431, 128
        %s433 = scalar_lea.vmem [#allocation2], %s432
        %p434 = pneg %p51
        %p435 = pneg %p48
        %p436 = pneg %p72
        %p437 = pneg %p69
        %p438 = pneg %p93
        %p439 = pneg %p90
        %p440 = pneg %p114
        %p441 = pneg %p111
        %p442 = pneg %p135
        %p443 = pneg %p132
        %p444 = pneg %p156
        %p445 = pneg %p153
        %p446 = pneg %p177
        %p447 = pneg %p174
        %p448 = pneg %p198
        %p449 = pneg %p195
        %p450 = pneg %p219
        %p451 = pneg %p216
        %p452 = pneg %p240
        %p453 = pneg %p237
        %p454 = pneg %p261
        %p455 = pneg %p258
        %p456 = pneg %p287
        %p457 = pneg %p284
        %s458 = sand.u32 %s274, 1
        %s459 = scalar_lea.sflag [#allocation4], %s458
        %s460 = sand.u32 %s274, 1
        %s461 = smul.addr %s460, 128
        %s462 = scalar_lea.vmem [#allocation11], %s461
        %v463 = vld [vmem:[%s408] sm:$0xff]
        %v464 = vld [vmem:[%s408 + $0x8] sm:$0xff]
        %v465 = vld [vmem:[%s408 + $0x10] sm:$0xff]
        %v466 = vld [vmem:[%s408 + $0x18] sm:$0xff]
        %v467 = vld [vmem:[%s408 + $0x20] sm:$0xff]
        %v468 = vld [vmem:[%s408 + $0x28] sm:$0xff]
        %v469 = vld [vmem:[%s408 + $0x30] sm:$0xff]
        %v470 = vld [vmem:[%s408 + $0x38] sm:$0xff]
        %v471 = vld [vmem:[%s408 + $0x40] sm:$0xff]
        %v472 = vld [vmem:[%s408 + $0x48] sm:$0xff]
        %v473 = vld [vmem:[%s408 + $0x50] sm:$0xff]
        %v474 = vld [vmem:[%s408 + $0x58] sm:$0xff]
        %v475 = vld [vmem:[%s408 + $0x60] sm:$0xff]
        %v476 = vld [vmem:[%s408 + $0x68] sm:$0xff]
        %v477 = vld [vmem:[%s408 + $0x70] sm:$0xff]
        %v478 = vld [vmem:[%s408 + $0x78] sm:$0xff]
        %v479 = vld [vmem:[#allocation5] sm:$0xff]
        %v480 = vld [vmem:[#allocation5 + $0x8] sm:$0xff]
        %v481 = vld [vmem:[#allocation5 + $0x10] sm:$0xff]
        %v482 = vld [vmem:[#allocation5 + $0x18] sm:$0xff]
        %v483 = vld [vmem:[#allocation5 + $0x20] sm:$0xff]
        %v484 = vld [vmem:[#allocation5 + $0x28] sm:$0xff]
        %v485 = vld [vmem:[#allocation5 + $0x30] sm:$0xff]
        %v486 = vld [vmem:[#allocation5 + $0x38] sm:$0xff]
        %v487 = vld [vmem:[#allocation5 + $0x40] sm:$0xff]
        %v488 = vld [vmem:[#allocation5 + $0x48] sm:$0xff]
        %v489 = vld [vmem:[#allocation5 + $0x50] sm:$0xff]
        %v490 = vld [vmem:[#allocation5 + $0x58] sm:$0xff]
        %v491 = vld [vmem:[#allocation5 + $0x60] sm:$0xff]
        %v492 = vld [vmem:[#allocation5 + $0x68] sm:$0xff]
        %v493 = vld [vmem:[#allocation5 + $0x70] sm:$0xff]
        %v494 = vld [vmem:[#allocation5 + $0x78] sm:$0xff]
        %v495 = vld [vmem:[#allocation5 + $0x80] sm:$0xff]
        %v496 = vld [vmem:[#allocation5 + $0x88] sm:$0xff]
        %v497 = vld [vmem:[#allocation5 + $0x90] sm:$0xff]
        %v498 = vld [vmem:[#allocation5 + $0x98] sm:$0xff]
        %v499 = vld [vmem:[#allocation5 + $0xa0] sm:$0xff]
        %v500 = vld [vmem:[#allocation5 + $0xa8] sm:$0xff]
        %v501 = vld [vmem:[#allocation5 + $0xb0] sm:$0xff]
        %v502 = vld [vmem:[#allocation5 + $0xb8] sm:$0xff]
        %v503 = vld [vmem:[#allocation5 + $0xc0] sm:$0xff]
        %v504 = vld [vmem:[#allocation5 + $0xc8] sm:$0xff]
        %v505 = vld [vmem:[#allocation5 + $0xd0] sm:$0xff]
        %v506 = vld [vmem:[#allocation5 + $0xd8] sm:$0xff]
        %v507 = vld [vmem:[#allocation5 + $0xe0] sm:$0xff]
        %v508 = vld [vmem:[#allocation5 + $0xe8] sm:$0xff]
        %v509 = vld [vmem:[#allocation5 + $0xf0] sm:$0xff]
        %v510 = vld [vmem:[#allocation5 + $0xf8] sm:$0xff]
        %v511 = vld [vmem:[#allocation5 + $0x100] sm:$0xff]
        %v512 = vld [vmem:[#allocation5 + $0x108] sm:$0xff]
        %v513 = vld [vmem:[#allocation5 + $0x110] sm:$0xff]
        %v514 = vld [vmem:[#allocation5 + $0x118] sm:$0xff]
        %v515 = vld [vmem:[#allocation5 + $0x120] sm:$0xff]
        %v516 = vld [vmem:[#allocation5 + $0x128] sm:$0xff]
        %v517 = vld [vmem:[#allocation5 + $0x130] sm:$0xff]
        %v518 = vld [vmem:[#allocation5 + $0x138] sm:$0xff]
        %v519 = vld [vmem:[#allocation5 + $0x140] sm:$0xff]
        %v520 = vld [vmem:[#allocation5 + $0x148] sm:$0xff]
        %v521 = vld [vmem:[#allocation5 + $0x150] sm:$0xff]
        %v522 = vld [vmem:[#allocation5 + $0x158] sm:$0xff]
        %v523 = vld [vmem:[#allocation5 + $0x160] sm:$0xff]
        %v524 = vld [vmem:[#allocation5 + $0x168] sm:$0xff]
        %v525 = vld [vmem:[#allocation5 + $0x170] sm:$0xff]
        %v526 = vld [vmem:[#allocation5 + $0x178] sm:$0xff]
        %527 = vmatprep.subr.mxu0 %v480
        %528 = vmatpush1.msra.mxu0 %v479
        %529 = vmatprep.subr.mxu0 %v483
        %530 = vmatpush1.msra.mxu0 %v482
        %531 = vmatprep.subr.mxu0 %v486
        %532 = vmatpush1.msra.mxu0 %v485
        %533 = vmatprep.subr.mxu0 %v489
        %534 = vmatpush1.msra.mxu0 %v488
        %535 = vmatprep.subr.mxu0 %v492
        %536 = vmatpush1.msra.mxu0 %v491
        %537 = vmatprep.subr.mxu0 %v495
        %538 = vmatpush1.msra.mxu0 %v494
        %539 = vmatprep.subr.mxu0 %v498
        %540 = vmatpush1.msra.mxu0 %v497
        %541 = vmatprep.subr.mxu0 %v501
        %542 = vmatpush1.msra.mxu0 %v500
        %543 = vmatprep.subr.mxu0 %v504
        %544 = vmatpush1.msra.mxu0 %v503
        %545 = vmatprep.subr.mxu0 %v507
        %546 = vmatpush1.msra.mxu0 %v506
        %547 = vmatprep.subr.mxu0 %v510
        %548 = vmatpush1.msra.mxu0 %v509
        %549 = vmatprep.subr.mxu0 %v513
        %550 = vmatpush1.msra.mxu0 %v512
        %551 = vmatprep.subr.mxu0 %v516
        %552 = vmatpush1.msra.mxu0 %v515
        %553 = vmatprep.subr.mxu0 %v519
        %554 = vmatpush1.msra.mxu0 %v518
        %555 = vmatprep.subr.mxu0 %v522
        %556 = vmatpush1.msra.mxu0 %v521
        %557 = vmatprep.subr.mxu0 %v525
        %558 = vmatpush1.msra.mxu0 %v524
        %559 = vmatprep.subr.mxu0 0.0
        %560 = vmatpush1.msra.mxu0 0.0
        %561 = vmatprep.subr.mxu0 0.0
        %562 = vmatpush1.msra.mxu0 0.0
        %563 = vmatprep.subr.mxu0 0.0
        %564 = vmatpush1.msra.mxu0 0.0
        %565 = vmatprep.subr.mxu0 0.0
        %566 = vmatpush1.msra.mxu0 0.0
        %567 = vmatprep.subr.mxu0 0.0
        %568 = vmatpush1.msra.mxu0 0.0
        %569 = vmatprep.subr.mxu0 0.0
        %570 = vmatpush1.msra.mxu0 0.0
        %571 = vmatprep.subr.mxu0 0.0
        %572 = vmatpush1.msra.mxu0 0.0
        %573 = vmatprep.subr.mxu0 0.0
        %574 = vmatpush1.msra.mxu0 0.0
        %575 = vmatprep.subr.mxu0 0.0
        %576 = vmatpush1.msra.mxu0 0.0
        %577 = vmatprep.subr.mxu0 0.0
        %578 = vmatpush1.msra.mxu0 0.0
        %579 = vmatprep.subr.mxu0 0.0
        %580 = vmatpush1.msra.mxu0 0.0
        %581 = vmatprep.subr.mxu0 0.0
        %582 = vmatpush1.msra.mxu0 0.0
        %583 = vmatprep.subr.mxu0 0.0
        %584 = vmatpush1.msra.mxu0 0.0
        %585 = vmatprep.subr.mxu0 0.0
        %586 = vmatpush1.msra.mxu0 0.0
        %587 = vmatprep.subr.mxu0 0.0
        %588 = vmatpush1.msra.mxu0 0.0
        %589 = vmatprep.subr.mxu0 0.0
        %590 = vmatpush1.msra.mxu0 0.0
        %591 = vmatprep.mubr.f32.mxu0 0.0
        %592 = vmatmul.mubr.f32.gmra.mrb[0].mxu0 %v463
        %v593 = vpop.f32.mrb[0].mxu0
        %v594 = vadd.f32 0.0, %v593
        %v595 = vpop.f32.mrb[0].mxu0
        %v596 = vadd.f32 0.0, %v595
        %597 = vmatprep.mubr.f32.mxu0 0.0
        %598 = vmatmul.mubr.f32.gmra.mrb[0].mxu0 %v464
        %v599 = vpop.f32.mrb[0].mxu0
        %v600 = vadd.f32 0.0, %v599
        %v601 = vpop.f32.mrb[0].mxu0
        %v602 = vadd.f32 0.0, %v601
        %603 = vmatprep.mubr.f32.mxu0 0.0
        %604 = vmatmul.mubr.f32.gmra.mrb[0].mxu0 %v465
        %v605 = vpop.f32.mrb[0].mxu0
        %v606 = vadd.f32 0.0, %v605
        %v607 = vpop.f32.mrb[0].mxu0
        %v608 = vadd.f32 0.0, %v607
        %609 = vmatprep.mubr.f32.mxu0 0.0
        %610 = vmatmul.mubr.f32.gmra.mrb[0].mxu0 %v466
        %v611 = vpop.f32.mrb[0].mxu0
        %v612 = vadd.f32 0.0, %v611
        %v613 = vpop.f32.mrb[0].mxu0
        %v614 = vadd.f32 0.0, %v613
        %615 = vmatprep.mubr.f32.mxu0 0.0
        %616 = vmatmul.mubr.f32.gmra.mrb[0].mxu0 %v467
        %v617 = vpop.f32.mrb[0].mxu0
        %v618 = vadd.f32 0.0, %v617
        %v619 = vpop.f32.mrb[0].mxu0
        %v620 = vadd.f32 0.0, %v619
        %621 = vmatprep.mubr.f32.mxu0 0.0
        %622 = vmatmul.mubr.f32.gmra.mrb[0].mxu0 %v468
        %v623 = vpop.f32.mrb[0].mxu0
        %v624 = vadd.f32 0.0, %v623
        %v625 = vpop.f32.mrb[0].mxu0
        %v626 = vadd.f32 0.0, %v625
        %627 = vmatprep.mubr.f32.mxu0 0.0
        %628 = vmatmul.mubr.f32.gmra.mrb[0].mxu0 %v469
        %v629 = vpop.f32.mrb[0].mxu0
        %v630 = vadd.f32 0.0, %v629
        %v631 = vpop.f32.mrb[0].mxu0
        %v632 = vadd.f32 0.0, %v631
        %633 = vmatprep.mubr.f32.mxu0 0.0
        %634 = vmatmul.mubr.f32.gmra.mrb[0].mxu0 %v470
        %v635 = vpop.f32.mrb[0].mxu0
        %v636 = vadd.f32 0.0, %v635
        %v637 = vpop.f32.mrb[0].mxu0
        %v638 = vadd.f32 0.0, %v637
        %639 = vmatprep.mubr.f32.mxu0 0.0
        %640 = vmatmul.mubr.f32.gmra.mrb[0].mxu0 %v471
        %v641 = vpop.f32.mrb[0].mxu0
        %v642 = vadd.f32 0.0, %v641
        %v643 = vpop.f32.mrb[0].mxu0
        %v644 = vadd.f32 0.0, %v643
        %645 = vmatprep.mubr.f32.mxu0 0.0
        %646 = vmatmul.mubr.f32.gmra.mrb[0].mxu0 %v472
        %v647 = vpop.f32.mrb[0].mxu0
        %v648 = vadd.f32 0.0, %v647
        %v649 = vpop.f32.mrb[0].mxu0
        %v650 = vadd.f32 0.0, %v649
        %651 = vmatprep.mubr.f32.mxu0 0.0
        %652 = vmatmul.mubr.f32.gmra.mrb[0].mxu0 %v473
        %v653 = vpop.f32.mrb[0].mxu0
        %v654 = vadd.f32 0.0, %v653
        %v655 = vpop.f32.mrb[0].mxu0
        %v656 = vadd.f32 0.0, %v655
        %657 = vmatprep.mubr.f32.mxu0 0.0
        %658 = vmatmul.mubr.f32.gmra.mrb[0].mxu0 %v474
        %v659 = vpop.f32.mrb[0].mxu0
        %v660 = vadd.f32 0.0, %v659
        %v661 = vpop.f32.mrb[0].mxu0
        %v662 = vadd.f32 0.0, %v661
        %663 = vmatprep.mubr.f32.mxu0 0.0
        %664 = vmatmul.mubr.f32.gmra.mrb[0].mxu0 %v475
        %v665 = vpop.f32.mrb[0].mxu0
        %v666 = vadd.f32 0.0, %v665
        %v667 = vpop.f32.mrb[0].mxu0
        %v668 = vadd.f32 0.0, %v667
        %669 = vmatprep.mubr.f32.mxu0 0.0
        %670 = vmatmul.mubr.f32.gmra.mrb[0].mxu0 %v476
        %v671 = vpop.f32.mrb[0].mxu0
        %v672 = vadd.f32 0.0, %v671
        %v673 = vpop.f32.mrb[0].mxu0
        %v674 = vadd.f32 0.0, %v673
        %675 = vmatprep.mubr.f32.mxu0 0.0
        %676 = vmatmul.mubr.f32.gmra.mrb[0].mxu0 %v477
        %v677 = vpop.f32.mrb[0].mxu0
        %v678 = vadd.f32 0.0, %v677
        %v679 = vpop.f32.mrb[0].mxu0
        %v680 = vadd.f32 0.0, %v679
        %681 = vmatprep.mubr.f32.mxu0 0.0
        %682 = vmatmul.mubr.f32.gmra.mrb[0].mxu0 %v478
        %v683 = vpop.f32.mrb[0].mxu0
        %v684 = vadd.f32 0.0, %v683
        %v685 = vpop.f32.mrb[0].mxu0
        %v686 = vadd.f32 0.0, %v685
        %687 = vdwg.mxu0
        %688 = vmatprep.subr.mxu0 0.0
        %689 = vmatpush1.msra.mxu0 %v481
        %690 = vmatprep.subr.mxu0 0.0
        %691 = vmatpush1.msra.mxu0 %v484
        %692 = vmatprep.subr.mxu0 0.0
        %693 = vmatpush1.msra.mxu0 %v487
        %694 = vmatprep.subr.mxu0 0.0
        %695 = vmatpush1.msra.mxu0 %v490
        %696 = vmatprep.subr.mxu0 0.0
        %697 = vmatpush1.msra.mxu0 %v493
        %698 = vmatprep.subr.mxu0 0.0
        %699 = vmatpush1.msra.mxu0 %v496
        %700 = vmatprep.subr.mxu0 0.0
        %701 = vmatpush1.msra.mxu0 %v499
        %702 = vmatprep.subr.mxu0 0.0
        %703 = vmatpush1.msra.mxu0 %v502
        %704 = vmatprep.subr.mxu0 0.0
        %705 = vmatpush1.msra.mxu0 %v505
        %706 = vmatprep.subr.mxu0 0.0
        %707 = vmatpush1.msra.mxu0 %v508
        %708 = vmatprep.subr.mxu0 0.0
        %709 = vmatpush1.msra.mxu0 %v511
        %710 = vmatprep.subr.mxu0 0.0
        %711 = vmatpush1.msra.mxu0 %v514
        %712 = vmatprep.subr.mxu0 0.0
        %713 = vmatpush1.msra.mxu0 %v517
        %714 = vmatprep.subr.mxu0 0.0
        %715 = vmatpush1.msra.mxu0 %v520
        %716 = vmatprep.subr.mxu0 0.0
        %717 = vmatpush1.msra.mxu0 %v523
        %718 = vmatprep.subr.mxu0 0.0
        %719 = vmatpush1.msra.mxu0 %v526
        %720 = vmatprep.subr.mxu0 0.0
        %721 = vmatpush1.msra.mxu0 0.0
        %722 = vmatprep.subr.mxu0 0.0
        %723 = vmatpush1.msra.mxu0 0.0
        %724 = vmatprep.subr.mxu0 0.0
        %725 = vmatpush1.msra.mxu0 0.0
        %726 = vmatprep.subr.mxu0 0.0
        %727 = vmatpush1.msra.mxu0 0.0
        %728 = vmatprep.subr.mxu0 0.0
        %729 = vmatpush1.msra.mxu0 0.0
        %730 = vmatprep.subr.mxu0 0.0
        %731 = vmatpush1.msra.mxu0 0.0
        %732 = vmatprep.subr.mxu0 0.0
        %733 = vmatpush1.msra.mxu0 0.0
        %734 = vmatprep.subr.mxu0 0.0
        %735 = vmatpush1.msra.mxu0 0.0
        %736 = vmatprep.subr.mxu0 0.0
        %737 = vmatpush1.msra.mxu0 0.0
        %738 = vmatprep.subr.mxu0 0.0
        %739 = vmatpush1.msra.mxu0 0.0
        %740 = vmatprep.subr.mxu0 0.0
        %741 = vmatpush1.msra.mxu0 0.0
        %742 = vmatprep.subr.mxu0 0.0
        %743 = vmatpush1.msra.mxu0 0.0
        %744 = vmatprep.subr.mxu0 0.0
        %745 = vmatpush1.msra.mxu0 0.0
        %746 = vmatprep.subr.mxu0 0.0
        %747 = vmatpush1.msra.mxu0 0.0
        %748 = vmatprep.subr.mxu0 0.0
        %749 = vmatpush1.msra.mxu0 0.0
        %750 = vmatprep.subr.mxu0 0.0
        %751 = vmatpush1.msra.mxu0 0.0
        %752 = vmatprep.mubr.f32.mxu0 0.0
        %753 = vmatmul.mubr.f32.gmra.mrb[0].mxu0 %v463
        %v754 = vpop.f32.mrb[0].mxu0
        %v755 = vadd.f32 0.0, %v754
        %v756 = vpop.f32.mrb[0].mxu0
        %757 = vmatprep.mubr.f32.mxu0 0.0
        %758 = vmatmul.mubr.f32.gmra.mrb[0].mxu0 %v464
        %v759 = vpop.f32.mrb[0].mxu0
        %v760 = vadd.f32 0.0, %v759
        %v761 = vpop.f32.mrb[0].mxu0
        %762 = vmatprep.mubr.f32.mxu0 0.0
        %763 = vmatmul.mubr.f32.gmra.mrb[0].mxu0 %v465
        %v764 = vpop.f32.mrb[0].mxu0
        %v765 = vadd.f32 0.0, %v764
        %v766 = vpop.f32.mrb[0].mxu0
        %767 = vmatprep.mubr.f32.mxu0 0.0
        %768 = vmatmul.mubr.f32.gmra.mrb[0].mxu0 %v466
        %v769 = vpop.f32.mrb[0].mxu0
        %v770 = vadd.f32 0.0, %v769
        %v771 = vpop.f32.mrb[0].mxu0
        %772 = vmatprep.mubr.f32.mxu0 0.0
        %773 = vmatmul.mubr.f32.gmra.mrb[0].mxu0 %v467
        %v774 = vpop.f32.mrb[0].mxu0
        %v775 = vadd.f32 0.0, %v774
        %v776 = vpop.f32.mrb[0].mxu0
        %777 = vmatprep.mubr.f32.mxu0 0.0
        %778 = vmatmul.mubr.f32.gmra.mrb[0].mxu0 %v468
        %v779 = vpop.f32.mrb[0].mxu0
        %v780 = vadd.f32 0.0, %v779
        %v781 = vpop.f32.mrb[0].mxu0
        %782 = vmatprep.mubr.f32.mxu0 0.0
        %783 = vmatmul.mubr.f32.gmra.mrb[0].mxu0 %v469
        %v784 = vpop.f32.mrb[0].mxu0
        %v785 = vadd.f32 0.0, %v784
        %v786 = vpop.f32.mrb[0].mxu0
        %787 = vmatprep.mubr.f32.mxu0 0.0
        %788 = vmatmul.mubr.f32.gmra.mrb[0].mxu0 %v470
        %v789 = vpop.f32.mrb[0].mxu0
        %v790 = vadd.f32 0.0, %v789
        %v791 = vpop.f32.mrb[0].mxu0
        %792 = vmatprep.mubr.f32.mxu0 0.0
        %793 = vmatmul.mubr.f32.gmra.mrb[0].mxu0 %v471
        %v794 = vpop.f32.mrb[0].mxu0
        %v795 = vadd.f32 0.0, %v794
        %v796 = vpop.f32.mrb[0].mxu0
        %797 = vmatprep.mubr.f32.mxu0 0.0
        %798 = vmatmul.mubr.f32.gmra.mrb[0].mxu0 %v472
        %v799 = vpop.f32.mrb[0].mxu0
        %v800 = vadd.f32 0.0, %v799
        %v801 = vpop.f32.mrb[0].mxu0
        %802 = vmatprep.mubr.f32.mxu0 0.0
        %803 = vmatmul.mubr.f32.gmra.mrb[0].mxu0 %v473
        %v804 = vpop.f32.mrb[0].mxu0
        %v805 = vadd.f32 0.0, %v804
        %v806 = vpop.f32.mrb[0].mxu0
        %807 = vmatprep.mubr.f32.mxu0 0.0
        %808 = vmatmul.mubr.f32.gmra.mrb[0].mxu0 %v474
        %v809 = vpop.f32.mrb[0].mxu0
        %v810 = vadd.f32 0.0, %v809
        %v811 = vpop.f32.mrb[0].mxu0
        %812 = vmatprep.mubr.f32.mxu0 0.0
        %813 = vmatmul.mubr.f32.gmra.mrb[0].mxu0 %v475
        %v814 = vpop.f32.mrb[0].mxu0
        %v815 = vadd.f32 0.0, %v814
        %v816 = vpop.f32.mrb[0].mxu0
        %817 = vmatprep.mubr.f32.mxu0 0.0
        %818 = vmatmul.mubr.f32.gmra.mrb[0].mxu0 %v476
        %v819 = vpop.f32.mrb[0].mxu0
        %v820 = vadd.f32 0.0, %v819
        %v821 = vpop.f32.mrb[0].mxu0
        %822 = vmatprep.mubr.f32.mxu0 0.0
        %823 = vmatmul.mubr.f32.gmra.mrb[0].mxu0 %v477
        %v824 = vpop.f32.mrb[0].mxu0
        %v825 = vadd.f32 0.0, %v824
        %v826 = vpop.f32.mrb[0].mxu0
        %827 = vmatprep.mubr.f32.mxu0 0.0
        %828 = vmatmul.mubr.f32.gmra.mrb[0].mxu0 %v478
        %v829 = vpop.f32.mrb[0].mxu0
        %v830 = vadd.f32 0.0, %v829
        %v831 = vpop.f32.mrb[0].mxu0
        %832 = vdwg.mxu0
        %v833 = vmul.f32 %v594, 0.17677669
        %v834 = vmul.f32 %v600, 0.17677669
        %v835 = vmul.f32 %v606, 0.17677669
        %v836 = vmul.f32 %v612, 0.17677669
        %v837 = vmul.f32 %v618, 0.17677669
        %v838 = vmul.f32 %v624, 0.17677669
        %v839 = vmul.f32 %v630, 0.17677669
        %v840 = vmul.f32 %v636, 0.17677669
        %v841 = vmul.f32 %v642, 0.17677669
        %v842 = vmul.f32 %v648, 0.17677669
        %v843 = vmul.f32 %v654, 0.17677669
        %v844 = vmul.f32 %v660, 0.17677669
        %v845 = vmul.f32 %v666, 0.17677669
        %v846 = vmul.f32 %v672, 0.17677669
        %v847 = vmul.f32 %v678, 0.17677669
        %v848 = vmul.f32 %v684, 0.17677669
        %v849 = vld [vmem:[#allocation7] sm:$0xff]
        %v850 = vld [vmem:[#allocation7 + $0x8] sm:$0xff]
        %v851 = vld [vmem:[#allocation7 + $0x10] sm:$0xff]
        %v852 = vld [vmem:[#allocation7 + $0x18] sm:$0xff]
        %v853 = vld [vmem:[#allocation7 + $0x20] sm:$0xff]
        %v854 = vld [vmem:[#allocation7 + $0x28] sm:$0xff]
        %v855 = vld [vmem:[#allocation7 + $0x30] sm:$0xff]
        %v856 = vld [vmem:[#allocation7 + $0x38] sm:$0xff]
        %v857 = vld [vmem:[#allocation7 + $0x40] sm:$0xff]
        %v858 = vld [vmem:[#allocation7 + $0x48] sm:$0xff]
        %v859 = vld [vmem:[#allocation7 + $0x50] sm:$0xff]
        %v860 = vld [vmem:[#allocation7 + $0x58] sm:$0xff]
        %v861 = vld [vmem:[#allocation7 + $0x60] sm:$0xff]
        %v862 = vld [vmem:[#allocation7 + $0x68] sm:$0xff]
        %v863 = vld [vmem:[#allocation7 + $0x70] sm:$0xff]
        %v864 = vld [vmem:[#allocation7 + $0x78] sm:$0xff]
        %vm865 = vcmask 261120
        %v867 = vsel %vm865, %v833, 0
        %v870 = vsel %vm865, %v834, 0
        %v873 = vsel %vm865, %v835, 0
        %v876 = vsel %vm865, %v836, 0
        %v879 = vsel %vm865, %v837, 0
        %v882 = vsel %vm865, %v838, 0
        %v885 = vsel %vm865, %v839, 0
        %v888 = vsel %vm865, %v840, 0
        %v891 = vsel %vm865, %v841, 0
        %v894 = vsel %vm865, %v842, 0
        %v897 = vsel %vm865, %v843, 0
        %v900 = vsel %vm865, %v844, 0
        %v903 = vsel %vm865, %v845, 0
        %v906 = vsel %vm865, %v846, 0
        %v909 = vsel %vm865, %v847, 0
        %v912 = vsel %vm865, %v848, 0
        %v915 = vsel %vm865, %v596, 0
        %v918 = vsel %vm865, %v602, 0
        %v921 = vsel %vm865, %v608, 0
        %v924 = vsel %vm865, %v614, 0
        %v927 = vsel %vm865, %v620, 0
        %v930 = vsel %vm865, %v626, 0
        %v933 = vsel %vm865, %v632, 0
        %v936 = vsel %vm865, %v638, 0
        %v939 = vsel %vm865, %v644, 0
        %v942 = vsel %vm865, %v650, 0
        %v945 = vsel %vm865, %v656, 0
        %v948 = vsel %vm865, %v662, 0
        %v951 = vsel %vm865, %v668, 0
        %v954 = vsel %vm865, %v674, 0
        %v957 = vsel %vm865, %v680, 0
        %v960 = vsel %vm865, %v686, 0
        %962 = vmatprep.subr.mxu0 0.0
        %963 = vmatpush1.xpose.msra.mxu0 %v915
        %964 = vmatprep.subr.mxu0 0.0
        %965 = vmatpush1.xpose.msra.mxu0 %v918
        %966 = vmatprep.subr.mxu0 0.0
        %967 = vmatpush1.xpose.msra.mxu0 %v921
        %968 = vmatprep.subr.mxu0 0.0
        %969 = vmatpush1.xpose.msra.mxu0 %v924
        %970 = vmatprep.subr.mxu0 0.0
        %971 = vmatpush1.xpose.msra.mxu0 %v927
        %972 = vmatprep.subr.mxu0 0.0
        %973 = vmatpush1.xpose.msra.mxu0 %v930
        %974 = vmatprep.subr.mxu0 0.0
        %975 = vmatpush1.xpose.msra.mxu0 %v933
        %976 = vmatprep.subr.mxu0 0.0
        %977 = vmatpush1.xpose.msra.mxu0 %v936
        %978 = vmatprep.subr.mxu0 0.0
        %979 = vmatpush1.xpose.msra.mxu0 %v939
        %980 = vmatprep.subr.mxu0 0.0
        %981 = vmatpush1.xpose.msra.mxu0 %v942
        %982 = vmatprep.subr.mxu0 0.0
        %983 = vmatpush1.xpose.msra.mxu0 %v945
        %984 = vmatprep.subr.mxu0 0.0
        %985 = vmatpush1.xpose.msra.mxu0 %v948
        %986 = vmatprep.subr.mxu0 0.0
        %987 = vmatpush1.xpose.msra.mxu0 %v951
        %988 = vmatprep.subr.mxu0 0.0
        %989 = vmatpush1.xpose.msra.mxu0 %v954
        %990 = vmatprep.subr.mxu0 0.0
        %991 = vmatpush1.xpose.msra.mxu0 %v957
        %992 = vmatprep.subr.mxu0 0.0
        %993 = vmatpush1.xpose.msra.mxu0 %v960
        %994 = vmatprep.subr.mxu0 0.0
        %995 = vmatpush1.xpose.msra.mxu0 0.0
        %996 = vmatprep.subr.mxu0 0.0
        %997 = vmatpush1.xpose.msra.mxu0 0.0
        %998 = vmatprep.subr.mxu0 0.0
        %999 = vmatpush1.xpose.msra.mxu0 0.0
        %1000 = vmatprep.subr.mxu0 0.0
        %1001 = vmatpush1.xpose.msra.mxu0 0.0
        %1002 = vmatprep.subr.mxu0 0.0
        %1003 = vmatpush1.xpose.msra.mxu0 0.0
        %1004 = vmatprep.subr.mxu0 0.0
        %1005 = vmatpush1.xpose.msra.mxu0 0.0
        %1006 = vmatprep.subr.mxu0 0.0
        %1007 = vmatpush1.xpose.msra.mxu0 0.0
        %1008 = vmatprep.subr.mxu0 0.0
        %1009 = vmatpush1.xpose.msra.mxu0 0.0
        %1010 = vmatprep.subr.mxu0 0.0
        %1011 = vmatpush1.xpose.msra.mxu0 0.0
        %1012 = vmatprep.subr.mxu0 0.0
        %1013 = vmatpush1.xpose.msra.mxu0 0.0
        %1014 = vmatprep.subr.mxu0 0.0
        %1015 = vmatpush1.xpose.msra.mxu0 0.0
        %1016 = vmatprep.subr.mxu0 0.0
        %1017 = vmatpush1.xpose.msra.mxu0 0.0
        %1018 = vmatprep.subr.mxu0 0.0
        %1019 = vmatpush1.xpose.msra.mxu0 0.0
        %1020 = vmatprep.subr.mxu0 0.0
        %1021 = vmatpush1.xpose.msra.mxu0 0.0
        %1022 = vmatprep.subr.mxu0 0.0
        %1023 = vmatpush1.xpose.msra.mxu0 0.0
        %1024 = vmatprep.subr.mxu0 0.0
        %1025 = vmatpush1.xpose.msra.mxu0 0.0
        %1026 = vmatprep.mubr.f32.mxu0 0.0
        %1027 = vmatmul.mubr.f32.gmra.mrb[0].mxu0 %v867
        %v1028 = vpop.f32.mrb[0].mxu0
        %v1029 = vadd.f32 0.0, %v1028
        %v1030 = vpop.f32.mrb[0].mxu0
        %1031 = vmatprep.mubr.f32.mxu0 0.0
        %1032 = vmatmul.mubr.f32.gmra.mrb[0].mxu0 %v870
        %v1033 = vpop.f32.mrb[0].mxu0
        %v1034 = vadd.f32 0.0, %v1033
        %v1035 = vpop.f32.mrb[0].mxu0
        %1036 = vmatprep.mubr.f32.mxu0 0.0
        %1037 = vmatmul.mubr.f32.gmra.mrb[0].mxu0 %v873
        %v1038 = vpop.f32.mrb[0].mxu0
        %v1039 = vadd.f32 0.0, %v1038
        %v1040 = vpop.f32.mrb[0].mxu0
        %1041 = vmatprep.mubr.f32.mxu0 0.0
        %1042 = vmatmul.mubr.f32.gmra.mrb[0].mxu0 %v876
        %v1043 = vpop.f32.mrb[0].mxu0
        %v1044 = vadd.f32 0.0, %v1043
        %v1045 = vpop.f32.mrb[0].mxu0
        %1046 = vmatprep.mubr.f32.mxu0 0.0
        %1047 = vmatmul.mubr.f32.gmra.mrb[0].mxu0 %v879
        %v1048 = vpop.f32.mrb[0].mxu0
        %v1049 = vadd.f32 0.0, %v1048
        %v1050 = vpop.f32.mrb[0].mxu0
        %1051 = vmatprep.mubr.f32.mxu0 0.0
        %1052 = vmatmul.mubr.f32.gmra.mrb[0].mxu0 %v882
        %v1053 = vpop.f32.mrb[0].mxu0
        %v1054 = vadd.f32 0.0, %v1053
        %v1055 = vpop.f32.mrb[0].mxu0
        %1056 = vmatprep.mubr.f32.mxu0 0.0
        %1057 = vmatmul.mubr.f32.gmra.mrb[0].mxu0 %v885
        %v1058 = vpop.f32.mrb[0].mxu0
        %v1059 = vadd.f32 0.0, %v1058
        %v1060 = vpop.f32.mrb[0].mxu0
        %1061 = vmatprep.mubr.f32.mxu0 0.0
        %1062 = vmatmul.mubr.f32.gmra.mrb[0].mxu0 %v888
        %v1063 = vpop.f32.mrb[0].mxu0
        %v1064 = vadd.f32 0.0, %v1063
        %v1065 = vpop.f32.mrb[0].mxu0
        %1066 = vmatprep.mubr.f32.mxu0 0.0
        %1067 = vmatmul.mubr.f32.gmra.mrb[0].mxu0 %v891
        %v1068 = vpop.f32.mrb[0].mxu0
        %v1069 = vadd.f32 0.0, %v1068
        %v1070 = vpop.f32.mrb[0].mxu0
        %1071 = vmatprep.mubr.f32.mxu0 0.0
        %1072 = vmatmul.mubr.f32.gmra.mrb[0].mxu0 %v894
        %v1073 = vpop.f32.mrb[0].mxu0
        %v1074 = vadd.f32 0.0, %v1073
        %v1075 = vpop.f32.mrb[0].mxu0
        %1076 = vmatprep.mubr.f32.mxu0 0.0
        %1077 = vmatmul.mubr.f32.gmra.mrb[0].mxu0 %v897
        %v1078 = vpop.f32.mrb[0].mxu0
        %v1079 = vadd.f32 0.0, %v1078
        %v1080 = vpop.f32.mrb[0].mxu0
        %1081 = vmatprep.mubr.f32.mxu0 0.0
        %1082 = vmatmul.mubr.f32.gmra.mrb[0].mxu0 %v900
        %v1083 = vpop.f32.mrb[0].mxu0
        %v1084 = vadd.f32 0.0, %v1083
        %v1085 = vpop.f32.mrb[0].mxu0
        %1086 = vmatprep.mubr.f32.mxu0 0.0
        %1087 = vmatmul.mubr.f32.gmra.mrb[0].mxu0 %v903
        %v1088 = vpop.f32.mrb[0].mxu0
        %v1089 = vadd.f32 0.0, %v1088
        %v1090 = vpop.f32.mrb[0].mxu0
        %1091 = vmatprep.mubr.f32.mxu0 0.0
        %1092 = vmatmul.mubr.f32.gmra.mrb[0].mxu0 %v906
        %v1093 = vpop.f32.mrb[0].mxu0
        %v1094 = vadd.f32 0.0, %v1093
        %v1095 = vpop.f32.mrb[0].mxu0
        %1096 = vmatprep.mubr.f32.mxu0 0.0
        %1097 = vmatmul.mubr.f32.gmra.mrb[0].mxu0 %v909
        %v1098 = vpop.f32.mrb[0].mxu0
        %v1099 = vadd.f32 0.0, %v1098
        %v1100 = vpop.f32.mrb[0].mxu0
        %1101 = vmatprep.mubr.f32.mxu0 0.0
        %1102 = vmatmul.mubr.f32.gmra.mrb[0].mxu0 %v912
        %v1103 = vpop.f32.mrb[0].mxu0
        %v1104 = vadd.f32 0.0, %v1103
        %v1105 = vpop.f32.mrb[0].mxu0
        %1106 = vdwg.mxu0
        %1107 = vmax.xlane.f32.xlu0 %v1029
        %v1108 = vpop.xlane.xlu0 %1107
        %1109 = vmax.xlane.f32.xlu0 %v1034
        %v1110 = vpop.xlane.xlu0 %1109
        %1111 = vmax.xlane.f32.xlu0 %v1039
        %v1112 = vpop.xlane.xlu0 %1111
        %1113 = vmax.xlane.f32.xlu0 %v1044
        %v1114 = vpop.xlane.xlu0 %1113
        %1115 = vmax.xlane.f32.xlu0 %v1049
        %v1116 = vpop.xlane.xlu0 %1115
        %1117 = vmax.xlane.f32.xlu0 %v1054
        %v1118 = vpop.xlane.xlu0 %1117
        %1119 = vmax.xlane.f32.xlu0 %v1059
        %v1120 = vpop.xlane.xlu0 %1119
        %1121 = vmax.xlane.f32.xlu0 %v1064
        %v1122 = vpop.xlane.xlu0 %1121
        %1123 = vmax.xlane.f32.xlu0 %v1069
        %v1124 = vpop.xlane.xlu0 %1123
        %1125 = vmax.xlane.f32.xlu0 %v1074
        %v1126 = vpop.xlane.xlu0 %1125
        %1127 = vmax.xlane.f32.xlu0 %v1079
        %v1128 = vpop.xlane.xlu0 %1127
        %1129 = vmax.xlane.f32.xlu0 %v1084
        %v1130 = vpop.xlane.xlu0 %1129
        %1131 = vmax.xlane.f32.xlu0 %v1089
        %v1132 = vpop.xlane.xlu0 %1131
        %1133 = vmax.xlane.f32.xlu0 %v1094
        %v1134 = vpop.xlane.xlu0 %1133
        %1135 = vmax.xlane.f32.xlu0 %v1099
        %v1136 = vpop.xlane.xlu0 %1135
        %1137 = vmax.xlane.f32.xlu0 %v1104
        %v1138 = vpop.xlane.xlu0 %1137
        %v1139 = vsub.f32 %v1029, %v1108
        %v1140 = vsub.f32 %v1034, %v1110
        %v1141 = vsub.f32 %v1039, %v1112
        %v1142 = vsub.f32 %v1044, %v1114
        %v1143 = vsub.f32 %v1049, %v1116
        %v1144 = vsub.f32 %v1054, %v1118
        %v1145 = vsub.f32 %v1059, %v1120
        %v1146 = vsub.f32 %v1064, %v1122
        %v1147 = vsub.f32 %v1069, %v1124
        %v1148 = vsub.f32 %v1074, %v1126
        %v1149 = vsub.f32 %v1079, %v1128
        %v1150 = vsub.f32 %v1084, %v1130
        %v1151 = vsub.f32 %v1089, %v1132
        %v1152 = vsub.f32 %v1094, %v1134
        %v1153 = vsub.f32 %v1099, %v1136
        %v1154 = vsub.f32 %v1104, %v1138
        %v1155 = vmul.f32 %v1139, 1.442695
        %v1156 = vpow.pop %v1155
        %v1157 = vmul.f32 %v1140, 1.442695
        %v1158 = vpow.pop %v1157
        %v1159 = vmul.f32 %v1141, 1.442695
        %v1160 = vpow.pop %v1159
        %v1161 = vmul.f32 %v1142, 1.442695
        %v1162 = vpow.pop %v1161
        %v1163 = vmul.f32 %v1143, 1.442695
        %v1164 = vpow.pop %v1163
        %v1165 = vmul.f32 %v1144, 1.442695
        %v1166 = vpow.pop %v1165
        %v1167 = vmul.f32 %v1145, 1.442695
        %v1168 = vpow.pop %v1167
        %v1169 = vmul.f32 %v1146, 1.442695
        %v1170 = vpow.pop %v1169
        %v1171 = vmul.f32 %v1147, 1.442695
        %v1172 = vpow.pop %v1171
        %v1173 = vmul.f32 %v1148, 1.442695
        %v1174 = vpow.pop %v1173
        %v1175 = vmul.f32 %v1149, 1.442695
        %v1176 = vpow.pop %v1175
        %v1177 = vmul.f32 %v1150, 1.442695
        %v1178 = vpow.pop %v1177
        %v1179 = vmul.f32 %v1151, 1.442695
        %v1180 = vpow.pop %v1179
        %v1181 = vmul.f32 %v1152, 1.442695
        %v1182 = vpow.pop %v1181
        %v1183 = vmul.f32 %v1153, 1.442695
        %v1184 = vpow.pop %v1183
        %v1185 = vmul.f32 %v1154, 1.442695
        %v1186 = vpow.pop %v1185
        %1187 = vadd.xlane.f32.xlu0 %v1156
        %v1188 = vpop.xlane.xlu0 %1187
        %1189 = vadd.xlane.f32.xlu0 %v1158
        %v1190 = vpop.xlane.xlu0 %1189
        %1191 = vadd.xlane.f32.xlu0 %v1160
        %v1192 = vpop.xlane.xlu0 %1191
        %1193 = vadd.xlane.f32.xlu0 %v1162
        %v1194 = vpop.xlane.xlu0 %1193
        %1195 = vadd.xlane.f32.xlu0 %v1164
        %v1196 = vpop.xlane.xlu0 %1195
        %1197 = vadd.xlane.f32.xlu0 %v1166
        %v1198 = vpop.xlane.xlu0 %1197
        %1199 = vadd.xlane.f32.xlu0 %v1168
        %v1200 = vpop.xlane.xlu0 %1199
        %1201 = vadd.xlane.f32.xlu0 %v1170
        %v1202 = vpop.xlane.xlu0 %1201
        %1203 = vadd.xlane.f32.xlu0 %v1172
        %v1204 = vpop.xlane.xlu0 %1203
        %1205 = vadd.xlane.f32.xlu0 %v1174
        %v1206 = vpop.xlane.xlu0 %1205
        %1207 = vadd.xlane.f32.xlu0 %v1176
        %v1208 = vpop.xlane.xlu0 %1207
        %1209 = vadd.xlane.f32.xlu0 %v1178
        %v1210 = vpop.xlane.xlu0 %1209
        %1211 = vadd.xlane.f32.xlu0 %v1180
        %v1212 = vpop.xlane.xlu0 %1211
        %1213 = vadd.xlane.f32.xlu0 %v1182
        %v1214 = vpop.xlane.xlu0 %1213
        %1215 = vadd.xlane.f32.xlu0 %v1184
        %v1216 = vpop.xlane.xlu0 %1215
        %1217 = vadd.xlane.f32.xlu0 %v1186
        %v1218 = vpop.xlane.xlu0 %1217
        %v1219 = vrcp.pop %v1188
        %v1220 = vrcp.pop %v1190
        %v1221 = vrcp.pop %v1192
        %v1222 = vrcp.pop %v1194
        %v1223 = vrcp.pop %v1196
        %v1224 = vrcp.pop %v1198
        %v1225 = vrcp.pop %v1200
        %v1226 = vrcp.pop %v1202
        %v1227 = vrcp.pop %v1204
        %v1228 = vrcp.pop %v1206
        %v1229 = vrcp.pop %v1208
        %v1230 = vrcp.pop %v1210
        %v1231 = vrcp.pop %v1212
        %v1232 = vrcp.pop %v1214
        %v1233 = vrcp.pop %v1216
        %v1234 = vrcp.pop %v1218
        %v1235 = vmul.f32 %v1156, %v1219
        %v1236 = vmul.f32 %v1158, %v1220
        %v1237 = vmul.f32 %v1160, %v1221
        %v1238 = vmul.f32 %v1162, %v1222
        %v1239 = vmul.f32 %v1164, %v1223
        %v1240 = vmul.f32 %v1166, %v1224
        %v1241 = vmul.f32 %v1168, %v1225
        %v1242 = vmul.f32 %v1170, %v1226
        %v1243 = vmul.f32 %v1172, %v1227
        %v1244 = vmul.f32 %v1174, %v1228
        %v1245 = vmul.f32 %v1176, %v1229
        %v1246 = vmul.f32 %v1178, %v1230
        %v1247 = vmul.f32 %v1180, %v1231
        %v1248 = vmul.f32 %v1182, %v1232
        %v1249 = vmul.f32 %v1184, %v1233
        %v1250 = vmul.f32 %v1186, %v1234
        %1251 = vmatprep.subr.mxu0 0.0
        %1252 = vmatpush1.msra.mxu0 %v755
        %1253 = vmatprep.subr.mxu0 0.0
        %1254 = vmatpush1.msra.mxu0 %v760
        %1255 = vmatprep.subr.mxu0 0.0
        %1256 = vmatpush1.msra.mxu0 %v765
        %1257 = vmatprep.subr.mxu0 0.0
        %1258 = vmatpush1.msra.mxu0 %v770
        %1259 = vmatprep.subr.mxu0 0.0
        %1260 = vmatpush1.msra.mxu0 %v775
        %1261 = vmatprep.subr.mxu0 0.0
        %1262 = vmatpush1.msra.mxu0 %v780
        %1263 = vmatprep.subr.mxu0 0.0
        %1264 = vmatpush1.msra.mxu0 %v785
        %1265 = vmatprep.subr.mxu0 0.0
        %1266 = vmatpush1.msra.mxu0 %v790
        %1267 = vmatprep.subr.mxu0 0.0
        %1268 = vmatpush1.msra.mxu0 %v795
        %1269 = vmatprep.subr.mxu0 0.0
        %1270 = vmatpush1.msra.mxu0 %v800
        %1271 = vmatprep.subr.mxu0 0.0
        %1272 = vmatpush1.msra.mxu0 %v805
        %1273 = vmatprep.subr.mxu0 0.0
        %1274 = vmatpush1.msra.mxu0 %v810
        %1275 = vmatprep.subr.mxu0 0.0
        %1276 = vmatpush1.msra.mxu0 %v815
        %1277 = vmatprep.subr.mxu0 0.0
        %1278 = vmatpush1.msra.mxu0 %v820
        %1279 = vmatprep.subr.mxu0 0.0
        %1280 = vmatpush1.msra.mxu0 %v825
        %1281 = vmatprep.subr.mxu0 0.0
        %1282 = vmatpush1.msra.mxu0 %v830
        %1283 = vmatprep.subr.mxu0 0.0
        %1284 = vmatpush1.msra.mxu0 0.0
        %1285 = vmatprep.subr.mxu0 0.0
        %1286 = vmatpush1.msra.mxu0 0.0
        %1287 = vmatprep.subr.mxu0 0.0
        %1288 = vmatpush1.msra.mxu0 0.0
        %1289 = vmatprep.subr.mxu0 0.0
        %1290 = vmatpush1.msra.mxu0 0.0
        %1291 = vmatprep.subr.mxu0 0.0
        %1292 = vmatpush1.msra.mxu0 0.0
        %1293 = vmatprep.subr.mxu0 0.0
        %1294 = vmatpush1.msra.mxu0 0.0
        %1295 = vmatprep.subr.mxu0 0.0
        %1296 = vmatpush1.msra.mxu0 0.0
        %1297 = vmatprep.subr.mxu0 0.0
        %1298 = vmatpush1.msra.mxu0 0.0
        %1299 = vmatprep.subr.mxu0 0.0
        %1300 = vmatpush1.msra.mxu0 0.0
        %1301 = vmatprep.subr.mxu0 0.0
        %1302 = vmatpush1.msra.mxu0 0.0
        %1303 = vmatprep.subr.mxu0 0.0
        %1304 = vmatpush1.msra.mxu0 0.0
        %1305 = vmatprep.subr.mxu0 0.0
        %1306 = vmatpush1.msra.mxu0 0.0
        %1307 = vmatprep.subr.mxu0 0.0
        %1308 = vmatpush1.msra.mxu0 0.0
        %1309 = vmatprep.subr.mxu0 0.0
        %1310 = vmatpush1.msra.mxu0 0.0
        %1311 = vmatprep.subr.mxu0 0.0
        %1312 = vmatpush1.msra.mxu0 0.0
        %1313 = vmatprep.subr.mxu0 0.0
        %1314 = vmatpush1.msra.mxu0 0.0
        %1315 = vmatprep.mubr.f32.mxu0 0.0
        %1316 = vmatmul.mubr.f32.gmra.mrb[0].mxu0 %v1235
        %v1317 = vpop.f32.mrb[0].mxu0
        %v1318 = vadd.f32 0.0, %v1317
        %v1319 = vpop.f32.mrb[0].mxu0
        %1320 = vmatprep.mubr.f32.mxu0 0.0
        %1321 = vmatmul.mubr.f32.gmra.mrb[0].mxu0 %v1236
        %v1322 = vpop.f32.mrb[0].mxu0
        %v1323 = vadd.f32 0.0, %v1322
        %v1324 = vpop.f32.mrb[0].mxu0
        %1325 = vmatprep.mubr.f32.mxu0 0.0
        %1326 = vmatmul.mubr.f32.gmra.mrb[0].mxu0 %v1237
        %v1327 = vpop.f32.mrb[0].mxu0
        %v1328 = vadd.f32 0.0, %v1327
        %v1329 = vpop.f32.mrb[0].mxu0
        %1330 = vmatprep.mubr.f32.mxu0 0.0
        %1331 = vmatmul.mubr.f32.gmra.mrb[0].mxu0 %v1238
        %v1332 = vpop.f32.mrb[0].mxu0
        %v1333 = vadd.f32 0.0, %v1332
        %v1334 = vpop.f32.mrb[0].mxu0
        %1335 = vmatprep.mubr.f32.mxu0 0.0
        %1336 = vmatmul.mubr.f32.gmra.mrb[0].mxu0 %v1239
        %v1337 = vpop.f32.mrb[0].mxu0
        %v1338 = vadd.f32 0.0, %v1337
        %v1339 = vpop.f32.mrb[0].mxu0
        %1340 = vmatprep.mubr.f32.mxu0 0.0
        %1341 = vmatmul.mubr.f32.gmra.mrb[0].mxu0 %v1240
        %v1342 = vpop.f32.mrb[0].mxu0
        %v1343 = vadd.f32 0.0, %v1342
        %v1344 = vpop.f32.mrb[0].mxu0
        %1345 = vmatprep.mubr.f32.mxu0 0.0
        %1346 = vmatmul.mubr.f32.gmra.mrb[0].mxu0 %v1241
        %v1347 = vpop.f32.mrb[0].mxu0
        %v1348 = vadd.f32 0.0, %v1347
        %v1349 = vpop.f32.mrb[0].mxu0
        %1350 = vmatprep.mubr.f32.mxu0 0.0
        %1351 = vmatmul.mubr.f32.gmra.mrb[0].mxu0 %v1242
        %v1352 = vpop.f32.mrb[0].mxu0
        %v1353 = vadd.f32 0.0, %v1352
        %v1354 = vpop.f32.mrb[0].mxu0
        %1355 = vmatprep.mubr.f32.mxu0 0.0
        %1356 = vmatmul.mubr.f32.gmra.mrb[0].mxu0 %v1243
        %v1357 = vpop.f32.mrb[0].mxu0
        %v1358 = vadd.f32 0.0, %v1357
        %v1359 = vpop.f32.mrb[0].mxu0
        %1360 = vmatprep.mubr.f32.mxu0 0.0
        %1361 = vmatmul.mubr.f32.gmra.mrb[0].mxu0 %v1244
        %v1362 = vpop.f32.mrb[0].mxu0
        %v1363 = vadd.f32 0.0, %v1362
        %v1364 = vpop.f32.mrb[0].mxu0
        %1365 = vmatprep.mubr.f32.mxu0 0.0
        %1366 = vmatmul.mubr.f32.gmra.mrb[0].mxu0 %v1245
        %v1367 = vpop.f32.mrb[0].mxu0
        %v1368 = vadd.f32 0.0, %v1367
        %v1369 = vpop.f32.mrb[0].mxu0
        %1370 = vmatprep.mubr.f32.mxu0 0.0
        %1371 = vmatmul.mubr.f32.gmra.mrb[0].mxu0 %v1246
        %v1372 = vpop.f32.mrb[0].mxu0
        %v1373 = vadd.f32 0.0, %v1372
        %v1374 = vpop.f32.mrb[0].mxu0
        %1375 = vmatprep.mubr.f32.mxu0 0.0
        %1376 = vmatmul.mubr.f32.gmra.mrb[0].mxu0 %v1247
        %v1377 = vpop.f32.mrb[0].mxu0
        %v1378 = vadd.f32 0.0, %v1377
        %v1379 = vpop.f32.mrb[0].mxu0
        %1380 = vmatprep.mubr.f32.mxu0 0.0
        %1381 = vmatmul.mubr.f32.gmra.mrb[0].mxu0 %v1248
        %v1382 = vpop.f32.mrb[0].mxu0
        %v1383 = vadd.f32 0.0, %v1382
        %v1384 = vpop.f32.mrb[0].mxu0
        %1385 = vmatprep.mubr.f32.mxu0 0.0
        %1386 = vmatmul.mubr.f32.gmra.mrb[0].mxu0 %v1249
        %v1387 = vpop.f32.mrb[0].mxu0
        %v1388 = vadd.f32 0.0, %v1387
        %v1389 = vpop.f32.mrb[0].mxu0
        %1390 = vmatprep.mubr.f32.mxu0 0.0
        %1391 = vmatmul.mubr.f32.gmra.mrb[0].mxu0 %v1250
        %v1392 = vpop.f32.mrb[0].mxu0
        %v1393 = vadd.f32 0.0, %v1392
        %v1394 = vpop.f32.mrb[0].mxu0
        %1395 = vdwg.mxu0
        %1396 = vrot.lane.b32.xlu0 %v833, 96
        %v1397 = vpop.permute.xlu0 %1396
        %1398 = vrot.lane.b32.xlu0 %v834, 96
        %v1399 = vpop.permute.xlu0 %1398
        %1400 = vrot.lane.b32.xlu0 %v835, 96
        %v1401 = vpop.permute.xlu0 %1400
        %1402 = vrot.lane.b32.xlu0 %v836, 96
        %v1403 = vpop.permute.xlu0 %1402
        %1404 = vrot.lane.b32.xlu0 %v837, 96
        %v1405 = vpop.permute.xlu0 %1404
        %1406 = vrot.lane.b32.xlu0 %v838, 96
        %v1407 = vpop.permute.xlu0 %1406
        %1408 = vrot.lane.b32.xlu0 %v839, 96
        %v1409 = vpop.permute.xlu0 %1408
        %1410 = vrot.lane.b32.xlu0 %v840, 96
        %v1411 = vpop.permute.xlu0 %1410
        %1412 = vrot.lane.b32.xlu0 %v841, 96
        %v1413 = vpop.permute.xlu0 %1412
        %1414 = vrot.lane.b32.xlu0 %v842, 96
        %v1415 = vpop.permute.xlu0 %1414
        %1416 = vrot.lane.b32.xlu0 %v843, 96
        %v1417 = vpop.permute.xlu0 %1416
        %1418 = vrot.lane.b32.xlu0 %v844, 96
        %v1419 = vpop.permute.xlu0 %1418
        %1420 = vrot.lane.b32.xlu0 %v845, 96
        %v1421 = vpop.permute.xlu0 %1420
        %1422 = vrot.lane.b32.xlu0 %v846, 96
        %v1423 = vpop.permute.xlu0 %1422
        %1424 = vrot.lane.b32.xlu0 %v847, 96
        %v1425 = vpop.permute.xlu0 %1424
        %1426 = vrot.lane.b32.xlu0 %v848, 96
        %v1427 = vpop.permute.xlu0 %1426
        %1428 = vrot.lane.b32.xlu0 %v596, 96
        %v1429 = vpop.permute.xlu0 %1428
        %1430 = vrot.lane.b32.xlu0 %v602, 96
        %v1431 = vpop.permute.xlu0 %1430
        %1432 = vrot.lane.b32.xlu0 %v608, 96
        %v1433 = vpop.permute.xlu0 %1432
        %1434 = vrot.lane.b32.xlu0 %v614, 96
        %v1435 = vpop.permute.xlu0 %1434
        %1436 = vrot.lane.b32.xlu0 %v620, 96
        %v1437 = vpop.permute.xlu0 %1436
        %1438 = vrot.lane.b32.xlu0 %v626, 96
        %v1439 = vpop.permute.xlu0 %1438
        %1440 = vrot.lane.b32.xlu0 %v632, 96
        %v1441 = vpop.permute.xlu0 %1440
        %1442 = vrot.lane.b32.xlu0 %v638, 96
        %v1443 = vpop.permute.xlu0 %1442
        %1444 = vrot.lane.b32.xlu0 %v644, 96
        %v1445 = vpop.permute.xlu0 %1444
        %1446 = vrot.lane.b32.xlu0 %v650, 96
        %v1447 = vpop.permute.xlu0 %1446
        %1448 = vrot.lane.b32.xlu0 %v656, 96
        %v1449 = vpop.permute.xlu0 %1448
        %1450 = vrot.lane.b32.xlu0 %v662, 96
        %v1451 = vpop.permute.xlu0 %1450
        %1452 = vrot.lane.b32.xlu0 %v668, 96
        %v1453 = vpop.permute.xlu0 %1452
        %1454 = vrot.lane.b32.xlu0 %v674, 96
        %v1455 = vpop.permute.xlu0 %1454
        %1456 = vrot.lane.b32.xlu0 %v680, 96
        %v1457 = vpop.permute.xlu0 %1456
        %1458 = vrot.lane.b32.xlu0 %v686, 96
        %v1459 = vpop.permute.xlu0 %1458
        %v1460 = vsel %vm865, %v1397, 0
        %v1462 = vsel %vm865, %v1399, 0
        %v1464 = vsel %vm865, %v1401, 0
        %v1466 = vsel %vm865, %v1403, 0
        %v1468 = vsel %vm865, %v1405, 0
        %v1470 = vsel %vm865, %v1407, 0
        %v1472 = vsel %vm865, %v1409, 0
        %v1474 = vsel %vm865, %v1411, 0
        %v1476 = vsel %vm865, %v1413, 0
        %v1478 = vsel %vm865, %v1415, 0
        %v1480 = vsel %vm865, %v1417, 0
        %v1482 = vsel %vm865, %v1419, 0
        %v1484 = vsel %vm865, %v1421, 0
        %v1486 = vsel %vm865, %v1423, 0
        %v1488 = vsel %vm865, %v1425, 0
        %v1490 = vsel %vm865, %v1427, 0
        %v1492 = vsel %vm865, %v1429, 0
        %v1494 = vsel %vm865, %v1431, 0
        %v1496 = vsel %vm865, %v1433, 0
        %v1498 = vsel %vm865, %v1435, 0
        %v1500 = vsel %vm865, %v1437, 0
        %v1502 = vsel %vm865, %v1439, 0
        %v1504 = vsel %vm865, %v1441, 0
        %v1506 = vsel %vm865, %v1443, 0
        %v1508 = vsel %vm865, %v1445, 0
        %v1510 = vsel %vm865, %v1447, 0
        %v1512 = vsel %vm865, %v1449, 0
        %v1514 = vsel %vm865, %v1451, 0
        %v1516 = vsel %vm865, %v1453, 0
        %v1518 = vsel %vm865, %v1455, 0
        %v1520 = vsel %vm865, %v1457, 0
        %v1522 = vsel %vm865, %v1459, 0
        %1524 = vmatprep.subr.mxu0 0.0
        %1525 = vmatpush1.xpose.msra.mxu0 %v1492
        %1526 = vmatprep.subr.mxu0 0.0
        %1527 = vmatpush1.xpose.msra.mxu0 %v1494
        %1528 = vmatprep.subr.mxu0 0.0
        %1529 = vmatpush1.xpose.msra.mxu0 %v1496
        %1530 = vmatprep.subr.mxu0 0.0
        %1531 = vmatpush1.xpose.msra.mxu0 %v1498
        %1532 = vmatprep.subr.mxu0 0.0
        %1533 = vmatpush1.xpose.msra.mxu0 %v1500
        %1534 = vmatprep.subr.mxu0 0.0
        %1535 = vmatpush1.xpose.msra.mxu0 %v1502
        %1536 = vmatprep.subr.mxu0 0.0
        %1537 = vmatpush1.xpose.msra.mxu0 %v1504
        %1538 = vmatprep.subr.mxu0 0.0
        %1539 = vmatpush1.xpose.msra.mxu0 %v1506
        %1540 = vmatprep.subr.mxu0 0.0
        %1541 = vmatpush1.xpose.msra.mxu0 %v1508
        %1542 = vmatprep.subr.mxu0 0.0
        %1543 = vmatpush1.xpose.msra.mxu0 %v1510
        %1544 = vmatprep.subr.mxu0 0.0
        %1545 = vmatpush1.xpose.msra.mxu0 %v1512
        %1546 = vmatprep.subr.mxu0 0.0
        %1547 = vmatpush1.xpose.msra.mxu0 %v1514
        %1548 = vmatprep.subr.mxu0 0.0
        %1549 = vmatpush1.xpose.msra.mxu0 %v1516
        %1550 = vmatprep.subr.mxu0 0.0
        %1551 = vmatpush1.xpose.msra.mxu0 %v1518
        %1552 = vmatprep.subr.mxu0 0.0
        %1553 = vmatpush1.xpose.msra.mxu0 %v1520
        %1554 = vmatprep.subr.mxu0 0.0
        %1555 = vmatpush1.xpose.msra.mxu0 %v1522
        %1556 = vmatprep.subr.mxu0 0.0
        %1557 = vmatpush1.xpose.msra.mxu0 0.0
        %1558 = vmatprep.subr.mxu0 0.0
        %1559 = vmatpush1.xpose.msra.mxu0 0.0
        %1560 = vmatprep.subr.mxu0 0.0
        %1561 = vmatpush1.xpose.msra.mxu0 0.0
        %1562 = vmatprep.subr.mxu0 0.0
        %1563 = vmatpush1.xpose.msra.mxu0 0.0
        %1564 = vmatprep.subr.mxu0 0.0
        %1565 = vmatpush1.xpose.msra.mxu0 0.0
        %1566 = vmatprep.subr.mxu0 0.0
        %1567 = vmatpush1.xpose.msra.mxu0 0.0
        %1568 = vmatprep.subr.mxu0 0.0
        %1569 = vmatpush1.xpose.msra.mxu0 0.0
        %1570 = vmatprep.subr.mxu0 0.0
        %1571 = vmatpush1.xpose.msra.mxu0 0.0
        %1572 = vmatprep.subr.mxu0 0.0
        %1573 = vmatpush1.xpose.msra.mxu0 0.0
        %1574 = vmatprep.subr.mxu0 0.0
        %1575 = vmatpush1.xpose.msra.mxu0 0.0
        %1576 = vmatprep.subr.mxu0 0.0
        %1577 = vmatpush1.xpose.msra.mxu0 0.0
        %1578 = vmatprep.subr.mxu0 0.0
        %1579 = vmatpush1.xpose.msra.mxu0 0.0
        %1580 = vmatprep.subr.mxu0 0.0
        %1581 = vmatpush1.xpose.msra.mxu0 0.0
        %1582 = vmatprep.subr.mxu0 0.0
        %1583 = vmatpush1.xpose.msra.mxu0 0.0
        %1584 = vmatprep.subr.mxu0 0.0
        %1585 = vmatpush1.xpose.msra.mxu0 0.0
        %1586 = vmatprep.subr.mxu0 0.0
        %1587 = vmatpush1.xpose.msra.mxu0 0.0
        %1588 = vmatprep.mubr.f32.mxu0 0.0
        %1589 = vmatmul.mubr.f32.gmra.mrb[0].mxu0 %v1460
        %v1590 = vpop.f32.mrb[0].mxu0
        %v1591 = vadd.f32 0.0, %v1590
        %v1592 = vpop.f32.mrb[0].mxu0
        %1593 = vmatprep.mubr.f32.mxu0 0.0
        %1594 = vmatmul.mubr.f32.gmra.mrb[0].mxu0 %v1462
        %v1595 = vpop.f32.mrb[0].mxu0
        %v1596 = vadd.f32 0.0, %v1595
        %v1597 = vpop.f32.mrb[0].mxu0
        %1598 = vmatprep.mubr.f32.mxu0 0.0
        %1599 = vmatmul.mubr.f32.gmra.mrb[0].mxu0 %v1464
        %v1600 = vpop.f32.mrb[0].mxu0
        %v1601 = vadd.f32 0.0, %v1600
        %v1602 = vpop.f32.mrb[0].mxu0
        %1603 = vmatprep.mubr.f32.mxu0 0.0
        %1604 = vmatmul.mubr.f32.gmra.mrb[0].mxu0 %v1466
        %v1605 = vpop.f32.mrb[0].mxu0
        %v1606 = vadd.f32 0.0, %v1605
        %v1607 = vpop.f32.mrb[0].mxu0
        %1608 = vmatprep.mubr.f32.mxu0 0.0
        %1609 = vmatmul.mubr.f32.gmra.mrb[0].mxu0 %v1468
        %v1610 = vpop.f32.mrb[0].mxu0
        %v1611 = vadd.f32 0.0, %v1610
        %v1612 = vpop.f32.mrb[0].mxu0
        %1613 = vmatprep.mubr.f32.mxu0 0.0
        %1614 = vmatmul.mubr.f32.gmra.mrb[0].mxu0 %v1470
        %v1615 = vpop.f32.mrb[0].mxu0
        %v1616 = vadd.f32 0.0, %v1615
        %v1617 = vpop.f32.mrb[0].mxu0
        %1618 = vmatprep.mubr.f32.mxu0 0.0
        %1619 = vmatmul.mubr.f32.gmra.mrb[0].mxu0 %v1472
        %v1620 = vpop.f32.mrb[0].mxu0
        %v1621 = vadd.f32 0.0, %v1620
        %v1622 = vpop.f32.mrb[0].mxu0
        %1623 = vmatprep.mubr.f32.mxu0 0.0
        %1624 = vmatmul.mubr.f32.gmra.mrb[0].mxu0 %v1474
        %v1625 = vpop.f32.mrb[0].mxu0
        %v1626 = vadd.f32 0.0, %v1625
        %v1627 = vpop.f32.mrb[0].mxu0
        %1628 = vmatprep.mubr.f32.mxu0 0.0
        %1629 = vmatmul.mubr.f32.gmra.mrb[0].mxu0 %v1476
        %v1630 = vpop.f32.mrb[0].mxu0
        %v1631 = vadd.f32 0.0, %v1630
        %v1632 = vpop.f32.mrb[0].mxu0
        %1633 = vmatprep.mubr.f32.mxu0 0.0
        %1634 = vmatmul.mubr.f32.gmra.mrb[0].mxu0 %v1478
        %v1635 = vpop.f32.mrb[0].mxu0
        %v1636 = vadd.f32 0.0, %v1635
        %v1637 = vpop.f32.mrb[0].mxu0
        %1638 = vmatprep.mubr.f32.mxu0 0.0
        %1639 = vmatmul.mubr.f32.gmra.mrb[0].mxu0 %v1480
        %v1640 = vpop.f32.mrb[0].mxu0
        %v1641 = vadd.f32 0.0, %v1640
        %v1642 = vpop.f32.mrb[0].mxu0
        %1643 = vmatprep.mubr.f32.mxu0 0.0
        %1644 = vmatmul.mubr.f32.gmra.mrb[0].mxu0 %v1482
        %v1645 = vpop.f32.mrb[0].mxu0
        %v1646 = vadd.f32 0.0, %v1645
        %v1647 = vpop.f32.mrb[0].mxu0
        %1648 = vmatprep.mubr.f32.mxu0 0.0
        %1649 = vmatmul.mubr.f32.gmra.mrb[0].mxu0 %v1484
        %v1650 = vpop.f32.mrb[0].mxu0
        %v1651 = vadd.f32 0.0, %v1650
        %v1652 = vpop.f32.mrb[0].mxu0
        %1653 = vmatprep.mubr.f32.mxu0 0.0
        %1654 = vmatmul.mubr.f32.gmra.mrb[0].mxu0 %v1486
        %v1655 = vpop.f32.mrb[0].mxu0
        %v1656 = vadd.f32 0.0, %v1655
        %v1657 = vpop.f32.mrb[0].mxu0
        %1658 = vmatprep.mubr.f32.mxu0 0.0
        %1659 = vmatmul.mubr.f32.gmra.mrb[0].mxu0 %v1488
        %v1660 = vpop.f32.mrb[0].mxu0
        %v1661 = vadd.f32 0.0, %v1660
        %v1662 = vpop.f32.mrb[0].mxu0
        %1663 = vmatprep.mubr.f32.mxu0 0.0
        %1664 = vmatmul.mubr.f32.gmra.mrb[0].mxu0 %v1490
        %v1665 = vpop.f32.mrb[0].mxu0
        %v1666 = vadd.f32 0.0, %v1665
        %v1667 = vpop.f32.mrb[0].mxu0
        %1668 = vdwg.mxu0
        %1669 = vmax.xlane.f32.xlu0 %v1591
        %v1670 = vpop.xlane.xlu0 %1669
        %1671 = vmax.xlane.f32.xlu0 %v1596
        %v1672 = vpop.xlane.xlu0 %1671
        %1673 = vmax.xlane.f32.xlu0 %v1601
        %v1674 = vpop.xlane.xlu0 %1673
        %1675 = vmax.xlane.f32.xlu0 %v1606
        %v1676 = vpop.xlane.xlu0 %1675
        %1677 = vmax.xlane.f32.xlu0 %v1611
        %v1678 = vpop.xlane.xlu0 %1677
        %1679 = vmax.xlane.f32.xlu0 %v1616
        %v1680 = vpop.xlane.xlu0 %1679
        %1681 = vmax.xlane.f32.xlu0 %v1621
        %v1682 = vpop.xlane.xlu0 %1681
        %1683 = vmax.xlane.f32.xlu0 %v1626
        %v1684 = vpop.xlane.xlu0 %1683
        %1685 = vmax.xlane.f32.xlu0 %v1631
        %v1686 = vpop.xlane.xlu0 %1685
        %1687 = vmax.xlane.f32.xlu0 %v1636
        %v1688 = vpop.xlane.xlu0 %1687
        %1689 = vmax.xlane.f32.xlu0 %v1641
        %v1690 = vpop.xlane.xlu0 %1689
        %1691 = vmax.xlane.f32.xlu0 %v1646
        %v1692 = vpop.xlane.xlu0 %1691
        %1693 = vmax.xlane.f32.xlu0 %v1651
        %v1694 = vpop.xlane.xlu0 %1693
        %1695 = vmax.xlane.f32.xlu0 %v1656
        %v1696 = vpop.xlane.xlu0 %1695
        %1697 = vmax.xlane.f32.xlu0 %v1661
        %v1698 = vpop.xlane.xlu0 %1697
        %1699 = vmax.xlane.f32.xlu0 %v1666
        %v1700 = vpop.xlane.xlu0 %1699
        %v1701 = vsub.f32 %v1591, %v1670
        %v1702 = vsub.f32 %v1596, %v1672
        %v1703 = vsub.f32 %v1601, %v1674
        %v1704 = vsub.f32 %v1606, %v1676
        %v1705 = vsub.f32 %v1611, %v1678
        %v1706 = vsub.f32 %v1616, %v1680
        %v1707 = vsub.f32 %v1621, %v1682
        %v1708 = vsub.f32 %v1626, %v1684
        %v1709 = vsub.f32 %v1631, %v1686
        %v1710 = vsub.f32 %v1636, %v1688
        %v1711 = vsub.f32 %v1641, %v1690
        %v1712 = vsub.f32 %v1646, %v1692
        %v1713 = vsub.f32 %v1651, %v1694
        %v1714 = vsub.f32 %v1656, %v1696
        %v1715 = vsub.f32 %v1661, %v1698
        %v1716 = vsub.f32 %v1666, %v1700
        %v1717 = vmul.f32 %v1701, 1.442695
        %v1718 = vpow.pop %v1717
        %v1719 = vmul.f32 %v1702, 1.442695
        %v1720 = vpow.pop %v1719
        %v1721 = vmul.f32 %v1703, 1.442695
        %v1722 = vpow.pop %v1721
        %v1723 = vmul.f32 %v1704, 1.442695
        %v1724 = vpow.pop %v1723
        %v1725 = vmul.f32 %v1705, 1.442695
        %v1726 = vpow.pop %v1725
        %v1727 = vmul.f32 %v1706, 1.442695
        %v1728 = vpow.pop %v1727
        %v1729 = vmul.f32 %v1707, 1.442695
        %v1730 = vpow.pop %v1729
        %v1731 = vmul.f32 %v1708, 1.442695
        %v1732 = vpow.pop %v1731
        %v1733 = vmul.f32 %v1709, 1.442695
        %v1734 = vpow.pop %v1733
        %v1735 = vmul.f32 %v1710, 1.442695
        %v1736 = vpow.pop %v1735
        %v1737 = vmul.f32 %v1711, 1.442695
        %v1738 = vpow.pop %v1737
        %v1739 = vmul.f32 %v1712, 1.442695
        %v1740 = vpow.pop %v1739
        %v1741 = vmul.f32 %v1713, 1.442695
        %v1742 = vpow.pop %v1741
        %v1743 = vmul.f32 %v1714, 1.442695
        %v1744 = vpow.pop %v1743
        %v1745 = vmul.f32 %v1715, 1.442695
        %v1746 = vpow.pop %v1745
        %v1747 = vmul.f32 %v1716, 1.442695
        %v1748 = vpow.pop %v1747
        %1749 = vadd.xlane.f32.xlu0 %v1718
        %v1750 = vpop.xlane.xlu0 %1749
        %1751 = vadd.xlane.f32.xlu0 %v1720
        %v1752 = vpop.xlane.xlu0 %1751
        %1753 = vadd.xlane.f32.xlu0 %v1722
        %v1754 = vpop.xlane.xlu0 %1753
        %1755 = vadd.xlane.f32.xlu0 %v1724
        %v1756 = vpop.xlane.xlu0 %1755
        %1757 = vadd.xlane.f32.xlu0 %v1726
        %v1758 = vpop.xlane.xlu0 %1757
        %1759 = vadd.xlane.f32.xlu0 %v1728
        %v1760 = vpop.xlane.xlu0 %1759
        %1761 = vadd.xlane.f32.xlu0 %v1730
        %v1762 = vpop.xlane.xlu0 %1761
        %1763 = vadd.xlane.f32.xlu0 %v1732
        %v1764 = vpop.xlane.xlu0 %1763
        %1765 = vadd.xlane.f32.xlu0 %v1734
        %v1766 = vpop.xlane.xlu0 %1765
        %1767 = vadd.xlane.f32.xlu0 %v1736
        %v1768 = vpop.xlane.xlu0 %1767
        %1769 = vadd.xlane.f32.xlu0 %v1738
        %v1770 = vpop.xlane.xlu0 %1769
        %1771 = vadd.xlane.f32.xlu0 %v1740
        %v1772 = vpop.xlane.xlu0 %1771
        %1773 = vadd.xlane.f32.xlu0 %v1742
        %v1774 = vpop.xlane.xlu0 %1773
        %1775 = vadd.xlane.f32.xlu0 %v1744
        %v1776 = vpop.xlane.xlu0 %1775
        %1777 = vadd.xlane.f32.xlu0 %v1746
        %v1778 = vpop.xlane.xlu0 %1777
        %1779 = vadd.xlane.f32.xlu0 %v1748
        %v1780 = vpop.xlane.xlu0 %1779
        %v1781 = vrcp.pop %v1750
        %v1782 = vrcp.pop %v1752
        %v1783 = vrcp.pop %v1754
        %v1784 = vrcp.pop %v1756
        %v1785 = vrcp.pop %v1758
        %v1786 = vrcp.pop %v1760
        %v1787 = vrcp.pop %v1762
        %v1788 = vrcp.pop %v1764
        %v1789 = vrcp.pop %v1766
        %v1790 = vrcp.pop %v1768
        %v1791 = vrcp.pop %v1770
        %v1792 = vrcp.pop %v1772
        %v1793 = vrcp.pop %v1774
        %v1794 = vrcp.pop %v1776
        %v1795 = vrcp.pop %v1778
        %v1796 = vrcp.pop %v1780
        %v1797 = vmul.f32 %v1718, %v1781
        %v1798 = vmul.f32 %v1720, %v1782
        %v1799 = vmul.f32 %v1722, %v1783
        %v1800 = vmul.f32 %v1724, %v1784
        %v1801 = vmul.f32 %v1726, %v1785
        %v1802 = vmul.f32 %v1728, %v1786
        %v1803 = vmul.f32 %v1730, %v1787
        %v1804 = vmul.f32 %v1732, %v1788
        %v1805 = vmul.f32 %v1734, %v1789
        %v1806 = vmul.f32 %v1736, %v1790
        %v1807 = vmul.f32 %v1738, %v1791
        %v1808 = vmul.f32 %v1740, %v1792
        %v1809 = vmul.f32 %v1742, %v1793
        %v1810 = vmul.f32 %v1744, %v1794
        %v1811 = vmul.f32 %v1746, %v1795
        %v1812 = vmul.f32 %v1748, %v1796
        %1829 = vrot.lane.b32.xlu0 %v755, 96
        %v1830 = vpop.permute.xlu0 %1829
        %1831 = vrot.lane.b32.xlu0 %v760, 96
        %v1832 = vpop.permute.xlu0 %1831
        %1833 = vrot.lane.b32.xlu0 %v765, 96
        %v1834 = vpop.permute.xlu0 %1833
        %1835 = vrot.lane.b32.xlu0 %v770, 96
        %v1836 = vpop.permute.xlu0 %1835
        %1837 = vrot.lane.b32.xlu0 %v775, 96
        %v1838 = vpop.permute.xlu0 %1837
        %1839 = vrot.lane.b32.xlu0 %v780, 96
        %v1840 = vpop.permute.xlu0 %1839
        %1841 = vrot.lane.b32.xlu0 %v785, 96
        %v1842 = vpop.permute.xlu0 %1841
        %1843 = vrot.lane.b32.xlu0 %v790, 96
        %v1844 = vpop.permute.xlu0 %1843
        %1845 = vrot.lane.b32.xlu0 %v795, 96
        %v1846 = vpop.permute.xlu0 %1845
        %1847 = vrot.lane.b32.xlu0 %v800, 96
        %v1848 = vpop.permute.xlu0 %1847
        %1849 = vrot.lane.b32.xlu0 %v805, 96
        %v1850 = vpop.permute.xlu0 %1849
        %1851 = vrot.lane.b32.xlu0 %v810, 96
        %v1852 = vpop.permute.xlu0 %1851
        %1853 = vrot.lane.b32.xlu0 %v815, 96
        %v1854 = vpop.permute.xlu0 %1853
        %1855 = vrot.lane.b32.xlu0 %v820, 96
        %v1856 = vpop.permute.xlu0 %1855
        %1857 = vrot.lane.b32.xlu0 %v825, 96
        %v1858 = vpop.permute.xlu0 %1857
        %1859 = vrot.lane.b32.xlu0 %v830, 96
        %v1860 = vpop.permute.xlu0 %1859
        %1877 = vmatprep.subr.mxu0 0.0
        %1878 = vmatpush1.msra.mxu0 %v1830
        %1879 = vmatprep.subr.mxu0 0.0
        %1880 = vmatpush1.msra.mxu0 %v1832
        %1881 = vmatprep.subr.mxu0 0.0
        %1882 = vmatpush1.msra.mxu0 %v1834
        %1883 = vmatprep.subr.mxu0 0.0
        %1884 = vmatpush1.msra.mxu0 %v1836
        %1885 = vmatprep.subr.mxu0 0.0
        %1886 = vmatpush1.msra.mxu0 %v1838
        %1887 = vmatprep.subr.mxu0 0.0
        %1888 = vmatpush1.msra.mxu0 %v1840
        %1889 = vmatprep.subr.mxu0 0.0
        %1890 = vmatpush1.msra.mxu0 %v1842
        %1891 = vmatprep.subr.mxu0 0.0
        %1892 = vmatpush1.msra.mxu0 %v1844
        %1893 = vmatprep.subr.mxu0 0.0
        %1894 = vmatpush1.msra.mxu0 %v1846
        %1895 = vmatprep.subr.mxu0 0.0
        %1896 = vmatpush1.msra.mxu0 %v1848
        %1897 = vmatprep.subr.mxu0 0.0
        %1898 = vmatpush1.msra.mxu0 %v1850
        %1899 = vmatprep.subr.mxu0 0.0
        %1900 = vmatpush1.msra.mxu0 %v1852
        %1901 = vmatprep.subr.mxu0 0.0
        %1902 = vmatpush1.msra.mxu0 %v1854
        %1903 = vmatprep.subr.mxu0 0.0
        %1904 = vmatpush1.msra.mxu0 %v1856
        %1905 = vmatprep.subr.mxu0 0.0
        %1906 = vmatpush1.msra.mxu0 %v1858
        %1907 = vmatprep.subr.mxu0 0.0
        %1908 = vmatpush1.msra.mxu0 %v1860
        %1909 = vmatprep.subr.mxu0 0.0
        %1910 = vmatpush1.msra.mxu0 0.0
        %1911 = vmatprep.subr.mxu0 0.0
        %1912 = vmatpush1.msra.mxu0 0.0
        %1913 = vmatprep.subr.mxu0 0.0
        %1914 = vmatpush1.msra.mxu0 0.0
        %1915 = vmatprep.subr.mxu0 0.0
        %1916 = vmatpush1.msra.mxu0 0.0
        %1917 = vmatprep.subr.mxu0 0.0
        %1918 = vmatpush1.msra.mxu0 0.0
        %1919 = vmatprep.subr.mxu0 0.0
        %1920 = vmatpush1.msra.mxu0 0.0
        %1921 = vmatprep.subr.mxu0 0.0
        %1922 = vmatpush1.msra.mxu0 0.0
        %1923 = vmatprep.subr.mxu0 0.0
        %1924 = vmatpush1.msra.mxu0 0.0
        %1925 = vmatprep.subr.mxu0 0.0
        %1926 = vmatpush1.msra.mxu0 0.0
        %1927 = vmatprep.subr.mxu0 0.0
        %1928 = vmatpush1.msra.mxu0 0.0
        %1929 = vmatprep.subr.mxu0 0.0
        %1930 = vmatpush1.msra.mxu0 0.0
        %1931 = vmatprep.subr.mxu0 0.0
        %1932 = vmatpush1.msra.mxu0 0.0
        %1933 = vmatprep.subr.mxu0 0.0
        %1934 = vmatpush1.msra.mxu0 0.0
        %1935 = vmatprep.subr.mxu0 0.0
        %1936 = vmatpush1.msra.mxu0 0.0
        %1937 = vmatprep.subr.mxu0 0.0
        %1938 = vmatpush1.msra.mxu0 0.0
        %1939 = vmatprep.subr.mxu0 0.0
        %1940 = vmatpush1.msra.mxu0 0.0
        %1941 = vmatprep.mubr.f32.mxu0 0.0
        %1942 = vmatmul.mubr.f32.gmra.mrb[0].mxu0 %v1797
        %v1943 = vpop.f32.mrb[0].mxu0
        %v1944 = vadd.f32 0.0, %v1943
        %v1945 = vpop.f32.mrb[0].mxu0
        %1946 = vmatprep.mubr.f32.mxu0 0.0
        %1947 = vmatmul.mubr.f32.gmra.mrb[0].mxu0 %v1798
        %v1948 = vpop.f32.mrb[0].mxu0
        %v1949 = vadd.f32 0.0, %v1948
        %v1950 = vpop.f32.mrb[0].mxu0
        %1951 = vmatprep.mubr.f32.mxu0 0.0
        %1952 = vmatmul.mubr.f32.gmra.mrb[0].mxu0 %v1799
        %v1953 = vpop.f32.mrb[0].mxu0
        %v1954 = vadd.f32 0.0, %v1953
        %v1955 = vpop.f32.mrb[0].mxu0
        %1956 = vmatprep.mubr.f32.mxu0 0.0
        %1957 = vmatmul.mubr.f32.gmra.mrb[0].mxu0 %v1800
        %v1958 = vpop.f32.mrb[0].mxu0
        %v1959 = vadd.f32 0.0, %v1958
        %v1960 = vpop.f32.mrb[0].mxu0
        %1961 = vmatprep.mubr.f32.mxu0 0.0
        %1962 = vmatmul.mubr.f32.gmra.mrb[0].mxu0 %v1801
        %v1963 = vpop.f32.mrb[0].mxu0
        %v1964 = vadd.f32 0.0, %v1963
        %v1965 = vpop.f32.mrb[0].mxu0
        %1966 = vmatprep.mubr.f32.mxu0 0.0
        %1967 = vmatmul.mubr.f32.gmra.mrb[0].mxu0 %v1802
        %v1968 = vpop.f32.mrb[0].mxu0
        %v1969 = vadd.f32 0.0, %v1968
        %v1970 = vpop.f32.mrb[0].mxu0
        %1971 = vmatprep.mubr.f32.mxu0 0.0
        %1972 = vmatmul.mubr.f32.gmra.mrb[0].mxu0 %v1803
        %v1973 = vpop.f32.mrb[0].mxu0
        %v1974 = vadd.f32 0.0, %v1973
        %v1975 = vpop.f32.mrb[0].mxu0
        %1976 = vmatprep.mubr.f32.mxu0 0.0
        %1977 = vmatmul.mubr.f32.gmra.mrb[0].mxu0 %v1804
        %v1978 = vpop.f32.mrb[0].mxu0
        %v1979 = vadd.f32 0.0, %v1978
        %v1980 = vpop.f32.mrb[0].mxu0
        %1981 = vmatprep.mubr.f32.mxu0 0.0
        %1982 = vmatmul.mubr.f32.gmra.mrb[0].mxu0 %v1805
        %v1983 = vpop.f32.mrb[0].mxu0
        %v1984 = vadd.f32 0.0, %v1983
        %v1985 = vpop.f32.mrb[0].mxu0
        %1986 = vmatprep.mubr.f32.mxu0 0.0
        %1987 = vmatmul.mubr.f32.gmra.mrb[0].mxu0 %v1806
        %v1988 = vpop.f32.mrb[0].mxu0
        %v1989 = vadd.f32 0.0, %v1988
        %v1990 = vpop.f32.mrb[0].mxu0
        %1991 = vmatprep.mubr.f32.mxu0 0.0
        %1992 = vmatmul.mubr.f32.gmra.mrb[0].mxu0 %v1807
        %v1993 = vpop.f32.mrb[0].mxu0
        %v1994 = vadd.f32 0.0, %v1993
        %v1995 = vpop.f32.mrb[0].mxu0
        %1996 = vmatprep.mubr.f32.mxu0 0.0
        %1997 = vmatmul.mubr.f32.gmra.mrb[0].mxu0 %v1808
        %v1998 = vpop.f32.mrb[0].mxu0
        %v1999 = vadd.f32 0.0, %v1998
        %v2000 = vpop.f32.mrb[0].mxu0
        %2001 = vmatprep.mubr.f32.mxu0 0.0
        %2002 = vmatmul.mubr.f32.gmra.mrb[0].mxu0 %v1809
        %v2003 = vpop.f32.mrb[0].mxu0
        %v2004 = vadd.f32 0.0, %v2003
        %v2005 = vpop.f32.mrb[0].mxu0
        %2006 = vmatprep.mubr.f32.mxu0 0.0
        %2007 = vmatmul.mubr.f32.gmra.mrb[0].mxu0 %v1810
        %v2008 = vpop.f32.mrb[0].mxu0
        %v2009 = vadd.f32 0.0, %v2008
        %v2010 = vpop.f32.mrb[0].mxu0
        %2011 = vmatprep.mubr.f32.mxu0 0.0
        %2012 = vmatmul.mubr.f32.gmra.mrb[0].mxu0 %v1811
        %v2013 = vpop.f32.mrb[0].mxu0
        %v2014 = vadd.f32 0.0, %v2013
        %v2015 = vpop.f32.mrb[0].mxu0
        %2016 = vmatprep.mubr.f32.mxu0 0.0
        %2017 = vmatmul.mubr.f32.gmra.mrb[0].mxu0 %v1812
        %v2018 = vpop.f32.mrb[0].mxu0
        %v2019 = vadd.f32 0.0, %v2018
        %v2020 = vpop.f32.mrb[0].mxu0
        %2021 = vdwg.mxu0
        %v2023 = vsel %vm865, %v1944, 0
        %v2026 = vsel %vm865, %v1949, 0
        %v2029 = vsel %vm865, %v1954, 0
        %v2032 = vsel %vm865, %v1959, 0
        %v2035 = vsel %vm865, %v1964, 0
        %v2038 = vsel %vm865, %v1969, 0
        %v2041 = vsel %vm865, %v1974, 0
        %v2044 = vsel %vm865, %v1979, 0
        %v2047 = vsel %vm865, %v1984, 0
        %v2050 = vsel %vm865, %v1989, 0
        %v2053 = vsel %vm865, %v1994, 0
        %v2056 = vsel %vm865, %v1999, 0
        %v2059 = vsel %vm865, %v2004, 0
        %v2062 = vsel %vm865, %v2009, 0
        %v2065 = vsel %vm865, %v2014, 0
        %v2068 = vsel %vm865, %v2019, 0
        %2070 = vmatprep.subr.mxu0 0.0
        %2071 = vmatpush1.msra.mxu0 %v853
        %2072 = vmatprep.subr.mxu0 0.0
        %2073 = vmatpush1.msra.mxu0 %v854
        %2074 = vmatprep.subr.mxu0 0.0
        %2075 = vmatpush1.msra.mxu0 %v855
        %2076 = vmatprep.subr.mxu0 0.0
        %2077 = vmatpush1.msra.mxu0 %v856
        %2078 = vmatprep.subr.mxu0 0.0
        %2079 = vmatpush1.msra.mxu0 0.0
        %2080 = vmatprep.subr.mxu0 0.0
        %2081 = vmatpush1.msra.mxu0 0.0
        %2082 = vmatprep.subr.mxu0 0.0
        %2083 = vmatpush1.msra.mxu0 0.0
        %2084 = vmatprep.subr.mxu0 0.0
        %2085 = vmatpush1.msra.mxu0 0.0
        %2086 = vmatprep.subr.mxu0 0.0
        %2087 = vmatpush1.msra.mxu0 0.0
        %2088 = vmatprep.subr.mxu0 0.0
        %2089 = vmatpush1.msra.mxu0 0.0
        %2090 = vmatprep.subr.mxu0 0.0
        %2091 = vmatpush1.msra.mxu0 0.0
        %2092 = vmatprep.subr.mxu0 0.0
        %2093 = vmatpush1.msra.mxu0 0.0
        %2094 = vmatprep.subr.mxu0 0.0
        %2095 = vmatpush1.msra.mxu0 0.0
        %2096 = vmatprep.subr.mxu0 0.0
        %2097 = vmatpush1.msra.mxu0 0.0
        %2098 = vmatprep.subr.mxu0 0.0
        %2099 = vmatpush1.msra.mxu0 0.0
        %2100 = vmatprep.subr.mxu0 0.0
        %2101 = vmatpush1.msra.mxu0 0.0
        %2102 = vmatprep.subr.mxu0 0.0
        %2103 = vmatpush1.msra.mxu0 0.0
        %2104 = vmatprep.subr.mxu0 0.0
        %2105 = vmatpush1.msra.mxu0 0.0
        %2106 = vmatprep.subr.mxu0 0.0
        %2107 = vmatpush1.msra.mxu0 0.0
        %2108 = vmatprep.subr.mxu0 0.0
        %2109 = vmatpush1.msra.mxu0 0.0
        %2110 = vmatprep.subr.mxu0 0.0
        %2111 = vmatpush1.msra.mxu0 0.0
        %2112 = vmatprep.subr.mxu0 0.0
        %2113 = vmatpush1.msra.mxu0 0.0
        %2114 = vmatprep.subr.mxu0 0.0
        %2115 = vmatpush1.msra.mxu0 0.0
        %2116 = vmatprep.subr.mxu0 0.0
        %2117 = vmatpush1.msra.mxu0 0.0
        %2118 = vmatprep.subr.mxu0 0.0
        %2119 = vmatpush1.msra.mxu0 0.0
        %2120 = vmatprep.subr.mxu0 0.0
        %2121 = vmatpush1.msra.mxu0 0.0
        %2122 = vmatprep.subr.mxu0 0.0
        %2123 = vmatpush1.msra.mxu0 0.0
        %2124 = vmatprep.subr.mxu0 0.0
        %2125 = vmatpush1.msra.mxu0 0.0
        %2126 = vmatprep.subr.mxu0 0.0
        %2127 = vmatpush1.msra.mxu0 0.0
        %2128 = vmatprep.subr.mxu0 0.0
        %2129 = vmatpush1.msra.mxu0 0.0
        %2130 = vmatprep.subr.mxu0 0.0
        %2131 = vmatpush1.msra.mxu0 0.0
        %2132 = vmatprep.subr.mxu0 0.0
        %2133 = vmatpush1.msra.mxu0 0.0
        %2134 = vmatprep.mubr.f32.mxu0 0.0
        %2135 = vmatmul.mubr.f32.gmra.mrb[0].mxu0 %v2023
        %v2136 = vpop.f32.mrb[0].mxu0
        %v2137 = vadd.f32 0.0, %v2136
        %v2138 = vpop.f32.mrb[0].mxu0
        %2139 = vmatprep.mubr.f32.mxu0 0.0
        %2140 = vmatmul.mubr.f32.gmra.mrb[0].mxu0 %v2026
        %v2141 = vpop.f32.mrb[0].mxu0
        %v2142 = vadd.f32 0.0, %v2141
        %v2143 = vpop.f32.mrb[0].mxu0
        %2144 = vmatprep.mubr.f32.mxu0 0.0
        %2145 = vmatmul.mubr.f32.gmra.mrb[0].mxu0 %v2029
        %v2146 = vpop.f32.mrb[0].mxu0
        %v2147 = vadd.f32 0.0, %v2146
        %v2148 = vpop.f32.mrb[0].mxu0
        %2149 = vmatprep.mubr.f32.mxu0 0.0
        %2150 = vmatmul.mubr.f32.gmra.mrb[0].mxu0 %v2032
        %v2151 = vpop.f32.mrb[0].mxu0
        %v2152 = vadd.f32 0.0, %v2151
        %v2153 = vpop.f32.mrb[0].mxu0
        %2154 = vmatprep.mubr.f32.mxu0 0.0
        %2155 = vmatmul.mubr.f32.gmra.mrb[0].mxu0 %v2035
        %v2156 = vpop.f32.mrb[0].mxu0
        %v2157 = vadd.f32 0.0, %v2156
        %v2158 = vpop.f32.mrb[0].mxu0
        %2159 = vmatprep.mubr.f32.mxu0 0.0
        %2160 = vmatmul.mubr.f32.gmra.mrb[0].mxu0 %v2038
        %v2161 = vpop.f32.mrb[0].mxu0
        %v2162 = vadd.f32 0.0, %v2161
        %v2163 = vpop.f32.mrb[0].mxu0
        %2164 = vmatprep.mubr.f32.mxu0 0.0
        %2165 = vmatmul.mubr.f32.gmra.mrb[0].mxu0 %v2041
        %v2166 = vpop.f32.mrb[0].mxu0
        %v2167 = vadd.f32 0.0, %v2166
        %v2168 = vpop.f32.mrb[0].mxu0
        %2169 = vmatprep.mubr.f32.mxu0 0.0
        %2170 = vmatmul.mubr.f32.gmra.mrb[0].mxu0 %v2044
        %v2171 = vpop.f32.mrb[0].mxu0
        %v2172 = vadd.f32 0.0, %v2171
        %v2173 = vpop.f32.mrb[0].mxu0
        %2174 = vmatprep.mubr.f32.mxu0 0.0
        %2175 = vmatmul.mubr.f32.gmra.mrb[0].mxu0 %v2047
        %v2176 = vpop.f32.mrb[0].mxu0
        %v2177 = vadd.f32 0.0, %v2176
        %v2178 = vpop.f32.mrb[0].mxu0
        %2179 = vmatprep.mubr.f32.mxu0 0.0
        %2180 = vmatmul.mubr.f32.gmra.mrb[0].mxu0 %v2050
        %v2181 = vpop.f32.mrb[0].mxu0
        %v2182 = vadd.f32 0.0, %v2181
        %v2183 = vpop.f32.mrb[0].mxu0
        %2184 = vmatprep.mubr.f32.mxu0 0.0
        %2185 = vmatmul.mubr.f32.gmra.mrb[0].mxu0 %v2053
        %v2186 = vpop.f32.mrb[0].mxu0
        %v2187 = vadd.f32 0.0, %v2186
        %v2188 = vpop.f32.mrb[0].mxu0
        %2189 = vmatprep.mubr.f32.mxu0 0.0
        %2190 = vmatmul.mubr.f32.gmra.mrb[0].mxu0 %v2056
        %v2191 = vpop.f32.mrb[0].mxu0
        %v2192 = vadd.f32 0.0, %v2191
        %v2193 = vpop.f32.mrb[0].mxu0
        %2194 = vmatprep.mubr.f32.mxu0 0.0
        %2195 = vmatmul.mubr.f32.gmra.mrb[0].mxu0 %v2059
        %v2196 = vpop.f32.mrb[0].mxu0
        %v2197 = vadd.f32 0.0, %v2196
        %v2198 = vpop.f32.mrb[0].mxu0
        %2199 = vmatprep.mubr.f32.mxu0 0.0
        %2200 = vmatmul.mubr.f32.gmra.mrb[0].mxu0 %v2062
        %v2201 = vpop.f32.mrb[0].mxu0
        %v2202 = vadd.f32 0.0, %v2201
        %v2203 = vpop.f32.mrb[0].mxu0
        %2204 = vmatprep.mubr.f32.mxu0 0.0
        %2205 = vmatmul.mubr.f32.gmra.mrb[0].mxu0 %v2065
        %v2206 = vpop.f32.mrb[0].mxu0
        %v2207 = vadd.f32 0.0, %v2206
        %v2208 = vpop.f32.mrb[0].mxu0
        %2209 = vmatprep.mubr.f32.mxu0 0.0
        %2210 = vmatmul.mubr.f32.gmra.mrb[0].mxu0 %v2068
        %v2211 = vpop.f32.mrb[0].mxu0
        %v2212 = vadd.f32 0.0, %v2211
        %v2213 = vpop.f32.mrb[0].mxu0
        %2214 = vdwg.mxu0
        %v2216 = vsel %vm865, %v1318, 0
        %v2219 = vsel %vm865, %v1323, 0
        %v2222 = vsel %vm865, %v1328, 0
        %v2225 = vsel %vm865, %v1333, 0
        %v2228 = vsel %vm865, %v1338, 0
        %v2231 = vsel %vm865, %v1343, 0
        %v2234 = vsel %vm865, %v1348, 0
        %v2237 = vsel %vm865, %v1353, 0
        %v2240 = vsel %vm865, %v1358, 0
        %v2243 = vsel %vm865, %v1363, 0
        %v2246 = vsel %vm865, %v1368, 0
        %v2249 = vsel %vm865, %v1373, 0
        %v2252 = vsel %vm865, %v1378, 0
        %v2255 = vsel %vm865, %v1383, 0
        %v2258 = vsel %vm865, %v1388, 0
        %v2261 = vsel %vm865, %v1393, 0
        %2263 = vmatprep.subr.mxu0 0.0
        %2264 = vmatpush1.msra.mxu0 %v849
        %2265 = vmatprep.subr.mxu0 0.0
        %2266 = vmatpush1.msra.mxu0 %v850
        %2267 = vmatprep.subr.mxu0 0.0
        %2268 = vmatpush1.msra.mxu0 %v851
        %2269 = vmatprep.subr.mxu0 0.0
        %2270 = vmatpush1.msra.mxu0 %v852
        %2271 = vmatprep.subr.mxu0 0.0
        %2272 = vmatpush1.msra.mxu0 0.0
        %2273 = vmatprep.subr.mxu0 0.0
        %2274 = vmatpush1.msra.mxu0 0.0
        %2275 = vmatprep.subr.mxu0 0.0
        %2276 = vmatpush1.msra.mxu0 0.0
        %2277 = vmatprep.subr.mxu0 0.0
        %2278 = vmatpush1.msra.mxu0 0.0
        %2279 = vmatprep.subr.mxu0 0.0
        %2280 = vmatpush1.msra.mxu0 0.0
        %2281 = vmatprep.subr.mxu0 0.0
        %2282 = vmatpush1.msra.mxu0 0.0
        %2283 = vmatprep.subr.mxu0 0.0
        %2284 = vmatpush1.msra.mxu0 0.0
        %2285 = vmatprep.subr.mxu0 0.0
        %2286 = vmatpush1.msra.mxu0 0.0
        %2287 = vmatprep.subr.mxu0 0.0
        %2288 = vmatpush1.msra.mxu0 0.0
        %2289 = vmatprep.subr.mxu0 0.0
        %2290 = vmatpush1.msra.mxu0 0.0
        %2291 = vmatprep.subr.mxu0 0.0
        %2292 = vmatpush1.msra.mxu0 0.0
        %2293 = vmatprep.subr.mxu0 0.0
        %2294 = vmatpush1.msra.mxu0 0.0
        %2295 = vmatprep.subr.mxu0 0.0
        %2296 = vmatpush1.msra.mxu0 0.0
        %2297 = vmatprep.subr.mxu0 0.0
        %2298 = vmatpush1.msra.mxu0 0.0
        %2299 = vmatprep.subr.mxu0 0.0
        %2300 = vmatpush1.msra.mxu0 0.0
        %2301 = vmatprep.subr.mxu0 0.0
        %2302 = vmatpush1.msra.mxu0 0.0
        %2303 = vmatprep.subr.mxu0 0.0
        %2304 = vmatpush1.msra.mxu0 0.0
        %2305 = vmatprep.subr.mxu0 0.0
        %2306 = vmatpush1.msra.mxu0 0.0
        %2307 = vmatprep.subr.mxu0 0.0
        %2308 = vmatpush1.msra.mxu0 0.0
        %2309 = vmatprep.subr.mxu0 0.0
        %2310 = vmatpush1.msra.mxu0 0.0
        %2311 = vmatprep.subr.mxu0 0.0
        %2312 = vmatpush1.msra.mxu0 0.0
        %2313 = vmatprep.subr.mxu0 0.0
        %2314 = vmatpush1.msra.mxu0 0.0
        %2315 = vmatprep.subr.mxu0 0.0
        %2316 = vmatpush1.msra.mxu0 0.0
        %2317 = vmatprep.subr.mxu0 0.0
        %2318 = vmatpush1.msra.mxu0 0.0
        %2319 = vmatprep.subr.mxu0 0.0
        %2320 = vmatpush1.msra.mxu0 0.0
        %2321 = vmatprep.subr.mxu0 0.0
        %2322 = vmatpush1.msra.mxu0 0.0
        %2323 = vmatprep.subr.mxu0 0.0
        %2324 = vmatpush1.msra.mxu0 0.0
        %2325 = vmatprep.subr.mxu0 0.0
        %2326 = vmatpush1.msra.mxu0 0.0
        %2327 = vmatprep.mubr.f32.mxu0 0.0
        %2328 = vmatmul.mubr.f32.gmra.mrb[0].mxu0 %v2216
        %v2329 = vpop.f32.mrb[0].mxu0
        %v2330 = vadd.f32 %v2137, %v2329
        %v2331 = vpop.f32.mrb[0].mxu0
        %2332 = vmatprep.mubr.f32.mxu0 0.0
        %2333 = vmatmul.mubr.f32.gmra.mrb[0].mxu0 %v2219
        %v2334 = vpop.f32.mrb[0].mxu0
        %v2335 = vadd.f32 %v2142, %v2334
        %v2336 = vpop.f32.mrb[0].mxu0
        %2337 = vmatprep.mubr.f32.mxu0 0.0
        %2338 = vmatmul.mubr.f32.gmra.mrb[0].mxu0 %v2222
        %v2339 = vpop.f32.mrb[0].mxu0
        %v2340 = vadd.f32 %v2147, %v2339
        %v2341 = vpop.f32.mrb[0].mxu0
        %2342 = vmatprep.mubr.f32.mxu0 0.0
        %2343 = vmatmul.mubr.f32.gmra.mrb[0].mxu0 %v2225
        %v2344 = vpop.f32.mrb[0].mxu0
        %v2345 = vadd.f32 %v2152, %v2344
        %v2346 = vpop.f32.mrb[0].mxu0
        %2347 = vmatprep.mubr.f32.mxu0 0.0
        %2348 = vmatmul.mubr.f32.gmra.mrb[0].mxu0 %v2228
        %v2349 = vpop.f32.mrb[0].mxu0
        %v2350 = vadd.f32 %v2157, %v2349
        %v2351 = vpop.f32.mrb[0].mxu0
        %2352 = vmatprep.mubr.f32.mxu0 0.0
        %2353 = vmatmul.mubr.f32.gmra.mrb[0].mxu0 %v2231
        %v2354 = vpop.f32.mrb[0].mxu0
        %v2355 = vadd.f32 %v2162, %v2354
        %v2356 = vpop.f32.mrb[0].mxu0
        %2357 = vmatprep.mubr.f32.mxu0 0.0
        %2358 = vmatmul.mubr.f32.gmra.mrb[0].mxu0 %v2234
        %v2359 = vpop.f32.mrb[0].mxu0
        %v2360 = vadd.f32 %v2167, %v2359
        %v2361 = vpop.f32.mrb[0].mxu0
        %2362 = vmatprep.mubr.f32.mxu0 0.0
        %2363 = vmatmul.mubr.f32.gmra.mrb[0].mxu0 %v2237
        %v2364 = vpop.f32.mrb[0].mxu0
        %v2365 = vadd.f32 %v2172, %v2364
        %v2366 = vpop.f32.mrb[0].mxu0
        %2367 = vmatprep.mubr.f32.mxu0 0.0
        %2368 = vmatmul.mubr.f32.gmra.mrb[0].mxu0 %v2240
        %v2369 = vpop.f32.mrb[0].mxu0
        %v2370 = vadd.f32 %v2177, %v2369
        %v2371 = vpop.f32.mrb[0].mxu0
        %2372 = vmatprep.mubr.f32.mxu0 0.0
        %2373 = vmatmul.mubr.f32.gmra.mrb[0].mxu0 %v2243
        %v2374 = vpop.f32.mrb[0].mxu0
        %v2375 = vadd.f32 %v2182, %v2374
        %v2376 = vpop.f32.mrb[0].mxu0
        %2377 = vmatprep.mubr.f32.mxu0 0.0
        %2378 = vmatmul.mubr.f32.gmra.mrb[0].mxu0 %v2246
        %v2379 = vpop.f32.mrb[0].mxu0
        %v2380 = vadd.f32 %v2187, %v2379
        %v2381 = vpop.f32.mrb[0].mxu0
        %2382 = vmatprep.mubr.f32.mxu0 0.0
        %2383 = vmatmul.mubr.f32.gmra.mrb[0].mxu0 %v2249
        %v2384 = vpop.f32.mrb[0].mxu0
        %v2385 = vadd.f32 %v2192, %v2384
        %v2386 = vpop.f32.mrb[0].mxu0
        %2387 = vmatprep.mubr.f32.mxu0 0.0
        %2388 = vmatmul.mubr.f32.gmra.mrb[0].mxu0 %v2252
        %v2389 = vpop.f32.mrb[0].mxu0
        %v2390 = vadd.f32 %v2197, %v2389
        %v2391 = vpop.f32.mrb[0].mxu0
        %2392 = vmatprep.mubr.f32.mxu0 0.0
        %2393 = vmatmul.mubr.f32.gmra.mrb[0].mxu0 %v2255
        %v2394 = vpop.f32.mrb[0].mxu0
        %v2395 = vadd.f32 %v2202, %v2394
        %v2396 = vpop.f32.mrb[0].mxu0
        %2397 = vmatprep.mubr.f32.mxu0 0.0
        %2398 = vmatmul.mubr.f32.gmra.mrb[0].mxu0 %v2258
        %v2399 = vpop.f32.mrb[0].mxu0
        %v2400 = vadd.f32 %v2207, %v2399
        %v2401 = vpop.f32.mrb[0].mxu0
        %2402 = vmatprep.mubr.f32.mxu0 0.0
        %2403 = vmatmul.mubr.f32.gmra.mrb[0].mxu0 %v2261
        %v2404 = vpop.f32.mrb[0].mxu0
        %v2405 = vadd.f32 %v2212, %v2404
        %v2406 = vpop.f32.mrb[0].mxu0
        %2407 = vdwg.mxu0
        %2408 = vrot.lane.b32.xlu0 %v833, 64
        %v2409 = vpop.permute.xlu0 %2408
        %2410 = vrot.lane.b32.xlu0 %v834, 64
        %v2411 = vpop.permute.xlu0 %2410
        %2412 = vrot.lane.b32.xlu0 %v835, 64
        %v2413 = vpop.permute.xlu0 %2412
        %2414 = vrot.lane.b32.xlu0 %v836, 64
        %v2415 = vpop.permute.xlu0 %2414
        %2416 = vrot.lane.b32.xlu0 %v837, 64
        %v2417 = vpop.permute.xlu0 %2416
        %2418 = vrot.lane.b32.xlu0 %v838, 64
        %v2419 = vpop.permute.xlu0 %2418
        %2420 = vrot.lane.b32.xlu0 %v839, 64
        %v2421 = vpop.permute.xlu0 %2420
        %2422 = vrot.lane.b32.xlu0 %v840, 64
        %v2423 = vpop.permute.xlu0 %2422
        %2424 = vrot.lane.b32.xlu0 %v841, 64
        %v2425 = vpop.permute.xlu0 %2424
        %2426 = vrot.lane.b32.xlu0 %v842, 64
        %v2427 = vpop.permute.xlu0 %2426
        %2428 = vrot.lane.b32.xlu0 %v843, 64
        %v2429 = vpop.permute.xlu0 %2428
        %2430 = vrot.lane.b32.xlu0 %v844, 64
        %v2431 = vpop.permute.xlu0 %2430
        %2432 = vrot.lane.b32.xlu0 %v845, 64
        %v2433 = vpop.permute.xlu0 %2432
        %2434 = vrot.lane.b32.xlu0 %v846, 64
        %v2435 = vpop.permute.xlu0 %2434
        %2436 = vrot.lane.b32.xlu0 %v847, 64
        %v2437 = vpop.permute.xlu0 %2436
        %2438 = vrot.lane.b32.xlu0 %v848, 64
        %v2439 = vpop.permute.xlu0 %2438
        %2440 = vrot.lane.b32.xlu0 %v596, 64
        %v2441 = vpop.permute.xlu0 %2440
        %2442 = vrot.lane.b32.xlu0 %v602, 64
        %v2443 = vpop.permute.xlu0 %2442
        %2444 = vrot.lane.b32.xlu0 %v608, 64
        %v2445 = vpop.permute.xlu0 %2444
        %2446 = vrot.lane.b32.xlu0 %v614, 64
        %v2447 = vpop.permute.xlu0 %2446
        %2448 = vrot.lane.b32.xlu0 %v620, 64
        %v2449 = vpop.permute.xlu0 %2448
        %2450 = vrot.lane.b32.xlu0 %v626, 64
        %v2451 = vpop.permute.xlu0 %2450
        %2452 = vrot.lane.b32.xlu0 %v632, 64
        %v2453 = vpop.permute.xlu0 %2452
        %2454 = vrot.lane.b32.xlu0 %v638, 64
        %v2455 = vpop.permute.xlu0 %2454
        %2456 = vrot.lane.b32.xlu0 %v644, 64
        %v2457 = vpop.permute.xlu0 %2456
        %2458 = vrot.lane.b32.xlu0 %v650, 64
        %v2459 = vpop.permute.xlu0 %2458
        %2460 = vrot.lane.b32.xlu0 %v656, 64
        %v2461 = vpop.permute.xlu0 %2460
        %2462 = vrot.lane.b32.xlu0 %v662, 64
        %v2463 = vpop.permute.xlu0 %2462
        %2464 = vrot.lane.b32.xlu0 %v668, 64
        %v2465 = vpop.permute.xlu0 %2464
        %2466 = vrot.lane.b32.xlu0 %v674, 64
        %v2467 = vpop.permute.xlu0 %2466
        %2468 = vrot.lane.b32.xlu0 %v680, 64
        %v2469 = vpop.permute.xlu0 %2468
        %2470 = vrot.lane.b32.xlu0 %v686, 64
        %v2471 = vpop.permute.xlu0 %2470
        %v2472 = vsel %vm865, %v2409, 0
        %v2474 = vsel %vm865, %v2411, 0
        %v2476 = vsel %vm865, %v2413, 0
        %v2478 = vsel %vm865, %v2415, 0
        %v2480 = vsel %vm865, %v2417, 0
        %v2482 = vsel %vm865, %v2419, 0
        %v2484 = vsel %vm865, %v2421, 0
        %v2486 = vsel %vm865, %v2423, 0
        %v2488 = vsel %vm865, %v2425, 0
        %v2490 = vsel %vm865, %v2427, 0
        %v2492 = vsel %vm865, %v2429, 0
        %v2494 = vsel %vm865, %v2431, 0
        %v2496 = vsel %vm865, %v2433, 0
        %v2498 = vsel %vm865, %v2435, 0
        %v2500 = vsel %vm865, %v2437, 0
        %v2502 = vsel %vm865, %v2439, 0
        %v2504 = vsel %vm865, %v2441, 0
        %v2506 = vsel %vm865, %v2443, 0
        %v2508 = vsel %vm865, %v2445, 0
        %v2510 = vsel %vm865, %v2447, 0
        %v2512 = vsel %vm865, %v2449, 0
        %v2514 = vsel %vm865, %v2451, 0
        %v2516 = vsel %vm865, %v2453, 0
        %v2518 = vsel %vm865, %v2455, 0
        %v2520 = vsel %vm865, %v2457, 0
        %v2522 = vsel %vm865, %v2459, 0
        %v2524 = vsel %vm865, %v2461, 0
        %v2526 = vsel %vm865, %v2463, 0
        %v2528 = vsel %vm865, %v2465, 0
        %v2530 = vsel %vm865, %v2467, 0
        %v2532 = vsel %vm865, %v2469, 0
        %v2534 = vsel %vm865, %v2471, 0
        %2536 = vmatprep.subr.mxu0 0.0
        %2537 = vmatpush1.xpose.msra.mxu0 %v2504
        %2538 = vmatprep.subr.mxu0 0.0
        %2539 = vmatpush1.xpose.msra.mxu0 %v2506
        %2540 = vmatprep.subr.mxu0 0.0
        %2541 = vmatpush1.xpose.msra.mxu0 %v2508
        %2542 = vmatprep.subr.mxu0 0.0
        %2543 = vmatpush1.xpose.msra.mxu0 %v2510
        %2544 = vmatprep.subr.mxu0 0.0
        %2545 = vmatpush1.xpose.msra.mxu0 %v2512
        %2546 = vmatprep.subr.mxu0 0.0
        %2547 = vmatpush1.xpose.msra.mxu0 %v2514
        %2548 = vmatprep.subr.mxu0 0.0
        %2549 = vmatpush1.xpose.msra.mxu0 %v2516
        %2550 = vmatprep.subr.mxu0 0.0
        %2551 = vmatpush1.xpose.msra.mxu0 %v2518
        %2552 = vmatprep.subr.mxu0 0.0
        %2553 = vmatpush1.xpose.msra.mxu0 %v2520
        %2554 = vmatprep.subr.mxu0 0.0
        %2555 = vmatpush1.xpose.msra.mxu0 %v2522
        %2556 = vmatprep.subr.mxu0 0.0
        %2557 = vmatpush1.xpose.msra.mxu0 %v2524
        %2558 = vmatprep.subr.mxu0 0.0
        %2559 = vmatpush1.xpose.msra.mxu0 %v2526
        %2560 = vmatprep.subr.mxu0 0.0
        %2561 = vmatpush1.xpose.msra.mxu0 %v2528
        %2562 = vmatprep.subr.mxu0 0.0
        %2563 = vmatpush1.xpose.msra.mxu0 %v2530
        %2564 = vmatprep.subr.mxu0 0.0
        %2565 = vmatpush1.xpose.msra.mxu0 %v2532
        %2566 = vmatprep.subr.mxu0 0.0
        %2567 = vmatpush1.xpose.msra.mxu0 %v2534
        %2568 = vmatprep.subr.mxu0 0.0
        %2569 = vmatpush1.xpose.msra.mxu0 0.0
        %2570 = vmatprep.subr.mxu0 0.0
        %2571 = vmatpush1.xpose.msra.mxu0 0.0
        %2572 = vmatprep.subr.mxu0 0.0
        %2573 = vmatpush1.xpose.msra.mxu0 0.0
        %2574 = vmatprep.subr.mxu0 0.0
        %2575 = vmatpush1.xpose.msra.mxu0 0.0
        %2576 = vmatprep.subr.mxu0 0.0
        %2577 = vmatpush1.xpose.msra.mxu0 0.0
        %2578 = vmatprep.subr.mxu0 0.0
        %2579 = vmatpush1.xpose.msra.mxu0 0.0
        %2580 = vmatprep.subr.mxu0 0.0
        %2581 = vmatpush1.xpose.msra.mxu0 0.0
        %2582 = vmatprep.subr.mxu0 0.0
        %2583 = vmatpush1.xpose.msra.mxu0 0.0
        %2584 = vmatprep.subr.mxu0 0.0
        %2585 = vmatpush1.xpose.msra.mxu0 0.0
        %2586 = vmatprep.subr.mxu0 0.0
        %2587 = vmatpush1.xpose.msra.mxu0 0.0
        %2588 = vmatprep.subr.mxu0 0.0
        %2589 = vmatpush1.xpose.msra.mxu0 0.0
        %2590 = vmatprep.subr.mxu0 0.0
        %2591 = vmatpush1.xpose.msra.mxu0 0.0
        %2592 = vmatprep.subr.mxu0 0.0
        %2593 = vmatpush1.xpose.msra.mxu0 0.0
        %2594 = vmatprep.subr.mxu0 0.0
        %2595 = vmatpush1.xpose.msra.mxu0 0.0
        %2596 = vmatprep.subr.mxu0 0.0
        %2597 = vmatpush1.xpose.msra.mxu0 0.0
        %2598 = vmatprep.subr.mxu0 0.0
        %2599 = vmatpush1.xpose.msra.mxu0 0.0
        %2600 = vmatprep.mubr.f32.mxu0 0.0
        %2601 = vmatmul.mubr.f32.gmra.mrb[0].mxu0 %v2472
        %v2602 = vpop.f32.mrb[0].mxu0
        %v2603 = vadd.f32 0.0, %v2602
        %v2604 = vpop.f32.mrb[0].mxu0
        %2605 = vmatprep.mubr.f32.mxu0 0.0
        %2606 = vmatmul.mubr.f32.gmra.mrb[0].mxu0 %v2474
        %v2607 = vpop.f32.mrb[0].mxu0
        %v2608 = vadd.f32 0.0, %v2607
        %v2609 = vpop.f32.mrb[0].mxu0
        %2610 = vmatprep.mubr.f32.mxu0 0.0
        %2611 = vmatmul.mubr.f32.gmra.mrb[0].mxu0 %v2476
        %v2612 = vpop.f32.mrb[0].mxu0
        %v2613 = vadd.f32 0.0, %v2612
        %v2614 = vpop.f32.mrb[0].mxu0
        %2615 = vmatprep.mubr.f32.mxu0 0.0
        %2616 = vmatmul.mubr.f32.gmra.mrb[0].mxu0 %v2478
        %v2617 = vpop.f32.mrb[0].mxu0
        %v2618 = vadd.f32 0.0, %v2617
        %v2619 = vpop.f32.mrb[0].mxu0
        %2620 = vmatprep.mubr.f32.mxu0 0.0
        %2621 = vmatmul.mubr.f32.gmra.mrb[0].mxu0 %v2480
        %v2622 = vpop.f32.mrb[0].mxu0
        %v2623 = vadd.f32 0.0, %v2622
        %v2624 = vpop.f32.mrb[0].mxu0
        %2625 = vmatprep.mubr.f32.mxu0 0.0
        %2626 = vmatmul.mubr.f32.gmra.mrb[0].mxu0 %v2482
        %v2627 = vpop.f32.mrb[0].mxu0
        %v2628 = vadd.f32 0.0, %v2627
        %v2629 = vpop.f32.mrb[0].mxu0
        %2630 = vmatprep.mubr.f32.mxu0 0.0
        %2631 = vmatmul.mubr.f32.gmra.mrb[0].mxu0 %v2484
        %v2632 = vpop.f32.mrb[0].mxu0
        %v2633 = vadd.f32 0.0, %v2632
        %v2634 = vpop.f32.mrb[0].mxu0
        %2635 = vmatprep.mubr.f32.mxu0 0.0
        %2636 = vmatmul.mubr.f32.gmra.mrb[0].mxu0 %v2486
        %v2637 = vpop.f32.mrb[0].mxu0
        %v2638 = vadd.f32 0.0, %v2637
        %v2639 = vpop.f32.mrb[0].mxu0
        %2640 = vmatprep.mubr.f32.mxu0 0.0
        %2641 = vmatmul.mubr.f32.gmra.mrb[0].mxu0 %v2488
        %v2642 = vpop.f32.mrb[0].mxu0
        %v2643 = vadd.f32 0.0, %v2642
        %v2644 = vpop.f32.mrb[0].mxu0
        %2645 = vmatprep.mubr.f32.mxu0 0.0
        %2646 = vmatmul.mubr.f32.gmra.mrb[0].mxu0 %v2490
        %v2647 = vpop.f32.mrb[0].mxu0
        %v2648 = vadd.f32 0.0, %v2647
        %v2649 = vpop.f32.mrb[0].mxu0
        %2650 = vmatprep.mubr.f32.mxu0 0.0
        %2651 = vmatmul.mubr.f32.gmra.mrb[0].mxu0 %v2492
        %v2652 = vpop.f32.mrb[0].mxu0
        %v2653 = vadd.f32 0.0, %v2652
        %v2654 = vpop.f32.mrb[0].mxu0
        %2655 = vmatprep.mubr.f32.mxu0 0.0
        %2656 = vmatmul.mubr.f32.gmra.mrb[0].mxu0 %v2494
        %v2657 = vpop.f32.mrb[0].mxu0
        %v2658 = vadd.f32 0.0, %v2657
        %v2659 = vpop.f32.mrb[0].mxu0
        %2660 = vmatprep.mubr.f32.mxu0 0.0
        %2661 = vmatmul.mubr.f32.gmra.mrb[0].mxu0 %v2496
        %v2662 = vpop.f32.mrb[0].mxu0
        %v2663 = vadd.f32 0.0, %v2662
        %v2664 = vpop.f32.mrb[0].mxu0
        %2665 = vmatprep.mubr.f32.mxu0 0.0
        %2666 = vmatmul.mubr.f32.gmra.mrb[0].mxu0 %v2498
        %v2667 = vpop.f32.mrb[0].mxu0
        %v2668 = vadd.f32 0.0, %v2667
        %v2669 = vpop.f32.mrb[0].mxu0
        %2670 = vmatprep.mubr.f32.mxu0 0.0
        %2671 = vmatmul.mubr.f32.gmra.mrb[0].mxu0 %v2500
        %v2672 = vpop.f32.mrb[0].mxu0
        %v2673 = vadd.f32 0.0, %v2672
        %v2674 = vpop.f32.mrb[0].mxu0
        %2675 = vmatprep.mubr.f32.mxu0 0.0
        %2676 = vmatmul.mubr.f32.gmra.mrb[0].mxu0 %v2502
        %v2677 = vpop.f32.mrb[0].mxu0
        %v2678 = vadd.f32 0.0, %v2677
        %v2679 = vpop.f32.mrb[0].mxu0
        %2680 = vdwg.mxu0
        %2681 = vmax.xlane.f32.xlu0 %v2603
        %v2682 = vpop.xlane.xlu0 %2681
        %2683 = vmax.xlane.f32.xlu0 %v2608
        %v2684 = vpop.xlane.xlu0 %2683
        %2685 = vmax.xlane.f32.xlu0 %v2613
        %v2686 = vpop.xlane.xlu0 %2685
        %2687 = vmax.xlane.f32.xlu0 %v2618
        %v2688 = vpop.xlane.xlu0 %2687
        %2689 = vmax.xlane.f32.xlu0 %v2623
        %v2690 = vpop.xlane.xlu0 %2689
        %2691 = vmax.xlane.f32.xlu0 %v2628
        %v2692 = vpop.xlane.xlu0 %2691
        %2693 = vmax.xlane.f32.xlu0 %v2633
        %v2694 = vpop.xlane.xlu0 %2693
        %2695 = vmax.xlane.f32.xlu0 %v2638
        %v2696 = vpop.xlane.xlu0 %2695
        %2697 = vmax.xlane.f32.xlu0 %v2643
        %v2698 = vpop.xlane.xlu0 %2697
        %2699 = vmax.xlane.f32.xlu0 %v2648
        %v2700 = vpop.xlane.xlu0 %2699
        %2701 = vmax.xlane.f32.xlu0 %v2653
        %v2702 = vpop.xlane.xlu0 %2701
        %2703 = vmax.xlane.f32.xlu0 %v2658
        %v2704 = vpop.xlane.xlu0 %2703
        %2705 = vmax.xlane.f32.xlu0 %v2663
        %v2706 = vpop.xlane.xlu0 %2705
        %2707 = vmax.xlane.f32.xlu0 %v2668
        %v2708 = vpop.xlane.xlu0 %2707
        %2709 = vmax.xlane.f32.xlu0 %v2673
        %v2710 = vpop.xlane.xlu0 %2709
        %2711 = vmax.xlane.f32.xlu0 %v2678
        %v2712 = vpop.xlane.xlu0 %2711
        %v2713 = vsub.f32 %v2603, %v2682
        %v2714 = vsub.f32 %v2608, %v2684
        %v2715 = vsub.f32 %v2613, %v2686
        %v2716 = vsub.f32 %v2618, %v2688
        %v2717 = vsub.f32 %v2623, %v2690
        %v2718 = vsub.f32 %v2628, %v2692
        %v2719 = vsub.f32 %v2633, %v2694
        %v2720 = vsub.f32 %v2638, %v2696
        %v2721 = vsub.f32 %v2643, %v2698
        %v2722 = vsub.f32 %v2648, %v2700
        %v2723 = vsub.f32 %v2653, %v2702
        %v2724 = vsub.f32 %v2658, %v2704
        %v2725 = vsub.f32 %v2663, %v2706
        %v2726 = vsub.f32 %v2668, %v2708
        %v2727 = vsub.f32 %v2673, %v2710
        %v2728 = vsub.f32 %v2678, %v2712
        %v2729 = vmul.f32 %v2713, 1.442695
        %v2730 = vpow.pop %v2729
        %v2731 = vmul.f32 %v2714, 1.442695
        %v2732 = vpow.pop %v2731
        %v2733 = vmul.f32 %v2715, 1.442695
        %v2734 = vpow.pop %v2733
        %v2735 = vmul.f32 %v2716, 1.442695
        %v2736 = vpow.pop %v2735
        %v2737 = vmul.f32 %v2717, 1.442695
        %v2738 = vpow.pop %v2737
        %v2739 = vmul.f32 %v2718, 1.442695
        %v2740 = vpow.pop %v2739
        %v2741 = vmul.f32 %v2719, 1.442695
        %v2742 = vpow.pop %v2741
        %v2743 = vmul.f32 %v2720, 1.442695
        %v2744 = vpow.pop %v2743
        %v2745 = vmul.f32 %v2721, 1.442695
        %v2746 = vpow.pop %v2745
        %v2747 = vmul.f32 %v2722, 1.442695
        %v2748 = vpow.pop %v2747
        %v2749 = vmul.f32 %v2723, 1.442695
        %v2750 = vpow.pop %v2749
        %v2751 = vmul.f32 %v2724, 1.442695
        %v2752 = vpow.pop %v2751
        %v2753 = vmul.f32 %v2725, 1.442695
        %v2754 = vpow.pop %v2753
        %v2755 = vmul.f32 %v2726, 1.442695
        %v2756 = vpow.pop %v2755
        %v2757 = vmul.f32 %v2727, 1.442695
        %v2758 = vpow.pop %v2757
        %v2759 = vmul.f32 %v2728, 1.442695
        %v2760 = vpow.pop %v2759
        %2761 = vadd.xlane.f32.xlu0 %v2730
        %v2762 = vpop.xlane.xlu0 %2761
        %2763 = vadd.xlane.f32.xlu0 %v2732
        %v2764 = vpop.xlane.xlu0 %2763
        %2765 = vadd.xlane.f32.xlu0 %v2734
        %v2766 = vpop.xlane.xlu0 %2765
        %2767 = vadd.xlane.f32.xlu0 %v2736
        %v2768 = vpop.xlane.xlu0 %2767
        %2769 = vadd.xlane.f32.xlu0 %v2738
        %v2770 = vpop.xlane.xlu0 %2769
        %2771 = vadd.xlane.f32.xlu0 %v2740
        %v2772 = vpop.xlane.xlu0 %2771
        %2773 = vadd.xlane.f32.xlu0 %v2742
        %v2774 = vpop.xlane.xlu0 %2773
        %2775 = vadd.xlane.f32.xlu0 %v2744
        %v2776 = vpop.xlane.xlu0 %2775
        %2777 = vadd.xlane.f32.xlu0 %v2746
        %v2778 = vpop.xlane.xlu0 %2777
        %2779 = vadd.xlane.f32.xlu0 %v2748
        %v2780 = vpop.xlane.xlu0 %2779
        %2781 = vadd.xlane.f32.xlu0 %v2750
        %v2782 = vpop.xlane.xlu0 %2781
        %2783 = vadd.xlane.f32.xlu0 %v2752
        %v2784 = vpop.xlane.xlu0 %2783
        %2785 = vadd.xlane.f32.xlu0 %v2754
        %v2786 = vpop.xlane.xlu0 %2785
        %2787 = vadd.xlane.f32.xlu0 %v2756
        %v2788 = vpop.xlane.xlu0 %2787
        %2789 = vadd.xlane.f32.xlu0 %v2758
        %v2790 = vpop.xlane.xlu0 %2789
        %2791 = vadd.xlane.f32.xlu0 %v2760
        %v2792 = vpop.xlane.xlu0 %2791
        %v2793 = vrcp.pop %v2762
        %v2794 = vrcp.pop %v2764
        %v2795 = vrcp.pop %v2766
        %v2796 = vrcp.pop %v2768
        %v2797 = vrcp.pop %v2770
        %v2798 = vrcp.pop %v2772
        %v2799 = vrcp.pop %v2774
        %v2800 = vrcp.pop %v2776
        %v2801 = vrcp.pop %v2778
        %v2802 = vrcp.pop %v2780
        %v2803 = vrcp.pop %v2782
        %v2804 = vrcp.pop %v2784
        %v2805 = vrcp.pop %v2786
        %v2806 = vrcp.pop %v2788
        %v2807 = vrcp.pop %v2790
        %v2808 = vrcp.pop %v2792
        %v2809 = vmul.f32 %v2730, %v2793
        %v2810 = vmul.f32 %v2732, %v2794
        %v2811 = vmul.f32 %v2734, %v2795
        %v2812 = vmul.f32 %v2736, %v2796
        %v2813 = vmul.f32 %v2738, %v2797
        %v2814 = vmul.f32 %v2740, %v2798
        %v2815 = vmul.f32 %v2742, %v2799
        %v2816 = vmul.f32 %v2744, %v2800
        %v2817 = vmul.f32 %v2746, %v2801
        %v2818 = vmul.f32 %v2748, %v2802
        %v2819 = vmul.f32 %v2750, %v2803
        %v2820 = vmul.f32 %v2752, %v2804
        %v2821 = vmul.f32 %v2754, %v2805
        %v2822 = vmul.f32 %v2756, %v2806
        %v2823 = vmul.f32 %v2758, %v2807
        %v2824 = vmul.f32 %v2760, %v2808
        %2825 = vrot.lane.b32.xlu0 %v755, 64
        %v2826 = vpop.permute.xlu0 %2825
        %2827 = vrot.lane.b32.xlu0 %v760, 64
        %v2828 = vpop.permute.xlu0 %2827
        %2829 = vrot.lane.b32.xlu0 %v765, 64
        %v2830 = vpop.permute.xlu0 %2829
        %2831 = vrot.lane.b32.xlu0 %v770, 64
        %v2832 = vpop.permute.xlu0 %2831
        %2833 = vrot.lane.b32.xlu0 %v775, 64
        %v2834 = vpop.permute.xlu0 %2833
        %2835 = vrot.lane.b32.xlu0 %v780, 64
        %v2836 = vpop.permute.xlu0 %2835
        %2837 = vrot.lane.b32.xlu0 %v785, 64
        %v2838 = vpop.permute.xlu0 %2837
        %2839 = vrot.lane.b32.xlu0 %v790, 64
        %v2840 = vpop.permute.xlu0 %2839
        %2841 = vrot.lane.b32.xlu0 %v795, 64
        %v2842 = vpop.permute.xlu0 %2841
        %2843 = vrot.lane.b32.xlu0 %v800, 64
        %v2844 = vpop.permute.xlu0 %2843
        %2845 = vrot.lane.b32.xlu0 %v805, 64
        %v2846 = vpop.permute.xlu0 %2845
        %2847 = vrot.lane.b32.xlu0 %v810, 64
        %v2848 = vpop.permute.xlu0 %2847
        %2849 = vrot.lane.b32.xlu0 %v815, 64
        %v2850 = vpop.permute.xlu0 %2849
        %2851 = vrot.lane.b32.xlu0 %v820, 64
        %v2852 = vpop.permute.xlu0 %2851
        %2853 = vrot.lane.b32.xlu0 %v825, 64
        %v2854 = vpop.permute.xlu0 %2853
        %2855 = vrot.lane.b32.xlu0 %v830, 64
        %v2856 = vpop.permute.xlu0 %2855
        %2873 = vmatprep.subr.mxu0 0.0
        %2874 = vmatpush1.msra.mxu0 %v2826
        %2875 = vmatprep.subr.mxu0 0.0
        %2876 = vmatpush1.msra.mxu0 %v2828
        %2877 = vmatprep.subr.mxu0 0.0
        %2878 = vmatpush1.msra.mxu0 %v2830
        %2879 = vmatprep.subr.mxu0 0.0
        %2880 = vmatpush1.msra.mxu0 %v2832
        %2881 = vmatprep.subr.mxu0 0.0
        %2882 = vmatpush1.msra.mxu0 %v2834
        %2883 = vmatprep.subr.mxu0 0.0
        %2884 = vmatpush1.msra.mxu0 %v2836
        %2885 = vmatprep.subr.mxu0 0.0
        %2886 = vmatpush1.msra.mxu0 %v2838
        %2887 = vmatprep.subr.mxu0 0.0
        %2888 = vmatpush1.msra.mxu0 %v2840
        %2889 = vmatprep.subr.mxu0 0.0
        %2890 = vmatpush1.msra.mxu0 %v2842
        %2891 = vmatprep.subr.mxu0 0.0
        %2892 = vmatpush1.msra.mxu0 %v2844
        %2893 = vmatprep.subr.mxu0 0.0
        %2894 = vmatpush1.msra.mxu0 %v2846
        %2895 = vmatprep.subr.mxu0 0.0
        %2896 = vmatpush1.msra.mxu0 %v2848
        %2897 = vmatprep.subr.mxu0 0.0
        %2898 = vmatpush1.msra.mxu0 %v2850
        %2899 = vmatprep.subr.mxu0 0.0
        %2900 = vmatpush1.msra.mxu0 %v2852
        %2901 = vmatprep.subr.mxu0 0.0
        %2902 = vmatpush1.msra.mxu0 %v2854
        %2903 = vmatprep.subr.mxu0 0.0
        %2904 = vmatpush1.msra.mxu0 %v2856
        %2905 = vmatprep.subr.mxu0 0.0
        %2906 = vmatpush1.msra.mxu0 0.0
        %2907 = vmatprep.subr.mxu0 0.0
        %2908 = vmatpush1.msra.mxu0 0.0
        %2909 = vmatprep.subr.mxu0 0.0
        %2910 = vmatpush1.msra.mxu0 0.0
        %2911 = vmatprep.subr.mxu0 0.0
        %2912 = vmatpush1.msra.mxu0 0.0
        %2913 = vmatprep.subr.mxu0 0.0
        %2914 = vmatpush1.msra.mxu0 0.0
        %2915 = vmatprep.subr.mxu0 0.0
        %2916 = vmatpush1.msra.mxu0 0.0
        %2917 = vmatprep.subr.mxu0 0.0
        %2918 = vmatpush1.msra.mxu0 0.0
        %2919 = vmatprep.subr.mxu0 0.0
        %2920 = vmatpush1.msra.mxu0 0.0
        %2921 = vmatprep.subr.mxu0 0.0
        %2922 = vmatpush1.msra.mxu0 0.0
        %2923 = vmatprep.subr.mxu0 0.0
        %2924 = vmatpush1.msra.mxu0 0.0
        %2925 = vmatprep.subr.mxu0 0.0
        %2926 = vmatpush1.msra.mxu0 0.0
        %2927 = vmatprep.subr.mxu0 0.0
        %2928 = vmatpush1.msra.mxu0 0.0
        %2929 = vmatprep.subr.mxu0 0.0
        %2930 = vmatpush1.msra.mxu0 0.0
        %2931 = vmatprep.subr.mxu0 0.0
        %2932 = vmatpush1.msra.mxu0 0.0
        %2933 = vmatprep.subr.mxu0 0.0
        %2934 = vmatpush1.msra.mxu0 0.0
        %2935 = vmatprep.subr.mxu0 0.0
        %2936 = vmatpush1.msra.mxu0 0.0
        %2937 = vmatprep.mubr.f32.mxu0 0.0
        %2938 = vmatmul.mubr.f32.gmra.mrb[0].mxu0 %v2809
        %v2939 = vpop.f32.mrb[0].mxu0
        %v2940 = vadd.f32 0.0, %v2939
        %v2941 = vpop.f32.mrb[0].mxu0
        %2942 = vmatprep.mubr.f32.mxu0 0.0
        %2943 = vmatmul.mubr.f32.gmra.mrb[0].mxu0 %v2810
        %v2944 = vpop.f32.mrb[0].mxu0
        %v2945 = vadd.f32 0.0, %v2944
        %v2946 = vpop.f32.mrb[0].mxu0
        %2947 = vmatprep.mubr.f32.mxu0 0.0
        %2948 = vmatmul.mubr.f32.gmra.mrb[0].mxu0 %v2811
        %v2949 = vpop.f32.mrb[0].mxu0
        %v2950 = vadd.f32 0.0, %v2949
        %v2951 = vpop.f32.mrb[0].mxu0
        %2952 = vmatprep.mubr.f32.mxu0 0.0
        %2953 = vmatmul.mubr.f32.gmra.mrb[0].mxu0 %v2812
        %v2954 = vpop.f32.mrb[0].mxu0
        %v2955 = vadd.f32 0.0, %v2954
        %v2956 = vpop.f32.mrb[0].mxu0
        %2957 = vmatprep.mubr.f32.mxu0 0.0
        %2958 = vmatmul.mubr.f32.gmra.mrb[0].mxu0 %v2813
        %v2959 = vpop.f32.mrb[0].mxu0
        %v2960 = vadd.f32 0.0, %v2959
        %v2961 = vpop.f32.mrb[0].mxu0
        %2962 = vmatprep.mubr.f32.mxu0 0.0
        %2963 = vmatmul.mubr.f32.gmra.mrb[0].mxu0 %v2814
        %v2964 = vpop.f32.mrb[0].mxu0
        %v2965 = vadd.f32 0.0, %v2964
        %v2966 = vpop.f32.mrb[0].mxu0
        %2967 = vmatprep.mubr.f32.mxu0 0.0
        %2968 = vmatmul.mubr.f32.gmra.mrb[0].mxu0 %v2815
        %v2969 = vpop.f32.mrb[0].mxu0
        %v2970 = vadd.f32 0.0, %v2969
        %v2971 = vpop.f32.mrb[0].mxu0
        %2972 = vmatprep.mubr.f32.mxu0 0.0
        %2973 = vmatmul.mubr.f32.gmra.mrb[0].mxu0 %v2816
        %v2974 = vpop.f32.mrb[0].mxu0
        %v2975 = vadd.f32 0.0, %v2974
        %v2976 = vpop.f32.mrb[0].mxu0
        %2977 = vmatprep.mubr.f32.mxu0 0.0
        %2978 = vmatmul.mubr.f32.gmra.mrb[0].mxu0 %v2817
        %v2979 = vpop.f32.mrb[0].mxu0
        %v2980 = vadd.f32 0.0, %v2979
        %v2981 = vpop.f32.mrb[0].mxu0
        %2982 = vmatprep.mubr.f32.mxu0 0.0
        %2983 = vmatmul.mubr.f32.gmra.mrb[0].mxu0 %v2818
        %v2984 = vpop.f32.mrb[0].mxu0
        %v2985 = vadd.f32 0.0, %v2984
        %v2986 = vpop.f32.mrb[0].mxu0
        %2987 = vmatprep.mubr.f32.mxu0 0.0
        %2988 = vmatmul.mubr.f32.gmra.mrb[0].mxu0 %v2819
        %v2989 = vpop.f32.mrb[0].mxu0
        %v2990 = vadd.f32 0.0, %v2989
        %v2991 = vpop.f32.mrb[0].mxu0
        %2992 = vmatprep.mubr.f32.mxu0 0.0
        %2993 = vmatmul.mubr.f32.gmra.mrb[0].mxu0 %v2820
        %v2994 = vpop.f32.mrb[0].mxu0
        %v2995 = vadd.f32 0.0, %v2994
        %v2996 = vpop.f32.mrb[0].mxu0
        %2997 = vmatprep.mubr.f32.mxu0 0.0
        %2998 = vmatmul.mubr.f32.gmra.mrb[0].mxu0 %v2821
        %v2999 = vpop.f32.mrb[0].mxu0
        %v3000 = vadd.f32 0.0, %v2999
        %v3001 = vpop.f32.mrb[0].mxu0
        %3002 = vmatprep.mubr.f32.mxu0 0.0
        %3003 = vmatmul.mubr.f32.gmra.mrb[0].mxu0 %v2822
        %v3004 = vpop.f32.mrb[0].mxu0
        %v3005 = vadd.f32 0.0, %v3004
        %v3006 = vpop.f32.mrb[0].mxu0
        %3007 = vmatprep.mubr.f32.mxu0 0.0
        %3008 = vmatmul.mubr.f32.gmra.mrb[0].mxu0 %v2823
        %v3009 = vpop.f32.mrb[0].mxu0
        %v3010 = vadd.f32 0.0, %v3009
        %v3011 = vpop.f32.mrb[0].mxu0
        %3012 = vmatprep.mubr.f32.mxu0 0.0
        %3013 = vmatmul.mubr.f32.gmra.mrb[0].mxu0 %v2824
        %v3014 = vpop.f32.mrb[0].mxu0
        %v3015 = vadd.f32 0.0, %v3014
        %v3016 = vpop.f32.mrb[0].mxu0
        %3017 = vdwg.mxu0
        %v3019 = vsel %vm865, %v2940, 0
        %v3022 = vsel %vm865, %v2945, 0
        %v3025 = vsel %vm865, %v2950, 0
        %v3028 = vsel %vm865, %v2955, 0
        %v3031 = vsel %vm865, %v2960, 0
        %v3034 = vsel %vm865, %v2965, 0
        %v3037 = vsel %vm865, %v2970, 0
        %v3040 = vsel %vm865, %v2975, 0
        %v3043 = vsel %vm865, %v2980, 0
        %v3046 = vsel %vm865, %v2985, 0
        %v3049 = vsel %vm865, %v2990, 0
        %v3052 = vsel %vm865, %v2995, 0
        %v3055 = vsel %vm865, %v3000, 0
        %v3058 = vsel %vm865, %v3005, 0
        %v3061 = vsel %vm865, %v3010, 0
        %v3064 = vsel %vm865, %v3015, 0
        %3066 = vmatprep.subr.mxu0 0.0
        %3067 = vmatpush1.msra.mxu0 %v857
        %3068 = vmatprep.subr.mxu0 0.0
        %3069 = vmatpush1.msra.mxu0 %v858
        %3070 = vmatprep.subr.mxu0 0.0
        %3071 = vmatpush1.msra.mxu0 %v859
        %3072 = vmatprep.subr.mxu0 0.0
        %3073 = vmatpush1.msra.mxu0 %v860
        %3074 = vmatprep.subr.mxu0 0.0
        %3075 = vmatpush1.msra.mxu0 0.0
        %3076 = vmatprep.subr.mxu0 0.0
        %3077 = vmatpush1.msra.mxu0 0.0
        %3078 = vmatprep.subr.mxu0 0.0
        %3079 = vmatpush1.msra.mxu0 0.0
        %3080 = vmatprep.subr.mxu0 0.0
        %3081 = vmatpush1.msra.mxu0 0.0
        %3082 = vmatprep.subr.mxu0 0.0
        %3083 = vmatpush1.msra.mxu0 0.0
        %3084 = vmatprep.subr.mxu0 0.0
        %3085 = vmatpush1.msra.mxu0 0.0
        %3086 = vmatprep.subr.mxu0 0.0
        %3087 = vmatpush1.msra.mxu0 0.0
        %3088 = vmatprep.subr.mxu0 0.0
        %3089 = vmatpush1.msra.mxu0 0.0
        %3090 = vmatprep.subr.mxu0 0.0
        %3091 = vmatpush1.msra.mxu0 0.0
        %3092 = vmatprep.subr.mxu0 0.0
        %3093 = vmatpush1.msra.mxu0 0.0
        %3094 = vmatprep.subr.mxu0 0.0
        %3095 = vmatpush1.msra.mxu0 0.0
        %3096 = vmatprep.subr.mxu0 0.0
        %3097 = vmatpush1.msra.mxu0 0.0
        %3098 = vmatprep.subr.mxu0 0.0
        %3099 = vmatpush1.msra.mxu0 0.0
        %3100 = vmatprep.subr.mxu0 0.0
        %3101 = vmatpush1.msra.mxu0 0.0
        %3102 = vmatprep.subr.mxu0 0.0
        %3103 = vmatpush1.msra.mxu0 0.0
        %3104 = vmatprep.subr.mxu0 0.0
        %3105 = vmatpush1.msra.mxu0 0.0
        %3106 = vmatprep.subr.mxu0 0.0
        %3107 = vmatpush1.msra.mxu0 0.0
        %3108 = vmatprep.subr.mxu0 0.0
        %3109 = vmatpush1.msra.mxu0 0.0
        %3110 = vmatprep.subr.mxu0 0.0
        %3111 = vmatpush1.msra.mxu0 0.0
        %3112 = vmatprep.subr.mxu0 0.0
        %3113 = vmatpush1.msra.mxu0 0.0
        %3114 = vmatprep.subr.mxu0 0.0
        %3115 = vmatpush1.msra.mxu0 0.0
        %3116 = vmatprep.subr.mxu0 0.0
        %3117 = vmatpush1.msra.mxu0 0.0
        %3118 = vmatprep.subr.mxu0 0.0
        %3119 = vmatpush1.msra.mxu0 0.0
        %3120 = vmatprep.subr.mxu0 0.0
        %3121 = vmatpush1.msra.mxu0 0.0
        %3122 = vmatprep.subr.mxu0 0.0
        %3123 = vmatpush1.msra.mxu0 0.0
        %3124 = vmatprep.subr.mxu0 0.0
        %3125 = vmatpush1.msra.mxu0 0.0
        %3126 = vmatprep.subr.mxu0 0.0
        %3127 = vmatpush1.msra.mxu0 0.0
        %3128 = vmatprep.subr.mxu0 0.0
        %3129 = vmatpush1.msra.mxu0 0.0
        %3130 = vmatprep.mubr.f32.mxu0 0.0
        %3131 = vmatmul.mubr.f32.gmra.mrb[0].mxu0 %v3019
        %v3132 = vpop.f32.mrb[0].mxu0
        %v3133 = vadd.f32 0.0, %v3132
        %v3134 = vpop.f32.mrb[0].mxu0
        %3135 = vmatprep.mubr.f32.mxu0 0.0
        %3136 = vmatmul.mubr.f32.gmra.mrb[0].mxu0 %v3022
        %v3137 = vpop.f32.mrb[0].mxu0
        %v3138 = vadd.f32 0.0, %v3137
        %v3139 = vpop.f32.mrb[0].mxu0
        %3140 = vmatprep.mubr.f32.mxu0 0.0
        %3141 = vmatmul.mubr.f32.gmra.mrb[0].mxu0 %v3025
        %v3142 = vpop.f32.mrb[0].mxu0
        %v3143 = vadd.f32 0.0, %v3142
        %v3144 = vpop.f32.mrb[0].mxu0
        %3145 = vmatprep.mubr.f32.mxu0 0.0
        %3146 = vmatmul.mubr.f32.gmra.mrb[0].mxu0 %v3028
        %v3147 = vpop.f32.mrb[0].mxu0
        %v3148 = vadd.f32 0.0, %v3147
        %v3149 = vpop.f32.mrb[0].mxu0
        %3150 = vmatprep.mubr.f32.mxu0 0.0
        %3151 = vmatmul.mubr.f32.gmra.mrb[0].mxu0 %v3031
        %v3152 = vpop.f32.mrb[0].mxu0
        %v3153 = vadd.f32 0.0, %v3152
        %v3154 = vpop.f32.mrb[0].mxu0
        %3155 = vmatprep.mubr.f32.mxu0 0.0
        %3156 = vmatmul.mubr.f32.gmra.mrb[0].mxu0 %v3034
        %v3157 = vpop.f32.mrb[0].mxu0
        %v3158 = vadd.f32 0.0, %v3157
        %v3159 = vpop.f32.mrb[0].mxu0
        %3160 = vmatprep.mubr.f32.mxu0 0.0
        %3161 = vmatmul.mubr.f32.gmra.mrb[0].mxu0 %v3037
        %v3162 = vpop.f32.mrb[0].mxu0
        %v3163 = vadd.f32 0.0, %v3162
        %v3164 = vpop.f32.mrb[0].mxu0
        %3165 = vmatprep.mubr.f32.mxu0 0.0
        %3166 = vmatmul.mubr.f32.gmra.mrb[0].mxu0 %v3040
        %v3167 = vpop.f32.mrb[0].mxu0
        %v3168 = vadd.f32 0.0, %v3167
        %v3169 = vpop.f32.mrb[0].mxu0
        %3170 = vmatprep.mubr.f32.mxu0 0.0
        %3171 = vmatmul.mubr.f32.gmra.mrb[0].mxu0 %v3043
        %v3172 = vpop.f32.mrb[0].mxu0
        %v3173 = vadd.f32 0.0, %v3172
        %v3174 = vpop.f32.mrb[0].mxu0
        %3175 = vmatprep.mubr.f32.mxu0 0.0
        %3176 = vmatmul.mubr.f32.gmra.mrb[0].mxu0 %v3046
        %v3177 = vpop.f32.mrb[0].mxu0
        %v3178 = vadd.f32 0.0, %v3177
        %v3179 = vpop.f32.mrb[0].mxu0
        %3180 = vmatprep.mubr.f32.mxu0 0.0
        %3181 = vmatmul.mubr.f32.gmra.mrb[0].mxu0 %v3049
        %v3182 = vpop.f32.mrb[0].mxu0
        %v3183 = vadd.f32 0.0, %v3182
        %v3184 = vpop.f32.mrb[0].mxu0
        %3185 = vmatprep.mubr.f32.mxu0 0.0
        %3186 = vmatmul.mubr.f32.gmra.mrb[0].mxu0 %v3052
        %v3187 = vpop.f32.mrb[0].mxu0
        %v3188 = vadd.f32 0.0, %v3187
        %v3189 = vpop.f32.mrb[0].mxu0
        %3190 = vmatprep.mubr.f32.mxu0 0.0
        %3191 = vmatmul.mubr.f32.gmra.mrb[0].mxu0 %v3055
        %v3192 = vpop.f32.mrb[0].mxu0
        %v3193 = vadd.f32 0.0, %v3192
        %v3194 = vpop.f32.mrb[0].mxu0
        %3195 = vmatprep.mubr.f32.mxu0 0.0
        %3196 = vmatmul.mubr.f32.gmra.mrb[0].mxu0 %v3058
        %v3197 = vpop.f32.mrb[0].mxu0
        %v3198 = vadd.f32 0.0, %v3197
        %v3199 = vpop.f32.mrb[0].mxu0
        %3200 = vmatprep.mubr.f32.mxu0 0.0
        %3201 = vmatmul.mubr.f32.gmra.mrb[0].mxu0 %v3061
        %v3202 = vpop.f32.mrb[0].mxu0
        %v3203 = vadd.f32 0.0, %v3202
        %v3204 = vpop.f32.mrb[0].mxu0
        %3205 = vmatprep.mubr.f32.mxu0 0.0
        %3206 = vmatmul.mubr.f32.gmra.mrb[0].mxu0 %v3064
        %v3207 = vpop.f32.mrb[0].mxu0
        %v3208 = vadd.f32 0.0, %v3207
        %v3209 = vpop.f32.mrb[0].mxu0
        %3210 = vdwg.mxu0
        %v3211 = vadd.f32 %v2330, %v3133
        %v3212 = vadd.f32 %v2335, %v3138
        %v3213 = vadd.f32 %v2340, %v3143
        %v3214 = vadd.f32 %v2345, %v3148
        %v3215 = vadd.f32 %v2350, %v3153
        %v3216 = vadd.f32 %v2355, %v3158
        %v3217 = vadd.f32 %v2360, %v3163
        %v3218 = vadd.f32 %v2365, %v3168
        %v3219 = vadd.f32 %v2370, %v3173
        %v3220 = vadd.f32 %v2375, %v3178
        %v3221 = vadd.f32 %v2380, %v3183
        %v3222 = vadd.f32 %v2385, %v3188
        %v3223 = vadd.f32 %v2390, %v3193
        %v3224 = vadd.f32 %v2395, %v3198
        %v3225 = vadd.f32 %v2400, %v3203
        %v3226 = vadd.f32 %v2405, %v3208
        %3227 = vrot.lane.b32.xlu0 %v833, 32
        %v3228 = vpop.permute.xlu0 %3227
        %3229 = vrot.lane.b32.xlu0 %v834, 32
        %v3230 = vpop.permute.xlu0 %3229
        %3231 = vrot.lane.b32.xlu0 %v835, 32
        %v3232 = vpop.permute.xlu0 %3231
        %3233 = vrot.lane.b32.xlu0 %v836, 32
        %v3234 = vpop.permute.xlu0 %3233
        %3235 = vrot.lane.b32.xlu0 %v837, 32
        %v3236 = vpop.permute.xlu0 %3235
        %3237 = vrot.lane.b32.xlu0 %v838, 32
        %v3238 = vpop.permute.xlu0 %3237
        %3239 = vrot.lane.b32.xlu0 %v839, 32
        %v3240 = vpop.permute.xlu0 %3239
        %3241 = vrot.lane.b32.xlu0 %v840, 32
        %v3242 = vpop.permute.xlu0 %3241
        %3243 = vrot.lane.b32.xlu0 %v841, 32
        %v3244 = vpop.permute.xlu0 %3243
        %3245 = vrot.lane.b32.xlu0 %v842, 32
        %v3246 = vpop.permute.xlu0 %3245
        %3247 = vrot.lane.b32.xlu0 %v843, 32
        %v3248 = vpop.permute.xlu0 %3247
        %3249 = vrot.lane.b32.xlu0 %v844, 32
        %v3250 = vpop.permute.xlu0 %3249
        %3251 = vrot.lane.b32.xlu0 %v845, 32
        %v3252 = vpop.permute.xlu0 %3251
        %3253 = vrot.lane.b32.xlu0 %v846, 32
        %v3254 = vpop.permute.xlu0 %3253
        %3255 = vrot.lane.b32.xlu0 %v847, 32
        %v3256 = vpop.permute.xlu0 %3255
        %3257 = vrot.lane.b32.xlu0 %v848, 32
        %v3258 = vpop.permute.xlu0 %3257
        %3259 = vrot.lane.b32.xlu0 %v596, 32
        %v3260 = vpop.permute.xlu0 %3259
        %3261 = vrot.lane.b32.xlu0 %v602, 32
        %v3262 = vpop.permute.xlu0 %3261
        %3263 = vrot.lane.b32.xlu0 %v608, 32
        %v3264 = vpop.permute.xlu0 %3263
        %3265 = vrot.lane.b32.xlu0 %v614, 32
        %v3266 = vpop.permute.xlu0 %3265
        %3267 = vrot.lane.b32.xlu0 %v620, 32
        %v3268 = vpop.permute.xlu0 %3267
        %3269 = vrot.lane.b32.xlu0 %v626, 32
        %v3270 = vpop.permute.xlu0 %3269
        %3271 = vrot.lane.b32.xlu0 %v632, 32
        %v3272 = vpop.permute.xlu0 %3271
        %3273 = vrot.lane.b32.xlu0 %v638, 32
        %v3274 = vpop.permute.xlu0 %3273
        %3275 = vrot.lane.b32.xlu0 %v644, 32
        %v3276 = vpop.permute.xlu0 %3275
        %3277 = vrot.lane.b32.xlu0 %v650, 32
        %v3278 = vpop.permute.xlu0 %3277
        %3279 = vrot.lane.b32.xlu0 %v656, 32
        %v3280 = vpop.permute.xlu0 %3279
        %3281 = vrot.lane.b32.xlu0 %v662, 32
        %v3282 = vpop.permute.xlu0 %3281
        %3283 = vrot.lane.b32.xlu0 %v668, 32
        %v3284 = vpop.permute.xlu0 %3283
        %3285 = vrot.lane.b32.xlu0 %v674, 32
        %v3286 = vpop.permute.xlu0 %3285
        %3287 = vrot.lane.b32.xlu0 %v680, 32
        %v3288 = vpop.permute.xlu0 %3287
        %3289 = vrot.lane.b32.xlu0 %v686, 32
        %v3290 = vpop.permute.xlu0 %3289
        %v3291 = vsel %vm865, %v3228, 0
        %v3293 = vsel %vm865, %v3230, 0
        %v3295 = vsel %vm865, %v3232, 0
        %v3297 = vsel %vm865, %v3234, 0
        %v3299 = vsel %vm865, %v3236, 0
        %v3301 = vsel %vm865, %v3238, 0
        %v3303 = vsel %vm865, %v3240, 0
        %v3305 = vsel %vm865, %v3242, 0
        %v3307 = vsel %vm865, %v3244, 0
        %v3309 = vsel %vm865, %v3246, 0
        %v3311 = vsel %vm865, %v3248, 0
        %v3313 = vsel %vm865, %v3250, 0
        %v3315 = vsel %vm865, %v3252, 0
        %v3317 = vsel %vm865, %v3254, 0
        %v3319 = vsel %vm865, %v3256, 0
        %v3321 = vsel %vm865, %v3258, 0
        %v3323 = vsel %vm865, %v3260, 0
        %v3325 = vsel %vm865, %v3262, 0
        %v3327 = vsel %vm865, %v3264, 0
        %v3329 = vsel %vm865, %v3266, 0
        %v3331 = vsel %vm865, %v3268, 0
        %v3333 = vsel %vm865, %v3270, 0
        %v3335 = vsel %vm865, %v3272, 0
        %v3337 = vsel %vm865, %v3274, 0
        %v3339 = vsel %vm865, %v3276, 0
        %v3341 = vsel %vm865, %v3278, 0
        %v3343 = vsel %vm865, %v3280, 0
        %v3345 = vsel %vm865, %v3282, 0
        %v3347 = vsel %vm865, %v3284, 0
        %v3349 = vsel %vm865, %v3286, 0
        %v3351 = vsel %vm865, %v3288, 0
        %v3353 = vsel %vm865, %v3290, 0
        %3355 = vmatprep.subr.mxu0 0.0
        %3356 = vmatpush1.xpose.msra.mxu0 %v3323
        %3357 = vmatprep.subr.mxu0 0.0
        %3358 = vmatpush1.xpose.msra.mxu0 %v3325
        %3359 = vmatprep.subr.mxu0 0.0
        %3360 = vmatpush1.xpose.msra.mxu0 %v3327
        %3361 = vmatprep.subr.mxu0 0.0
        %3362 = vmatpush1.xpose.msra.mxu0 %v3329
        %3363 = vmatprep.subr.mxu0 0.0
        %3364 = vmatpush1.xpose.msra.mxu0 %v3331
        %3365 = vmatprep.subr.mxu0 0.0
        %3366 = vmatpush1.xpose.msra.mxu0 %v3333
        %3367 = vmatprep.subr.mxu0 0.0
        %3368 = vmatpush1.xpose.msra.mxu0 %v3335
        %3369 = vmatprep.subr.mxu0 0.0
        %3370 = vmatpush1.xpose.msra.mxu0 %v3337
        %3371 = vmatprep.subr.mxu0 0.0
        %3372 = vmatpush1.xpose.msra.mxu0 %v3339
        %3373 = vmatprep.subr.mxu0 0.0
        %3374 = vmatpush1.xpose.msra.mxu0 %v3341
        %3375 = vmatprep.subr.mxu0 0.0
        %3376 = vmatpush1.xpose.msra.mxu0 %v3343
        %3377 = vmatprep.subr.mxu0 0.0
        %3378 = vmatpush1.xpose.msra.mxu0 %v3345
        %3379 = vmatprep.subr.mxu0 0.0
        %3380 = vmatpush1.xpose.msra.mxu0 %v3347
        %3381 = vmatprep.subr.mxu0 0.0
        %3382 = vmatpush1.xpose.msra.mxu0 %v3349
        %3383 = vmatprep.subr.mxu0 0.0
        %3384 = vmatpush1.xpose.msra.mxu0 %v3351
        %3385 = vmatprep.subr.mxu0 0.0
        %3386 = vmatpush1.xpose.msra.mxu0 %v3353
        %3387 = vmatprep.subr.mxu0 0.0
        %3388 = vmatpush1.xpose.msra.mxu0 0.0
        %3389 = vmatprep.subr.mxu0 0.0
        %3390 = vmatpush1.xpose.msra.mxu0 0.0
        %3391 = vmatprep.subr.mxu0 0.0
        %3392 = vmatpush1.xpose.msra.mxu0 0.0
        %3393 = vmatprep.subr.mxu0 0.0
        %3394 = vmatpush1.xpose.msra.mxu0 0.0
        %3395 = vmatprep.subr.mxu0 0.0
        %3396 = vmatpush1.xpose.msra.mxu0 0.0
        %3397 = vmatprep.subr.mxu0 0.0
        %3398 = vmatpush1.xpose.msra.mxu0 0.0
        %3399 = vmatprep.subr.mxu0 0.0
        %3400 = vmatpush1.xpose.msra.mxu0 0.0
        %3401 = vmatprep.subr.mxu0 0.0
        %3402 = vmatpush1.xpose.msra.mxu0 0.0
        %3403 = vmatprep.subr.mxu0 0.0
        %3404 = vmatpush1.xpose.msra.mxu0 0.0
        %3405 = vmatprep.subr.mxu0 0.0
        %3406 = vmatpush1.xpose.msra.mxu0 0.0
        %3407 = vmatprep.subr.mxu0 0.0
        %3408 = vmatpush1.xpose.msra.mxu0 0.0
        %3409 = vmatprep.subr.mxu0 0.0
        %3410 = vmatpush1.xpose.msra.mxu0 0.0
        %3411 = vmatprep.subr.mxu0 0.0
        %3412 = vmatpush1.xpose.msra.mxu0 0.0
        %3413 = vmatprep.subr.mxu0 0.0
        %3414 = vmatpush1.xpose.msra.mxu0 0.0
        %3415 = vmatprep.subr.mxu0 0.0
        %3416 = vmatpush1.xpose.msra.mxu0 0.0
        %3417 = vmatprep.subr.mxu0 0.0
        %3418 = vmatpush1.xpose.msra.mxu0 0.0
        %3419 = vmatprep.mubr.f32.mxu0 0.0
        %3420 = vmatmul.mubr.f32.gmra.mrb[0].mxu0 %v3291
        %v3421 = vpop.f32.mrb[0].mxu0
        %v3422 = vadd.f32 0.0, %v3421
        %v3423 = vpop.f32.mrb[0].mxu0
        %3424 = vmatprep.mubr.f32.mxu0 0.0
        %3425 = vmatmul.mubr.f32.gmra.mrb[0].mxu0 %v3293
        %v3426 = vpop.f32.mrb[0].mxu0
        %v3427 = vadd.f32 0.0, %v3426
        %v3428 = vpop.f32.mrb[0].mxu0
        %3429 = vmatprep.mubr.f32.mxu0 0.0
        %3430 = vmatmul.mubr.f32.gmra.mrb[0].mxu0 %v3295
        %v3431 = vpop.f32.mrb[0].mxu0
        %v3432 = vadd.f32 0.0, %v3431
        %v3433 = vpop.f32.mrb[0].mxu0
        %3434 = vmatprep.mubr.f32.mxu0 0.0
        %3435 = vmatmul.mubr.f32.gmra.mrb[0].mxu0 %v3297
        %v3436 = vpop.f32.mrb[0].mxu0
        %v3437 = vadd.f32 0.0, %v3436
        %v3438 = vpop.f32.mrb[0].mxu0
        %3439 = vmatprep.mubr.f32.mxu0 0.0
        %3440 = vmatmul.mubr.f32.gmra.mrb[0].mxu0 %v3299
        %v3441 = vpop.f32.mrb[0].mxu0
        %v3442 = vadd.f32 0.0, %v3441
        %v3443 = vpop.f32.mrb[0].mxu0
        %3444 = vmatprep.mubr.f32.mxu0 0.0
        %3445 = vmatmul.mubr.f32.gmra.mrb[0].mxu0 %v3301
        %v3446 = vpop.f32.mrb[0].mxu0
        %v3447 = vadd.f32 0.0, %v3446
        %v3448 = vpop.f32.mrb[0].mxu0
        %3449 = vmatprep.mubr.f32.mxu0 0.0
        %3450 = vmatmul.mubr.f32.gmra.mrb[0].mxu0 %v3303
        %v3451 = vpop.f32.mrb[0].mxu0
        %v3452 = vadd.f32 0.0, %v3451
        %v3453 = vpop.f32.mrb[0].mxu0
        %3454 = vmatprep.mubr.f32.mxu0 0.0
        %3455 = vmatmul.mubr.f32.gmra.mrb[0].mxu0 %v3305
        %v3456 = vpop.f32.mrb[0].mxu0
        %v3457 = vadd.f32 0.0, %v3456
        %v3458 = vpop.f32.mrb[0].mxu0
        %3459 = vmatprep.mubr.f32.mxu0 0.0
        %3460 = vmatmul.mubr.f32.gmra.mrb[0].mxu0 %v3307
        %v3461 = vpop.f32.mrb[0].mxu0
        %v3462 = vadd.f32 0.0, %v3461
        %v3463 = vpop.f32.mrb[0].mxu0
        %3464 = vmatprep.mubr.f32.mxu0 0.0
        %3465 = vmatmul.mubr.f32.gmra.mrb[0].mxu0 %v3309
        %v3466 = vpop.f32.mrb[0].mxu0
        %v3467 = vadd.f32 0.0, %v3466
        %v3468 = vpop.f32.mrb[0].mxu0
        %3469 = vmatprep.mubr.f32.mxu0 0.0
        %3470 = vmatmul.mubr.f32.gmra.mrb[0].mxu0 %v3311
        %v3471 = vpop.f32.mrb[0].mxu0
        %v3472 = vadd.f32 0.0, %v3471
        %v3473 = vpop.f32.mrb[0].mxu0
        %3474 = vmatprep.mubr.f32.mxu0 0.0
        %3475 = vmatmul.mubr.f32.gmra.mrb[0].mxu0 %v3313
        %v3476 = vpop.f32.mrb[0].mxu0
        %v3477 = vadd.f32 0.0, %v3476
        %v3478 = vpop.f32.mrb[0].mxu0
        %3479 = vmatprep.mubr.f32.mxu0 0.0
        %3480 = vmatmul.mubr.f32.gmra.mrb[0].mxu0 %v3315
        %v3481 = vpop.f32.mrb[0].mxu0
        %v3482 = vadd.f32 0.0, %v3481
        %v3483 = vpop.f32.mrb[0].mxu0
        %3484 = vmatprep.mubr.f32.mxu0 0.0
        %3485 = vmatmul.mubr.f32.gmra.mrb[0].mxu0 %v3317
        %v3486 = vpop.f32.mrb[0].mxu0
        %v3487 = vadd.f32 0.0, %v3486
        %v3488 = vpop.f32.mrb[0].mxu0
        %3489 = vmatprep.mubr.f32.mxu0 0.0
        %3490 = vmatmul.mubr.f32.gmra.mrb[0].mxu0 %v3319
        %v3491 = vpop.f32.mrb[0].mxu0
        %v3492 = vadd.f32 0.0, %v3491
        %v3493 = vpop.f32.mrb[0].mxu0
        %3494 = vmatprep.mubr.f32.mxu0 0.0
        %3495 = vmatmul.mubr.f32.gmra.mrb[0].mxu0 %v3321
        %v3496 = vpop.f32.mrb[0].mxu0
        %v3497 = vadd.f32 0.0, %v3496
        %v3498 = vpop.f32.mrb[0].mxu0
        %3499 = vdwg.mxu0
        %3500 = vmax.xlane.f32.xlu0 %v3422
        %v3501 = vpop.xlane.xlu0 %3500
        %3502 = vmax.xlane.f32.xlu0 %v3427
        %v3503 = vpop.xlane.xlu0 %3502
        %3504 = vmax.xlane.f32.xlu0 %v3432
        %v3505 = vpop.xlane.xlu0 %3504
        %3506 = vmax.xlane.f32.xlu0 %v3437
        %v3507 = vpop.xlane.xlu0 %3506
        %3508 = vmax.xlane.f32.xlu0 %v3442
        %v3509 = vpop.xlane.xlu0 %3508
        %3510 = vmax.xlane.f32.xlu0 %v3447
        %v3511 = vpop.xlane.xlu0 %3510
        %3512 = vmax.xlane.f32.xlu0 %v3452
        %v3513 = vpop.xlane.xlu0 %3512
        %3514 = vmax.xlane.f32.xlu0 %v3457
        %v3515 = vpop.xlane.xlu0 %3514
        %3516 = vmax.xlane.f32.xlu0 %v3462
        %v3517 = vpop.xlane.xlu0 %3516
        %3518 = vmax.xlane.f32.xlu0 %v3467
        %v3519 = vpop.xlane.xlu0 %3518
        %3520 = vmax.xlane.f32.xlu0 %v3472
        %v3521 = vpop.xlane.xlu0 %3520
        %3522 = vmax.xlane.f32.xlu0 %v3477
        %v3523 = vpop.xlane.xlu0 %3522
        %3524 = vmax.xlane.f32.xlu0 %v3482
        %v3525 = vpop.xlane.xlu0 %3524
        %3526 = vmax.xlane.f32.xlu0 %v3487
        %v3527 = vpop.xlane.xlu0 %3526
        %3528 = vmax.xlane.f32.xlu0 %v3492
        %v3529 = vpop.xlane.xlu0 %3528
        %3530 = vmax.xlane.f32.xlu0 %v3497
        %v3531 = vpop.xlane.xlu0 %3530
        %v3532 = vsub.f32 %v3422, %v3501
        %v3533 = vsub.f32 %v3427, %v3503
        %v3534 = vsub.f32 %v3432, %v3505
        %v3535 = vsub.f32 %v3437, %v3507
        %v3536 = vsub.f32 %v3442, %v3509
        %v3537 = vsub.f32 %v3447, %v3511
        %v3538 = vsub.f32 %v3452, %v3513
        %v3539 = vsub.f32 %v3457, %v3515
        %v3540 = vsub.f32 %v3462, %v3517
        %v3541 = vsub.f32 %v3467, %v3519
        %v3542 = vsub.f32 %v3472, %v3521
        %v3543 = vsub.f32 %v3477, %v3523
        %v3544 = vsub.f32 %v3482, %v3525
        %v3545 = vsub.f32 %v3487, %v3527
        %v3546 = vsub.f32 %v3492, %v3529
        %v3547 = vsub.f32 %v3497, %v3531
        %v3548 = vmul.f32 %v3532, 1.442695
        %v3549 = vpow.pop %v3548
        %v3550 = vmul.f32 %v3533, 1.442695
        %v3551 = vpow.pop %v3550
        %v3552 = vmul.f32 %v3534, 1.442695
        %v3553 = vpow.pop %v3552
        %v3554 = vmul.f32 %v3535, 1.442695
        %v3555 = vpow.pop %v3554
        %v3556 = vmul.f32 %v3536, 1.442695
        %v3557 = vpow.pop %v3556
        %v3558 = vmul.f32 %v3537, 1.442695
        %v3559 = vpow.pop %v3558
        %v3560 = vmul.f32 %v3538, 1.442695
        %v3561 = vpow.pop %v3560
        %v3562 = vmul.f32 %v3539, 1.442695
        %v3563 = vpow.pop %v3562
        %v3564 = vmul.f32 %v3540, 1.442695
        %v3565 = vpow.pop %v3564
        %v3566 = vmul.f32 %v3541, 1.442695
        %v3567 = vpow.pop %v3566
        %v3568 = vmul.f32 %v3542, 1.442695
        %v3569 = vpow.pop %v3568
        %v3570 = vmul.f32 %v3543, 1.442695
        %v3571 = vpow.pop %v3570
        %v3572 = vmul.f32 %v3544, 1.442695
        %v3573 = vpow.pop %v3572
        %v3574 = vmul.f32 %v3545, 1.442695
        %v3575 = vpow.pop %v3574
        %v3576 = vmul.f32 %v3546, 1.442695
        %v3577 = vpow.pop %v3576
        %v3578 = vmul.f32 %v3547, 1.442695
        %v3579 = vpow.pop %v3578
        %3580 = vadd.xlane.f32.xlu0 %v3549
        %v3581 = vpop.xlane.xlu0 %3580
        %3582 = vadd.xlane.f32.xlu0 %v3551
        %v3583 = vpop.xlane.xlu0 %3582
        %3584 = vadd.xlane.f32.xlu0 %v3553
        %v3585 = vpop.xlane.xlu0 %3584
        %3586 = vadd.xlane.f32.xlu0 %v3555
        %v3587 = vpop.xlane.xlu0 %3586
        %3588 = vadd.xlane.f32.xlu0 %v3557
        %v3589 = vpop.xlane.xlu0 %3588
        %3590 = vadd.xlane.f32.xlu0 %v3559
        %v3591 = vpop.xlane.xlu0 %3590
        %3592 = vadd.xlane.f32.xlu0 %v3561
        %v3593 = vpop.xlane.xlu0 %3592
        %3594 = vadd.xlane.f32.xlu0 %v3563
        %v3595 = vpop.xlane.xlu0 %3594
        %3596 = vadd.xlane.f32.xlu0 %v3565
        %v3597 = vpop.xlane.xlu0 %3596
        %3598 = vadd.xlane.f32.xlu0 %v3567
        %v3599 = vpop.xlane.xlu0 %3598
        %3600 = vadd.xlane.f32.xlu0 %v3569
        %v3601 = vpop.xlane.xlu0 %3600
        %3602 = vadd.xlane.f32.xlu0 %v3571
        %v3603 = vpop.xlane.xlu0 %3602
        %3604 = vadd.xlane.f32.xlu0 %v3573
        %v3605 = vpop.xlane.xlu0 %3604
        %3606 = vadd.xlane.f32.xlu0 %v3575
        %v3607 = vpop.xlane.xlu0 %3606
        %3608 = vadd.xlane.f32.xlu0 %v3577
        %v3609 = vpop.xlane.xlu0 %3608
        %3610 = vadd.xlane.f32.xlu0 %v3579
        %v3611 = vpop.xlane.xlu0 %3610
        %v3612 = vrcp.pop %v3581
        %v3613 = vrcp.pop %v3583
        %v3614 = vrcp.pop %v3585
        %v3615 = vrcp.pop %v3587
        %v3616 = vrcp.pop %v3589
        %v3617 = vrcp.pop %v3591
        %v3618 = vrcp.pop %v3593
        %v3619 = vrcp.pop %v3595
        %v3620 = vrcp.pop %v3597
        %v3621 = vrcp.pop %v3599
        %v3622 = vrcp.pop %v3601
        %v3623 = vrcp.pop %v3603
        %v3624 = vrcp.pop %v3605
        %v3625 = vrcp.pop %v3607
        %v3626 = vrcp.pop %v3609
        %v3627 = vrcp.pop %v3611
        %v3628 = vmul.f32 %v3549, %v3612
        %v3629 = vmul.f32 %v3551, %v3613
        %v3630 = vmul.f32 %v3553, %v3614
        %v3631 = vmul.f32 %v3555, %v3615
        %v3632 = vmul.f32 %v3557, %v3616
        %v3633 = vmul.f32 %v3559, %v3617
        %v3634 = vmul.f32 %v3561, %v3618
        %v3635 = vmul.f32 %v3563, %v3619
        %v3636 = vmul.f32 %v3565, %v3620
        %v3637 = vmul.f32 %v3567, %v3621
        %v3638 = vmul.f32 %v3569, %v3622
        %v3639 = vmul.f32 %v3571, %v3623
        %v3640 = vmul.f32 %v3573, %v3624
        %v3641 = vmul.f32 %v3575, %v3625
        %v3642 = vmul.f32 %v3577, %v3626
        %v3643 = vmul.f32 %v3579, %v3627
        %3644 = vrot.lane.b32.xlu0 %v755, 32
        %v3645 = vpop.permute.xlu0 %3644
        %3646 = vrot.lane.b32.xlu0 %v760, 32
        %v3647 = vpop.permute.xlu0 %3646
        %3648 = vrot.lane.b32.xlu0 %v765, 32
        %v3649 = vpop.permute.xlu0 %3648
        %3650 = vrot.lane.b32.xlu0 %v770, 32
        %v3651 = vpop.permute.xlu0 %3650
        %3652 = vrot.lane.b32.xlu0 %v775, 32
        %v3653 = vpop.permute.xlu0 %3652
        %3654 = vrot.lane.b32.xlu0 %v780, 32
        %v3655 = vpop.permute.xlu0 %3654
        %3656 = vrot.lane.b32.xlu0 %v785, 32
        %v3657 = vpop.permute.xlu0 %3656
        %3658 = vrot.lane.b32.xlu0 %v790, 32
        %v3659 = vpop.permute.xlu0 %3658
        %3660 = vrot.lane.b32.xlu0 %v795, 32
        %v3661 = vpop.permute.xlu0 %3660
        %3662 = vrot.lane.b32.xlu0 %v800, 32
        %v3663 = vpop.permute.xlu0 %3662
        %3664 = vrot.lane.b32.xlu0 %v805, 32
        %v3665 = vpop.permute.xlu0 %3664
        %3666 = vrot.lane.b32.xlu0 %v810, 32
        %v3667 = vpop.permute.xlu0 %3666
        %3668 = vrot.lane.b32.xlu0 %v815, 32
        %v3669 = vpop.permute.xlu0 %3668
        %3670 = vrot.lane.b32.xlu0 %v820, 32
        %v3671 = vpop.permute.xlu0 %3670
        %3672 = vrot.lane.b32.xlu0 %v825, 32
        %v3673 = vpop.permute.xlu0 %3672
        %3674 = vrot.lane.b32.xlu0 %v830, 32
        %v3675 = vpop.permute.xlu0 %3674
        %3692 = vmatprep.subr.mxu0 0.0
        %3693 = vmatpush1.msra.mxu0 %v3645
        %3694 = vmatprep.subr.mxu0 0.0
        %3695 = vmatpush1.msra.mxu0 %v3647
        %3696 = vmatprep.subr.mxu0 0.0
        %3697 = vmatpush1.msra.mxu0 %v3649
        %3698 = vmatprep.subr.mxu0 0.0
        %3699 = vmatpush1.msra.mxu0 %v3651
        %3700 = vmatprep.subr.mxu0 0.0
        %3701 = vmatpush1.msra.mxu0 %v3653
        %3702 = vmatprep.subr.mxu0 0.0
        %3703 = vmatpush1.msra.mxu0 %v3655
        %3704 = vmatprep.subr.mxu0 0.0
        %3705 = vmatpush1.msra.mxu0 %v3657
        %3706 = vmatprep.subr.mxu0 0.0
        %3707 = vmatpush1.msra.mxu0 %v3659
        %3708 = vmatprep.subr.mxu0 0.0
        %3709 = vmatpush1.msra.mxu0 %v3661
        %3710 = vmatprep.subr.mxu0 0.0
        %3711 = vmatpush1.msra.mxu0 %v3663
        %3712 = vmatprep.subr.mxu0 0.0
        %3713 = vmatpush1.msra.mxu0 %v3665
        %3714 = vmatprep.subr.mxu0 0.0
        %3715 = vmatpush1.msra.mxu0 %v3667
        %3716 = vmatprep.subr.mxu0 0.0
        %3717 = vmatpush1.msra.mxu0 %v3669
        %3718 = vmatprep.subr.mxu0 0.0
        %3719 = vmatpush1.msra.mxu0 %v3671
        %3720 = vmatprep.subr.mxu0 0.0
        %3721 = vmatpush1.msra.mxu0 %v3673
        %3722 = vmatprep.subr.mxu0 0.0
        %3723 = vmatpush1.msra.mxu0 %v3675
        %3724 = vmatprep.subr.mxu0 0.0
        %3725 = vmatpush1.msra.mxu0 0.0
        %3726 = vmatprep.subr.mxu0 0.0
        %3727 = vmatpush1.msra.mxu0 0.0
        %3728 = vmatprep.subr.mxu0 0.0
        %3729 = vmatpush1.msra.mxu0 0.0
        %3730 = vmatprep.subr.mxu0 0.0
        %3731 = vmatpush1.msra.mxu0 0.0
        %3732 = vmatprep.subr.mxu0 0.0
        %3733 = vmatpush1.msra.mxu0 0.0
        %3734 = vmatprep.subr.mxu0 0.0
        %3735 = vmatpush1.msra.mxu0 0.0
        %3736 = vmatprep.subr.mxu0 0.0
        %3737 = vmatpush1.msra.mxu0 0.0
        %3738 = vmatprep.subr.mxu0 0.0
        %3739 = vmatpush1.msra.mxu0 0.0
        %3740 = vmatprep.subr.mxu0 0.0
        %3741 = vmatpush1.msra.mxu0 0.0
        %3742 = vmatprep.subr.mxu0 0.0
        %3743 = vmatpush1.msra.mxu0 0.0
        %3744 = vmatprep.subr.mxu0 0.0
        %3745 = vmatpush1.msra.mxu0 0.0
        %3746 = vmatprep.subr.mxu0 0.0
        %3747 = vmatpush1.msra.mxu0 0.0
        %3748 = vmatprep.subr.mxu0 0.0
        %3749 = vmatpush1.msra.mxu0 0.0
        %3750 = vmatprep.subr.mxu0 0.0
        %3751 = vmatpush1.msra.mxu0 0.0
        %3752 = vmatprep.subr.mxu0 0.0
        %3753 = vmatpush1.msra.mxu0 0.0
        %3754 = vmatprep.subr.mxu0 0.0
        %3755 = vmatpush1.msra.mxu0 0.0
        %3756 = vmatprep.mubr.f32.mxu0 0.0
        %3757 = vmatmul.mubr.f32.gmra.mrb[0].mxu0 %v3628
        %v3758 = vpop.f32.mrb[0].mxu0
        %v3759 = vadd.f32 0.0, %v3758
        %v3760 = vpop.f32.mrb[0].mxu0
        %3761 = vmatprep.mubr.f32.mxu0 0.0
        %3762 = vmatmul.mubr.f32.gmra.mrb[0].mxu0 %v3629
        %v3763 = vpop.f32.mrb[0].mxu0
        %v3764 = vadd.f32 0.0, %v3763
        %v3765 = vpop.f32.mrb[0].mxu0
        %3766 = vmatprep.mubr.f32.mxu0 0.0
        %3767 = vmatmul.mubr.f32.gmra.mrb[0].mxu0 %v3630
        %v3768 = vpop.f32.mrb[0].mxu0
        %v3769 = vadd.f32 0.0, %v3768
        %v3770 = vpop.f32.mrb[0].mxu0
        %3771 = vmatprep.mubr.f32.mxu0 0.0
        %3772 = vmatmul.mubr.f32.gmra.mrb[0].mxu0 %v3631
        %v3773 = vpop.f32.mrb[0].mxu0
        %v3774 = vadd.f32 0.0, %v3773
        %v3775 = vpop.f32.mrb[0].mxu0
        %3776 = vmatprep.mubr.f32.mxu0 0.0
        %3777 = vmatmul.mubr.f32.gmra.mrb[0].mxu0 %v3632
        %v3778 = vpop.f32.mrb[0].mxu0
        %v3779 = vadd.f32 0.0, %v3778
        %v3780 = vpop.f32.mrb[0].mxu0
        %3781 = vmatprep.mubr.f32.mxu0 0.0
        %3782 = vmatmul.mubr.f32.gmra.mrb[0].mxu0 %v3633
        %v3783 = vpop.f32.mrb[0].mxu0
        %v3784 = vadd.f32 0.0, %v3783
        %v3785 = vpop.f32.mrb[0].mxu0
        %3786 = vmatprep.mubr.f32.mxu0 0.0
        %3787 = vmatmul.mubr.f32.gmra.mrb[0].mxu0 %v3634
        %v3788 = vpop.f32.mrb[0].mxu0
        %v3789 = vadd.f32 0.0, %v3788
        %v3790 = vpop.f32.mrb[0].mxu0
        %3791 = vmatprep.mubr.f32.mxu0 0.0
        %3792 = vmatmul.mubr.f32.gmra.mrb[0].mxu0 %v3635
        %v3793 = vpop.f32.mrb[0].mxu0
        %v3794 = vadd.f32 0.0, %v3793
        %v3795 = vpop.f32.mrb[0].mxu0
        %3796 = vmatprep.mubr.f32.mxu0 0.0
        %3797 = vmatmul.mubr.f32.gmra.mrb[0].mxu0 %v3636
        %v3798 = vpop.f32.mrb[0].mxu0
        %v3799 = vadd.f32 0.0, %v3798
        %v3800 = vpop.f32.mrb[0].mxu0
        %3801 = vmatprep.mubr.f32.mxu0 0.0
        %3802 = vmatmul.mubr.f32.gmra.mrb[0].mxu0 %v3637
        %v3803 = vpop.f32.mrb[0].mxu0
        %v3804 = vadd.f32 0.0, %v3803
        %v3805 = vpop.f32.mrb[0].mxu0
        %3806 = vmatprep.mubr.f32.mxu0 0.0
        %3807 = vmatmul.mubr.f32.gmra.mrb[0].mxu0 %v3638
        %v3808 = vpop.f32.mrb[0].mxu0
        %v3809 = vadd.f32 0.0, %v3808
        %v3810 = vpop.f32.mrb[0].mxu0
        %3811 = vmatprep.mubr.f32.mxu0 0.0
        %3812 = vmatmul.mubr.f32.gmra.mrb[0].mxu0 %v3639
        %v3813 = vpop.f32.mrb[0].mxu0
        %v3814 = vadd.f32 0.0, %v3813
        %v3815 = vpop.f32.mrb[0].mxu0
        %3816 = vmatprep.mubr.f32.mxu0 0.0
        %3817 = vmatmul.mubr.f32.gmra.mrb[0].mxu0 %v3640
        %v3818 = vpop.f32.mrb[0].mxu0
        %v3819 = vadd.f32 0.0, %v3818
        %v3820 = vpop.f32.mrb[0].mxu0
        %3821 = vmatprep.mubr.f32.mxu0 0.0
        %3822 = vmatmul.mubr.f32.gmra.mrb[0].mxu0 %v3641
        %v3823 = vpop.f32.mrb[0].mxu0
        %v3824 = vadd.f32 0.0, %v3823
        %v3825 = vpop.f32.mrb[0].mxu0
        %3826 = vmatprep.mubr.f32.mxu0 0.0
        %3827 = vmatmul.mubr.f32.gmra.mrb[0].mxu0 %v3642
        %v3828 = vpop.f32.mrb[0].mxu0
        %v3829 = vadd.f32 0.0, %v3828
        %v3830 = vpop.f32.mrb[0].mxu0
        %3831 = vmatprep.mubr.f32.mxu0 0.0
        %3832 = vmatmul.mubr.f32.gmra.mrb[0].mxu0 %v3643
        %v3833 = vpop.f32.mrb[0].mxu0
        %v3834 = vadd.f32 0.0, %v3833
        %v3835 = vpop.f32.mrb[0].mxu0
        %3836 = vdwg.mxu0
        %v3838 = vsel %vm865, %v3759, 0
        %v3841 = vsel %vm865, %v3764, 0
        %v3844 = vsel %vm865, %v3769, 0
        %v3847 = vsel %vm865, %v3774, 0
        %v3850 = vsel %vm865, %v3779, 0
        %v3853 = vsel %vm865, %v3784, 0
        %v3856 = vsel %vm865, %v3789, 0
        %v3859 = vsel %vm865, %v3794, 0
        %v3862 = vsel %vm865, %v3799, 0
        %v3865 = vsel %vm865, %v3804, 0
        %v3868 = vsel %vm865, %v3809, 0
        %v3871 = vsel %vm865, %v3814, 0
        %v3874 = vsel %vm865, %v3819, 0
        %v3877 = vsel %vm865, %v3824, 0
        %v3880 = vsel %vm865, %v3829, 0
        %v3883 = vsel %vm865, %v3834, 0
        %3885 = vmatprep.subr.mxu0 0.0
        %3886 = vmatpush1.msra.mxu0 %v861
        %3887 = vmatprep.subr.mxu0 0.0
        %3888 = vmatpush1.msra.mxu0 %v862
        %3889 = vmatprep.subr.mxu0 0.0
        %3890 = vmatpush1.msra.mxu0 %v863
        %3891 = vmatprep.subr.mxu0 0.0
        %3892 = vmatpush1.msra.mxu0 %v864
        %3893 = vmatprep.subr.mxu0 0.0
        %3894 = vmatpush1.msra.mxu0 0.0
        %3895 = vmatprep.subr.mxu0 0.0
        %3896 = vmatpush1.msra.mxu0 0.0
        %3897 = vmatprep.subr.mxu0 0.0
        %3898 = vmatpush1.msra.mxu0 0.0
        %3899 = vmatprep.subr.mxu0 0.0
        %3900 = vmatpush1.msra.mxu0 0.0
        %3901 = vmatprep.subr.mxu0 0.0
        %3902 = vmatpush1.msra.mxu0 0.0
        %3903 = vmatprep.subr.mxu0 0.0
        %3904 = vmatpush1.msra.mxu0 0.0
        %3905 = vmatprep.subr.mxu0 0.0
        %3906 = vmatpush1.msra.mxu0 0.0
        %3907 = vmatprep.subr.mxu0 0.0
        %3908 = vmatpush1.msra.mxu0 0.0
        %3909 = vmatprep.subr.mxu0 0.0
        %3910 = vmatpush1.msra.mxu0 0.0
        %3911 = vmatprep.subr.mxu0 0.0
        %3912 = vmatpush1.msra.mxu0 0.0
        %3913 = vmatprep.subr.mxu0 0.0
        %3914 = vmatpush1.msra.mxu0 0.0
        %3915 = vmatprep.subr.mxu0 0.0
        %3916 = vmatpush1.msra.mxu0 0.0
        %3917 = vmatprep.subr.mxu0 0.0
        %3918 = vmatpush1.msra.mxu0 0.0
        %3919 = vmatprep.subr.mxu0 0.0
        %3920 = vmatpush1.msra.mxu0 0.0
        %3921 = vmatprep.subr.mxu0 0.0
        %3922 = vmatpush1.msra.mxu0 0.0
        %3923 = vmatprep.subr.mxu0 0.0
        %3924 = vmatpush1.msra.mxu0 0.0
        %3925 = vmatprep.subr.mxu0 0.0
        %3926 = vmatpush1.msra.mxu0 0.0
        %3927 = vmatprep.subr.mxu0 0.0
        %3928 = vmatpush1.msra.mxu0 0.0
        %3929 = vmatprep.subr.mxu0 0.0
        %3930 = vmatpush1.msra.mxu0 0.0
        %3931 = vmatprep.subr.mxu0 0.0
        %3932 = vmatpush1.msra.mxu0 0.0
        %3933 = vmatprep.subr.mxu0 0.0
        %3934 = vmatpush1.msra.mxu0 0.0
        %3935 = vmatprep.subr.mxu0 0.0
        %3936 = vmatpush1.msra.mxu0 0.0
        %3937 = vmatprep.subr.mxu0 0.0
        %3938 = vmatpush1.msra.mxu0 0.0
        %3939 = vmatprep.subr.mxu0 0.0
        %3940 = vmatpush1.msra.mxu0 0.0
        %3941 = vmatprep.subr.mxu0 0.0
        %3942 = vmatpush1.msra.mxu0 0.0
        %3943 = vmatprep.subr.mxu0 0.0
        %3944 = vmatpush1.msra.mxu0 0.0
        %3945 = vmatprep.subr.mxu0 0.0
        %3946 = vmatpush1.msra.mxu0 0.0
        %3947 = vmatprep.subr.mxu0 0.0
        %3948 = vmatpush1.msra.mxu0 0.0
        %3949 = vmatprep.mubr.f32.mxu0 0.0
        %3950 = vmatmul.mubr.f32.gmra.mrb[0].mxu0 %v3838
        %v3951 = vpop.f32.mrb[0].mxu0
        %v3952 = vadd.f32 0.0, %v3951
        %v3953 = vpop.f32.mrb[0].mxu0
        %3954 = vmatprep.mubr.f32.mxu0 0.0
        %3955 = vmatmul.mubr.f32.gmra.mrb[0].mxu0 %v3841
        %v3956 = vpop.f32.mrb[0].mxu0
        %v3957 = vadd.f32 0.0, %v3956
        %v3958 = vpop.f32.mrb[0].mxu0
        %3959 = vmatprep.mubr.f32.mxu0 0.0
        %3960 = vmatmul.mubr.f32.gmra.mrb[0].mxu0 %v3844
        %v3961 = vpop.f32.mrb[0].mxu0
        %v3962 = vadd.f32 0.0, %v3961
        %v3963 = vpop.f32.mrb[0].mxu0
        %3964 = vmatprep.mubr.f32.mxu0 0.0
        %3965 = vmatmul.mubr.f32.gmra.mrb[0].mxu0 %v3847
        %v3966 = vpop.f32.mrb[0].mxu0
        %v3967 = vadd.f32 0.0, %v3966
        %v3968 = vpop.f32.mrb[0].mxu0
        %3969 = vmatprep.mubr.f32.mxu0 0.0
        %3970 = vmatmul.mubr.f32.gmra.mrb[0].mxu0 %v3850
        %v3971 = vpop.f32.mrb[0].mxu0
        %v3972 = vadd.f32 0.0, %v3971
        %v3973 = vpop.f32.mrb[0].mxu0
        %3974 = vmatprep.mubr.f32.mxu0 0.0
        %3975 = vmatmul.mubr.f32.gmra.mrb[0].mxu0 %v3853
        %v3976 = vpop.f32.mrb[0].mxu0
        %v3977 = vadd.f32 0.0, %v3976
        %v3978 = vpop.f32.mrb[0].mxu0
        %3979 = vmatprep.mubr.f32.mxu0 0.0
        %3980 = vmatmul.mubr.f32.gmra.mrb[0].mxu0 %v3856
        %v3981 = vpop.f32.mrb[0].mxu0
        %v3982 = vadd.f32 0.0, %v3981
        %v3983 = vpop.f32.mrb[0].mxu0
        %3984 = vmatprep.mubr.f32.mxu0 0.0
        %3985 = vmatmul.mubr.f32.gmra.mrb[0].mxu0 %v3859
        %v3986 = vpop.f32.mrb[0].mxu0
        %v3987 = vadd.f32 0.0, %v3986
        %v3988 = vpop.f32.mrb[0].mxu0
        %3989 = vmatprep.mubr.f32.mxu0 0.0
        %3990 = vmatmul.mubr.f32.gmra.mrb[0].mxu0 %v3862
        %v3991 = vpop.f32.mrb[0].mxu0
        %v3992 = vadd.f32 0.0, %v3991
        %v3993 = vpop.f32.mrb[0].mxu0
        %3994 = vmatprep.mubr.f32.mxu0 0.0
        %3995 = vmatmul.mubr.f32.gmra.mrb[0].mxu0 %v3865
        %v3996 = vpop.f32.mrb[0].mxu0
        %v3997 = vadd.f32 0.0, %v3996
        %v3998 = vpop.f32.mrb[0].mxu0
        %3999 = vmatprep.mubr.f32.mxu0 0.0
        %4000 = vmatmul.mubr.f32.gmra.mrb[0].mxu0 %v3868
        %v4001 = vpop.f32.mrb[0].mxu0
        %v4002 = vadd.f32 0.0, %v4001
        %v4003 = vpop.f32.mrb[0].mxu0
        %4004 = vmatprep.mubr.f32.mxu0 0.0
        %4005 = vmatmul.mubr.f32.gmra.mrb[0].mxu0 %v3871
        %v4006 = vpop.f32.mrb[0].mxu0
        %v4007 = vadd.f32 0.0, %v4006
        %v4008 = vpop.f32.mrb[0].mxu0
        %4009 = vmatprep.mubr.f32.mxu0 0.0
        %4010 = vmatmul.mubr.f32.gmra.mrb[0].mxu0 %v3874
        %v4011 = vpop.f32.mrb[0].mxu0
        %v4012 = vadd.f32 0.0, %v4011
        %v4013 = vpop.f32.mrb[0].mxu0
        %4014 = vmatprep.mubr.f32.mxu0 0.0
        %4015 = vmatmul.mubr.f32.gmra.mrb[0].mxu0 %v3877
        %v4016 = vpop.f32.mrb[0].mxu0
        %v4017 = vadd.f32 0.0, %v4016
        %v4018 = vpop.f32.mrb[0].mxu0
        %4019 = vmatprep.mubr.f32.mxu0 0.0
        %4020 = vmatmul.mubr.f32.gmra.mrb[0].mxu0 %v3880
        %v4021 = vpop.f32.mrb[0].mxu0
        %v4022 = vadd.f32 0.0, %v4021
        %v4023 = vpop.f32.mrb[0].mxu0
        %4024 = vmatprep.mubr.f32.mxu0 0.0
        %4025 = vmatmul.mubr.f32.gmra.mrb[0].mxu0 %v3883
        %v4026 = vpop.f32.mrb[0].mxu0
        %v4027 = vadd.f32 0.0, %v4026
        %v4028 = vpop.f32.mrb[0].mxu0
        %4029 = vdwg.mxu0
        %v4030 = vadd.f32 %v3211, %v3952
        %v4031 = vadd.f32 %v3212, %v3957
        %v4032 = vadd.f32 %v3213, %v3962
        %v4033 = vadd.f32 %v3214, %v3967
        %v4034 = vadd.f32 %v3215, %v3972
        %v4035 = vadd.f32 %v3216, %v3977
        %v4036 = vadd.f32 %v3217, %v3982
        %v4037 = vadd.f32 %v3218, %v3987
        %v4038 = vadd.f32 %v3219, %v3992
        %v4039 = vadd.f32 %v3220, %v3997
        %v4040 = vadd.f32 %v3221, %v4002
        %v4041 = vadd.f32 %v3222, %v4007
        %v4042 = vadd.f32 %v3223, %v4012
        %v4043 = vadd.f32 %v3224, %v4017
        %v4044 = vadd.f32 %v3225, %v4022
        %v4045 = vadd.f32 %v3226, %v4027
        %v4046 = vadd.f32 %v4030, %v463
        %v4047 = vadd.f32 %v4031, %v464
        %v4048 = vadd.f32 %v4032, %v465
        %v4049 = vadd.f32 %v4033, %v466
        %v4050 = vadd.f32 %v4034, %v467
        %v4051 = vadd.f32 %v4035, %v468
        %v4052 = vadd.f32 %v4036, %v469
        %v4053 = vadd.f32 %v4037, %v470
        %v4054 = vadd.f32 %v4038, %v471
        %v4055 = vadd.f32 %v4039, %v472
        %v4056 = vadd.f32 %v4040, %v473
        %v4057 = vadd.f32 %v4041, %v474
        %v4058 = vadd.f32 %v4042, %v475
        %v4059 = vadd.f32 %v4043, %v476
        %v4060 = vadd.f32 %v4044, %v477
        %v4061 = vadd.f32 %v4045, %v478
        %4062 = vadd.xlane.f32.xlu0 %v4046
        %v4063 = vpop.xlane.xlu0 %4062
        %4064 = vadd.xlane.f32.xlu0 %v4047
        %v4065 = vpop.xlane.xlu0 %4064
        %4066 = vadd.xlane.f32.xlu0 %v4048
        %v4067 = vpop.xlane.xlu0 %4066
        %4068 = vadd.xlane.f32.xlu0 %v4049
        %v4069 = vpop.xlane.xlu0 %4068
        %4070 = vadd.xlane.f32.xlu0 %v4050
        %v4071 = vpop.xlane.xlu0 %4070
        %4072 = vadd.xlane.f32.xlu0 %v4051
        %v4073 = vpop.xlane.xlu0 %4072
        %4074 = vadd.xlane.f32.xlu0 %v4052
        %v4075 = vpop.xlane.xlu0 %4074
        %4076 = vadd.xlane.f32.xlu0 %v4053
        %v4077 = vpop.xlane.xlu0 %4076
        %4078 = vadd.xlane.f32.xlu0 %v4054
        %v4079 = vpop.xlane.xlu0 %4078
        %4080 = vadd.xlane.f32.xlu0 %v4055
        %v4081 = vpop.xlane.xlu0 %4080
        %4082 = vadd.xlane.f32.xlu0 %v4056
        %v4083 = vpop.xlane.xlu0 %4082
        %4084 = vadd.xlane.f32.xlu0 %v4057
        %v4085 = vpop.xlane.xlu0 %4084
        %4086 = vadd.xlane.f32.xlu0 %v4058
        %v4087 = vpop.xlane.xlu0 %4086
        %4088 = vadd.xlane.f32.xlu0 %v4059
        %v4089 = vpop.xlane.xlu0 %4088
        %4090 = vadd.xlane.f32.xlu0 %v4060
        %v4091 = vpop.xlane.xlu0 %4090
        %4092 = vadd.xlane.f32.xlu0 %v4061
        %v4093 = vpop.xlane.xlu0 %4092
        %v4094 = vrcp.pop 128.0
        %v4095 = vmul.f32 %v4063, %v4094
        %v4096 = vmul.f32 %v4065, %v4094
        %v4097 = vmul.f32 %v4067, %v4094
        %v4098 = vmul.f32 %v4069, %v4094
        %v4099 = vmul.f32 %v4071, %v4094
        %v4100 = vmul.f32 %v4073, %v4094
        %v4101 = vmul.f32 %v4075, %v4094
        %v4102 = vmul.f32 %v4077, %v4094
        %v4103 = vmul.f32 %v4079, %v4094
        %v4104 = vmul.f32 %v4081, %v4094
        %v4105 = vmul.f32 %v4083, %v4094
        %v4106 = vmul.f32 %v4085, %v4094
        %v4107 = vmul.f32 %v4087, %v4094
        %v4108 = vmul.f32 %v4089, %v4094
        %v4109 = vmul.f32 %v4091, %v4094
        %v4110 = vmul.f32 %v4093, %v4094
        %v4111 = vsub.f32 %v4046, %v4095
        %v4112 = vsub.f32 %v4047, %v4096
        %v4113 = vsub.f32 %v4048, %v4097
        %v4114 = vsub.f32 %v4049, %v4098
        %v4115 = vsub.f32 %v4050, %v4099
        %v4116 = vsub.f32 %v4051, %v4100
        %v4117 = vsub.f32 %v4052, %v4101
        %v4118 = vsub.f32 %v4053, %v4102
        %v4119 = vsub.f32 %v4054, %v4103
        %v4120 = vsub.f32 %v4055, %v4104
        %v4121 = vsub.f32 %v4056, %v4105
        %v4122 = vsub.f32 %v4057, %v4106
        %v4123 = vsub.f32 %v4058, %v4107
        %v4124 = vsub.f32 %v4059, %v4108
        %v4125 = vsub.f32 %v4060, %v4109
        %v4126 = vsub.f32 %v4061, %v4110
        %v4127 = vmul.f32 %v4111, %v4111
        %v4128 = vmul.f32 %v4112, %v4112
        %v4129 = vmul.f32 %v4113, %v4113
        %v4130 = vmul.f32 %v4114, %v4114
        %v4131 = vmul.f32 %v4115, %v4115
        %v4132 = vmul.f32 %v4116, %v4116
        %v4133 = vmul.f32 %v4117, %v4117
        %v4134 = vmul.f32 %v4118, %v4118
        %v4135 = vmul.f32 %v4119, %v4119
        %v4136 = vmul.f32 %v4120, %v4120
        %v4137 = vmul.f32 %v4121, %v4121
        %v4138 = vmul.f32 %v4122, %v4122
        %v4139 = vmul.f32 %v4123, %v4123
        %v4140 = vmul.f32 %v4124, %v4124
        %v4141 = vmul.f32 %v4125, %v4125
        %v4142 = vmul.f32 %v4126, %v4126
        %4143 = vadd.xlane.f32.xlu0 %v4127
        %v4144 = vpop.xlane.xlu0 %4143
        %4145 = vadd.xlane.f32.xlu0 %v4128
        %v4146 = vpop.xlane.xlu0 %4145
        %4147 = vadd.xlane.f32.xlu0 %v4129
        %v4148 = vpop.xlane.xlu0 %4147
        %4149 = vadd.xlane.f32.xlu0 %v4130
        %v4150 = vpop.xlane.xlu0 %4149
        %4151 = vadd.xlane.f32.xlu0 %v4131
        %v4152 = vpop.xlane.xlu0 %4151
        %4153 = vadd.xlane.f32.xlu0 %v4132
        %v4154 = vpop.xlane.xlu0 %4153
        %4155 = vadd.xlane.f32.xlu0 %v4133
        %v4156 = vpop.xlane.xlu0 %4155
        %4157 = vadd.xlane.f32.xlu0 %v4134
        %v4158 = vpop.xlane.xlu0 %4157
        %4159 = vadd.xlane.f32.xlu0 %v4135
        %v4160 = vpop.xlane.xlu0 %4159
        %4161 = vadd.xlane.f32.xlu0 %v4136
        %v4162 = vpop.xlane.xlu0 %4161
        %4163 = vadd.xlane.f32.xlu0 %v4137
        %v4164 = vpop.xlane.xlu0 %4163
        %4165 = vadd.xlane.f32.xlu0 %v4138
        %v4166 = vpop.xlane.xlu0 %4165
        %4167 = vadd.xlane.f32.xlu0 %v4139
        %v4168 = vpop.xlane.xlu0 %4167
        %4169 = vadd.xlane.f32.xlu0 %v4140
        %v4170 = vpop.xlane.xlu0 %4169
        %4171 = vadd.xlane.f32.xlu0 %v4141
        %v4172 = vpop.xlane.xlu0 %4171
        %4173 = vadd.xlane.f32.xlu0 %v4142
        %v4174 = vpop.xlane.xlu0 %4173
        %v4175 = vmul.f32 %v4144, %v4094
        %v4176 = vmul.f32 %v4146, %v4094
        %v4177 = vmul.f32 %v4148, %v4094
        %v4178 = vmul.f32 %v4150, %v4094
        %v4179 = vmul.f32 %v4152, %v4094
        %v4180 = vmul.f32 %v4154, %v4094
        %v4181 = vmul.f32 %v4156, %v4094
        %v4182 = vmul.f32 %v4158, %v4094
        %v4183 = vmul.f32 %v4160, %v4094
        %v4184 = vmul.f32 %v4162, %v4094
        %v4185 = vmul.f32 %v4164, %v4094
        %v4186 = vmul.f32 %v4166, %v4094
        %v4187 = vmul.f32 %v4168, %v4094
        %v4188 = vmul.f32 %v4170, %v4094
        %v4189 = vmul.f32 %v4172, %v4094
        %v4190 = vmul.f32 %v4174, %v4094
        %v4191 = vadd.f32 %v4175, 1e-05
        %v4192 = vadd.f32 %v4176, 1e-05
        %v4193 = vadd.f32 %v4177, 1e-05
        %v4194 = vadd.f32 %v4178, 1e-05
        %v4195 = vadd.f32 %v4179, 1e-05
        %v4196 = vadd.f32 %v4180, 1e-05
        %v4197 = vadd.f32 %v4181, 1e-05
        %v4198 = vadd.f32 %v4182, 1e-05
        %v4199 = vadd.f32 %v4183, 1e-05
        %v4200 = vadd.f32 %v4184, 1e-05
        %v4201 = vadd.f32 %v4185, 1e-05
        %v4202 = vadd.f32 %v4186, 1e-05
        %v4203 = vadd.f32 %v4187, 1e-05
        %v4204 = vadd.f32 %v4188, 1e-05
        %v4205 = vadd.f32 %v4189, 1e-05
        %v4206 = vadd.f32 %v4190, 1e-05
        %v4207 = vrsqrt.pop %v4191
        %v4208 = vrsqrt.pop %v4192
        %v4209 = vrsqrt.pop %v4193
        %v4210 = vrsqrt.pop %v4194
        %v4211 = vrsqrt.pop %v4195
        %v4212 = vrsqrt.pop %v4196
        %v4213 = vrsqrt.pop %v4197
        %v4214 = vrsqrt.pop %v4198
        %v4215 = vrsqrt.pop %v4199
        %v4216 = vrsqrt.pop %v4200
        %v4217 = vrsqrt.pop %v4201
        %v4218 = vrsqrt.pop %v4202
        %v4219 = vrsqrt.pop %v4203
        %v4220 = vrsqrt.pop %v4204
        %v4221 = vrsqrt.pop %v4205
        %v4222 = vrsqrt.pop %v4206
        %v4223 = vmul.f32 %v4111, %v4207
        %v4224 = vmul.f32 %v4112, %v4208
        %v4225 = vmul.f32 %v4113, %v4209
        %v4226 = vmul.f32 %v4114, %v4210
        %v4227 = vmul.f32 %v4115, %v4211
        %v4228 = vmul.f32 %v4116, %v4212
        %v4229 = vmul.f32 %v4117, %v4213
        %v4230 = vmul.f32 %v4118, %v4214
        %v4231 = vmul.f32 %v4119, %v4215
        %v4232 = vmul.f32 %v4120, %v4216
        %v4233 = vmul.f32 %v4121, %v4217
        %v4234 = vmul.f32 %v4122, %v4218
        %v4235 = vmul.f32 %v4123, %v4219
        %v4236 = vmul.f32 %v4124, %v4220
        %v4237 = vmul.f32 %v4125, %v4221
        %v4238 = vmul.f32 %v4126, %v4222
        %v4239 = vld [vmem:[%s3] sm:$0x1]
        %v4241 = vlaneseq
        %v4242 = vshrl.u32 %v4241, 7
        %v4243 = vsub.s32 0, %v4242
        %v4244 = vrot.slane %v4239, %v4243
        %v4246 = vmul.f32 %v4223, %v4244
        %v4247 = vmul.f32 %v4224, %v4244
        %v4248 = vmul.f32 %v4225, %v4244
        %v4249 = vmul.f32 %v4226, %v4244
        %v4250 = vmul.f32 %v4227, %v4244
        %v4251 = vmul.f32 %v4228, %v4244
        %v4252 = vmul.f32 %v4229, %v4244
        %v4253 = vmul.f32 %v4230, %v4244
        %v4254 = vmul.f32 %v4231, %v4244
        %v4255 = vmul.f32 %v4232, %v4244
        %v4256 = vmul.f32 %v4233, %v4244
        %v4257 = vmul.f32 %v4234, %v4244
        %v4258 = vmul.f32 %v4235, %v4244
        %v4259 = vmul.f32 %v4236, %v4244
        %v4260 = vmul.f32 %v4237, %v4244
        %v4261 = vmul.f32 %v4238, %v4244
        %v4262 = vld [vmem:[%s4] sm:$0x1]
        %v4264 = vlaneseq
        %v4265 = vshrl.u32 %v4264, 7
        %v4266 = vsub.s32 0, %v4265
        %v4267 = vrot.slane %v4262, %v4266
        %v4269 = vadd.f32 %v4246, %v4267
        %v4270 = vadd.f32 %v4247, %v4267
        %v4271 = vadd.f32 %v4248, %v4267
        %v4272 = vadd.f32 %v4249, %v4267
        %v4273 = vadd.f32 %v4250, %v4267
        %v4274 = vadd.f32 %v4251, %v4267
        %v4275 = vadd.f32 %v4252, %v4267
        %v4276 = vadd.f32 %v4253, %v4267
        %v4277 = vadd.f32 %v4254, %v4267
        %v4278 = vadd.f32 %v4255, %v4267
        %v4279 = vadd.f32 %v4256, %v4267
        %v4280 = vadd.f32 %v4257, %v4267
        %v4281 = vadd.f32 %v4258, %v4267
        %v4282 = vadd.f32 %v4259, %v4267
        %v4283 = vadd.f32 %v4260, %v4267
        %v4284 = vadd.f32 %v4261, %v4267
        %v4285 = vld [vmem:[#allocation8] sm:$0xff]
        %v4286 = vld [vmem:[#allocation8 + $0x8] sm:$0xff]
        %v4287 = vld [vmem:[#allocation8 + $0x10] sm:$0xff]
        %v4288 = vld [vmem:[#allocation8 + $0x18] sm:$0xff]
        %v4289 = vld [vmem:[#allocation8 + $0x20] sm:$0xff]
        %v4290 = vld [vmem:[#allocation8 + $0x28] sm:$0xff]
        %v4291 = vld [vmem:[#allocation8 + $0x30] sm:$0xff]
        %v4292 = vld [vmem:[#allocation8 + $0x38] sm:$0xff]
        %v4293 = vld [vmem:[#allocation8 + $0x40] sm:$0xff]
        %v4294 = vld [vmem:[#allocation8 + $0x48] sm:$0xff]
        %v4295 = vld [vmem:[#allocation8 + $0x50] sm:$0xff]
        %v4296 = vld [vmem:[#allocation8 + $0x58] sm:$0xff]
        %v4297 = vld [vmem:[#allocation8 + $0x60] sm:$0xff]
        %v4298 = vld [vmem:[#allocation8 + $0x68] sm:$0xff]
        %v4299 = vld [vmem:[#allocation8 + $0x70] sm:$0xff]
        %v4300 = vld [vmem:[#allocation8 + $0x78] sm:$0xff]
        %v4301 = vld [vmem:[#allocation8 + $0x80] sm:$0xff]
        %v4302 = vld [vmem:[#allocation8 + $0x88] sm:$0xff]
        %v4303 = vld [vmem:[#allocation8 + $0x90] sm:$0xff]
        %v4304 = vld [vmem:[#allocation8 + $0x98] sm:$0xff]
        %v4305 = vld [vmem:[#allocation8 + $0xa0] sm:$0xff]
        %v4306 = vld [vmem:[#allocation8 + $0xa8] sm:$0xff]
        %v4307 = vld [vmem:[#allocation8 + $0xb0] sm:$0xff]
        %v4308 = vld [vmem:[#allocation8 + $0xb8] sm:$0xff]
        %v4309 = vld [vmem:[#allocation8 + $0xc0] sm:$0xff]
        %v4310 = vld [vmem:[#allocation8 + $0xc8] sm:$0xff]
        %v4311 = vld [vmem:[#allocation8 + $0xd0] sm:$0xff]
        %v4312 = vld [vmem:[#allocation8 + $0xd8] sm:$0xff]
        %v4313 = vld [vmem:[#allocation8 + $0xe0] sm:$0xff]
        %v4314 = vld [vmem:[#allocation8 + $0xe8] sm:$0xff]
        %v4315 = vld [vmem:[#allocation8 + $0xf0] sm:$0xff]
        %v4316 = vld [vmem:[#allocation8 + $0xf8] sm:$0xff]
        %v4317 = vld [vmem:[%s6] sm:$0x3]
        %v4319 = vlaneseq
        %v4320 = vshrl.u32 %v4319, 7
        %v4321 = vsub.s32 0, %v4320
        %v4322 = vrot.slane %v4317, %v4321
        %v4323 = vlaneseq
        %v4324 = vshrl.u32 %v4323, 7
        %v4325 = vsub.s32 1, %v4324
        %v4326 = vrot.slane %v4317, %v4325
        %4329 = vmatprep.subr.mxu0 %v4286
        %4330 = vmatpush1.msra.mxu0 %v4285
        %4331 = vmatprep.subr.mxu0 %v4288
        %4332 = vmatpush1.msra.mxu0 %v4287
        %4333 = vmatprep.subr.mxu0 %v4290
        %4334 = vmatpush1.msra.mxu0 %v4289
        %4335 = vmatprep.subr.mxu0 %v4292
        %4336 = vmatpush1.msra.mxu0 %v4291
        %4337 = vmatprep.subr.mxu0 %v4294
        %4338 = vmatpush1.msra.mxu0 %v4293
        %4339 = vmatprep.subr.mxu0 %v4296
        %4340 = vmatpush1.msra.mxu0 %v4295
        %4341 = vmatprep.subr.mxu0 %v4298
        %4342 = vmatpush1.msra.mxu0 %v4297
        %4343 = vmatprep.subr.mxu0 %v4300
        %4344 = vmatpush1.msra.mxu0 %v4299
        %4345 = vmatprep.subr.mxu0 %v4302
        %4346 = vmatpush1.msra.mxu0 %v4301
        %4347 = vmatprep.subr.mxu0 %v4304
        %4348 = vmatpush1.msra.mxu0 %v4303
        %4349 = vmatprep.subr.mxu0 %v4306
        %4350 = vmatpush1.msra.mxu0 %v4305
        %4351 = vmatprep.subr.mxu0 %v4308
        %4352 = vmatpush1.msra.mxu0 %v4307
        %4353 = vmatprep.subr.mxu0 %v4310
        %4354 = vmatpush1.msra.mxu0 %v4309
        %4355 = vmatprep.subr.mxu0 %v4312
        %4356 = vmatpush1.msra.mxu0 %v4311
        %4357 = vmatprep.subr.mxu0 %v4314
        %4358 = vmatpush1.msra.mxu0 %v4313
        %4359 = vmatprep.subr.mxu0 %v4316
        %4360 = vmatpush1.msra.mxu0 %v4315
        %4361 = vmatprep.subr.mxu0 0.0
        %4362 = vmatpush1.msra.mxu0 0.0
        %4363 = vmatprep.subr.mxu0 0.0
        %4364 = vmatpush1.msra.mxu0 0.0
        %4365 = vmatprep.subr.mxu0 0.0
        %4366 = vmatpush1.msra.mxu0 0.0
        %4367 = vmatprep.subr.mxu0 0.0
        %4368 = vmatpush1.msra.mxu0 0.0
        %4369 = vmatprep.subr.mxu0 0.0
        %4370 = vmatpush1.msra.mxu0 0.0
        %4371 = vmatprep.subr.mxu0 0.0
        %4372 = vmatpush1.msra.mxu0 0.0
        %4373 = vmatprep.subr.mxu0 0.0
        %4374 = vmatpush1.msra.mxu0 0.0
        %4375 = vmatprep.subr.mxu0 0.0
        %4376 = vmatpush1.msra.mxu0 0.0
        %4377 = vmatprep.subr.mxu0 0.0
        %4378 = vmatpush1.msra.mxu0 0.0
        %4379 = vmatprep.subr.mxu0 0.0
        %4380 = vmatpush1.msra.mxu0 0.0
        %4381 = vmatprep.subr.mxu0 0.0
        %4382 = vmatpush1.msra.mxu0 0.0
        %4383 = vmatprep.subr.mxu0 0.0
        %4384 = vmatpush1.msra.mxu0 0.0
        %4385 = vmatprep.subr.mxu0 0.0
        %4386 = vmatpush1.msra.mxu0 0.0
        %4387 = vmatprep.subr.mxu0 0.0
        %4388 = vmatpush1.msra.mxu0 0.0
        %4389 = vmatprep.subr.mxu0 0.0
        %4390 = vmatpush1.msra.mxu0 0.0
        %4391 = vmatprep.subr.mxu0 0.0
        %4392 = vmatpush1.msra.mxu0 0.0
        %4393 = vmatprep.mubr.f32.mxu0 0.0
        %4394 = vmatmul.mubr.f32.gmra.mrb[0].mxu0 %v4269
        %v4395 = vpop.f32.mrb[0].mxu0
        %v4396 = vadd.f32 %v4322, %v4395
        %v4397 = vpop.f32.mrb[0].mxu0
        %v4398 = vadd.f32 %v4326, %v4397
        %4399 = vmatprep.mubr.f32.mxu0 0.0
        %4400 = vmatmul.mubr.f32.gmra.mrb[0].mxu0 %v4270
        %v4401 = vpop.f32.mrb[0].mxu0
        %v4402 = vadd.f32 %v4322, %v4401
        %v4403 = vpop.f32.mrb[0].mxu0
        %v4404 = vadd.f32 %v4326, %v4403
        %4405 = vmatprep.mubr.f32.mxu0 0.0
        %4406 = vmatmul.mubr.f32.gmra.mrb[0].mxu0 %v4271
        %v4407 = vpop.f32.mrb[0].mxu0
        %v4408 = vadd.f32 %v4322, %v4407
        %v4409 = vpop.f32.mrb[0].mxu0
        %v4410 = vadd.f32 %v4326, %v4409
        %4411 = vmatprep.mubr.f32.mxu0 0.0
        %4412 = vmatmul.mubr.f32.gmra.mrb[0].mxu0 %v4272
        %v4413 = vpop.f32.mrb[0].mxu0
        %v4414 = vadd.f32 %v4322, %v4413
        %v4415 = vpop.f32.mrb[0].mxu0
        %v4416 = vadd.f32 %v4326, %v4415
        %4417 = vmatprep.mubr.f32.mxu0 0.0
        %4418 = vmatmul.mubr.f32.gmra.mrb[0].mxu0 %v4273
        %v4419 = vpop.f32.mrb[0].mxu0
        %v4420 = vadd.f32 %v4322, %v4419
        %v4421 = vpop.f32.mrb[0].mxu0
        %v4422 = vadd.f32 %v4326, %v4421
        %4423 = vmatprep.mubr.f32.mxu0 0.0
        %4424 = vmatmul.mubr.f32.gmra.mrb[0].mxu0 %v4274
        %v4425 = vpop.f32.mrb[0].mxu0
        %v4426 = vadd.f32 %v4322, %v4425
        %v4427 = vpop.f32.mrb[0].mxu0
        %v4428 = vadd.f32 %v4326, %v4427
        %4429 = vmatprep.mubr.f32.mxu0 0.0
        %4430 = vmatmul.mubr.f32.gmra.mrb[0].mxu0 %v4275
        %v4431 = vpop.f32.mrb[0].mxu0
        %v4432 = vadd.f32 %v4322, %v4431
        %v4433 = vpop.f32.mrb[0].mxu0
        %v4434 = vadd.f32 %v4326, %v4433
        %4435 = vmatprep.mubr.f32.mxu0 0.0
        %4436 = vmatmul.mubr.f32.gmra.mrb[0].mxu0 %v4276
        %v4437 = vpop.f32.mrb[0].mxu0
        %v4438 = vadd.f32 %v4322, %v4437
        %v4439 = vpop.f32.mrb[0].mxu0
        %v4440 = vadd.f32 %v4326, %v4439
        %4441 = vmatprep.mubr.f32.mxu0 0.0
        %4442 = vmatmul.mubr.f32.gmra.mrb[0].mxu0 %v4277
        %v4443 = vpop.f32.mrb[0].mxu0
        %v4444 = vadd.f32 %v4322, %v4443
        %v4445 = vpop.f32.mrb[0].mxu0
        %v4446 = vadd.f32 %v4326, %v4445
        %4447 = vmatprep.mubr.f32.mxu0 0.0
        %4448 = vmatmul.mubr.f32.gmra.mrb[0].mxu0 %v4278
        %v4449 = vpop.f32.mrb[0].mxu0
        %v4450 = vadd.f32 %v4322, %v4449
        %v4451 = vpop.f32.mrb[0].mxu0
        %v4452 = vadd.f32 %v4326, %v4451
        %4453 = vmatprep.mubr.f32.mxu0 0.0
        %4454 = vmatmul.mubr.f32.gmra.mrb[0].mxu0 %v4279
        %v4455 = vpop.f32.mrb[0].mxu0
        %v4456 = vadd.f32 %v4322, %v4455
        %v4457 = vpop.f32.mrb[0].mxu0
        %v4458 = vadd.f32 %v4326, %v4457
        %4459 = vmatprep.mubr.f32.mxu0 0.0
        %4460 = vmatmul.mubr.f32.gmra.mrb[0].mxu0 %v4280
        %v4461 = vpop.f32.mrb[0].mxu0
        %v4462 = vadd.f32 %v4322, %v4461
        %v4463 = vpop.f32.mrb[0].mxu0
        %v4464 = vadd.f32 %v4326, %v4463
        %4465 = vmatprep.mubr.f32.mxu0 0.0
        %4466 = vmatmul.mubr.f32.gmra.mrb[0].mxu0 %v4281
        %v4467 = vpop.f32.mrb[0].mxu0
        %v4468 = vadd.f32 %v4322, %v4467
        %v4469 = vpop.f32.mrb[0].mxu0
        %v4470 = vadd.f32 %v4326, %v4469
        %4471 = vmatprep.mubr.f32.mxu0 0.0
        %4472 = vmatmul.mubr.f32.gmra.mrb[0].mxu0 %v4282
        %v4473 = vpop.f32.mrb[0].mxu0
        %v4474 = vadd.f32 %v4322, %v4473
        %v4475 = vpop.f32.mrb[0].mxu0
        %v4476 = vadd.f32 %v4326, %v4475
        %4477 = vmatprep.mubr.f32.mxu0 0.0
        %4478 = vmatmul.mubr.f32.gmra.mrb[0].mxu0 %v4283
        %v4479 = vpop.f32.mrb[0].mxu0
        %v4480 = vadd.f32 %v4322, %v4479
        %v4481 = vpop.f32.mrb[0].mxu0
        %v4482 = vadd.f32 %v4326, %v4481
        %4483 = vmatprep.mubr.f32.mxu0 0.0
        %4484 = vmatmul.mubr.f32.gmra.mrb[0].mxu0 %v4284
        %v4485 = vpop.f32.mrb[0].mxu0
        %v4486 = vadd.f32 %v4322, %v4485
        %v4487 = vpop.f32.mrb[0].mxu0
        %v4488 = vadd.f32 %v4326, %v4487
        %4489 = vdwg.mxu0
        %v4490 = vmax.f32 %v4396, 0.0
        %v4491 = vmax.f32 %v4398, 0.0
        %v4492 = vmax.f32 %v4402, 0.0
        %v4493 = vmax.f32 %v4404, 0.0
        %v4494 = vmax.f32 %v4408, 0.0
        %v4495 = vmax.f32 %v4410, 0.0
        %v4496 = vmax.f32 %v4414, 0.0
        %v4497 = vmax.f32 %v4416, 0.0
        %v4498 = vmax.f32 %v4420, 0.0
        %v4499 = vmax.f32 %v4422, 0.0
        %v4500 = vmax.f32 %v4426, 0.0
        %v4501 = vmax.f32 %v4428, 0.0
        %v4502 = vmax.f32 %v4432, 0.0
        %v4503 = vmax.f32 %v4434, 0.0
        %v4504 = vmax.f32 %v4438, 0.0
        %v4505 = vmax.f32 %v4440, 0.0
        %v4506 = vmax.f32 %v4444, 0.0
        %v4507 = vmax.f32 %v4446, 0.0
        %v4508 = vmax.f32 %v4450, 0.0
        %v4509 = vmax.f32 %v4452, 0.0
        %v4510 = vmax.f32 %v4456, 0.0
        %v4511 = vmax.f32 %v4458, 0.0
        %v4512 = vmax.f32 %v4462, 0.0
        %v4513 = vmax.f32 %v4464, 0.0
        %v4514 = vmax.f32 %v4468, 0.0
        %v4515 = vmax.f32 %v4470, 0.0
        %v4516 = vmax.f32 %v4474, 0.0
        %v4517 = vmax.f32 %v4476, 0.0
        %v4518 = vmax.f32 %v4480, 0.0
        %v4519 = vmax.f32 %v4482, 0.0
        %v4520 = vmax.f32 %v4486, 0.0
        %v4521 = vmax.f32 %v4488, 0.0
        %v4522 = vld [vmem:[#allocation10] sm:$0xff]
        %v4523 = vld [vmem:[#allocation10 + $0x8] sm:$0xff]
        %v4524 = vld [vmem:[#allocation10 + $0x10] sm:$0xff]
        %v4525 = vld [vmem:[#allocation10 + $0x18] sm:$0xff]
        %v4526 = vld [vmem:[#allocation10 + $0x20] sm:$0xff]
        %v4527 = vld [vmem:[#allocation10 + $0x28] sm:$0xff]
        %v4528 = vld [vmem:[#allocation10 + $0x30] sm:$0xff]
        %v4529 = vld [vmem:[#allocation10 + $0x38] sm:$0xff]
        %v4530 = vld [vmem:[#allocation10 + $0x40] sm:$0xff]
        %v4531 = vld [vmem:[#allocation10 + $0x48] sm:$0xff]
        %v4532 = vld [vmem:[#allocation10 + $0x50] sm:$0xff]
        %v4533 = vld [vmem:[#allocation10 + $0x58] sm:$0xff]
        %v4534 = vld [vmem:[#allocation10 + $0x60] sm:$0xff]
        %v4535 = vld [vmem:[#allocation10 + $0x68] sm:$0xff]
        %v4536 = vld [vmem:[#allocation10 + $0x70] sm:$0xff]
        %v4537 = vld [vmem:[#allocation10 + $0x78] sm:$0xff]
        %v4538 = vld [vmem:[#allocation10 + $0x80] sm:$0xff]
        %v4539 = vld [vmem:[#allocation10 + $0x88] sm:$0xff]
        %v4540 = vld [vmem:[#allocation10 + $0x90] sm:$0xff]
        %v4541 = vld [vmem:[#allocation10 + $0x98] sm:$0xff]
        %v4542 = vld [vmem:[#allocation10 + $0xa0] sm:$0xff]
        %v4543 = vld [vmem:[#allocation10 + $0xa8] sm:$0xff]
        %v4544 = vld [vmem:[#allocation10 + $0xb0] sm:$0xff]
        %v4545 = vld [vmem:[#allocation10 + $0xb8] sm:$0xff]
        %v4546 = vld [vmem:[#allocation10 + $0xc0] sm:$0xff]
        %v4547 = vld [vmem:[#allocation10 + $0xc8] sm:$0xff]
        %v4548 = vld [vmem:[#allocation10 + $0xd0] sm:$0xff]
        %v4549 = vld [vmem:[#allocation10 + $0xd8] sm:$0xff]
        %v4550 = vld [vmem:[#allocation10 + $0xe0] sm:$0xff]
        %v4551 = vld [vmem:[#allocation10 + $0xe8] sm:$0xff]
        %v4552 = vld [vmem:[#allocation10 + $0xf0] sm:$0xff]
        %v4553 = vld [vmem:[#allocation10 + $0xf8] sm:$0xff]
        %v4554 = vld [vmem:[%s8] sm:$0x1]
        %v4556 = vlaneseq
        %v4557 = vshrl.u32 %v4556, 7
        %v4558 = vsub.s32 0, %v4557
        %v4559 = vrot.slane %v4554, %v4558
        %4561 = vmatprep.subr.mxu0 0.0
        %4562 = vmatpush1.msra.mxu0 %v4522
        %4563 = vmatprep.subr.mxu0 0.0
        %4564 = vmatpush1.msra.mxu0 %v4523
        %4565 = vmatprep.subr.mxu0 0.0
        %4566 = vmatpush1.msra.mxu0 %v4524
        %4567 = vmatprep.subr.mxu0 0.0
        %4568 = vmatpush1.msra.mxu0 %v4525
        %4569 = vmatprep.subr.mxu0 0.0
        %4570 = vmatpush1.msra.mxu0 %v4526
        %4571 = vmatprep.subr.mxu0 0.0
        %4572 = vmatpush1.msra.mxu0 %v4527
        %4573 = vmatprep.subr.mxu0 0.0
        %4574 = vmatpush1.msra.mxu0 %v4528
        %4575 = vmatprep.subr.mxu0 0.0
        %4576 = vmatpush1.msra.mxu0 %v4529
        %4577 = vmatprep.subr.mxu0 0.0
        %4578 = vmatpush1.msra.mxu0 %v4530
        %4579 = vmatprep.subr.mxu0 0.0
        %4580 = vmatpush1.msra.mxu0 %v4531
        %4581 = vmatprep.subr.mxu0 0.0
        %4582 = vmatpush1.msra.mxu0 %v4532
        %4583 = vmatprep.subr.mxu0 0.0
        %4584 = vmatpush1.msra.mxu0 %v4533
        %4585 = vmatprep.subr.mxu0 0.0
        %4586 = vmatpush1.msra.mxu0 %v4534
        %4587 = vmatprep.subr.mxu0 0.0
        %4588 = vmatpush1.msra.mxu0 %v4535
        %4589 = vmatprep.subr.mxu0 0.0
        %4590 = vmatpush1.msra.mxu0 %v4536
        %4591 = vmatprep.subr.mxu0 0.0
        %4592 = vmatpush1.msra.mxu0 %v4537
        %4593 = vmatprep.subr.mxu0 0.0
        %4594 = vmatpush1.msra.mxu0 %v4538
        %4595 = vmatprep.subr.mxu0 0.0
        %4596 = vmatpush1.msra.mxu0 %v4539
        %4597 = vmatprep.subr.mxu0 0.0
        %4598 = vmatpush1.msra.mxu0 %v4540
        %4599 = vmatprep.subr.mxu0 0.0
        %4600 = vmatpush1.msra.mxu0 %v4541
        %4601 = vmatprep.subr.mxu0 0.0
        %4602 = vmatpush1.msra.mxu0 %v4542
        %4603 = vmatprep.subr.mxu0 0.0
        %4604 = vmatpush1.msra.mxu0 %v4543
        %4605 = vmatprep.subr.mxu0 0.0
        %4606 = vmatpush1.msra.mxu0 %v4544
        %4607 = vmatprep.subr.mxu0 0.0
        %4608 = vmatpush1.msra.mxu0 %v4545
        %4609 = vmatprep.subr.mxu0 0.0
        %4610 = vmatpush1.msra.mxu0 %v4546
        %4611 = vmatprep.subr.mxu0 0.0
        %4612 = vmatpush1.msra.mxu0 %v4547
        %4613 = vmatprep.subr.mxu0 0.0
        %4614 = vmatpush1.msra.mxu0 %v4548
        %4615 = vmatprep.subr.mxu0 0.0
        %4616 = vmatpush1.msra.mxu0 %v4549
        %4617 = vmatprep.subr.mxu0 0.0
        %4618 = vmatpush1.msra.mxu0 %v4550
        %4619 = vmatprep.subr.mxu0 0.0
        %4620 = vmatpush1.msra.mxu0 %v4551
        %4621 = vmatprep.subr.mxu0 0.0
        %4622 = vmatpush1.msra.mxu0 %v4552
        %4623 = vmatprep.subr.mxu0 0.0
        %4624 = vmatpush1.msra.mxu0 %v4553
        %4625 = vmatprep.mubr.f32.mxu0 %v4491
        %4626 = vmatmul.mubr.f32.gmra.mrb[0].mxu0 %v4490
        %v4627 = vpop.f32.mrb[0].mxu0
        %v4628 = vadd.f32 %v4559, %v4627
        %v4629 = vpop.f32.mrb[0].mxu0
        %4630 = vmatprep.mubr.f32.mxu0 %v4493
        %4631 = vmatmul.mubr.f32.gmra.mrb[0].mxu0 %v4492
        %v4632 = vpop.f32.mrb[0].mxu0
        %v4633 = vadd.f32 %v4559, %v4632
        %v4634 = vpop.f32.mrb[0].mxu0
        %4635 = vmatprep.mubr.f32.mxu0 %v4495
        %4636 = vmatmul.mubr.f32.gmra.mrb[0].mxu0 %v4494
        %v4637 = vpop.f32.mrb[0].mxu0
        %v4638 = vadd.f32 %v4559, %v4637
        %v4639 = vpop.f32.mrb[0].mxu0
        %4640 = vmatprep.mubr.f32.mxu0 %v4497
        %4641 = vmatmul.mubr.f32.gmra.mrb[0].mxu0 %v4496
        %v4642 = vpop.f32.mrb[0].mxu0
        %v4643 = vadd.f32 %v4559, %v4642
        %v4644 = vpop.f32.mrb[0].mxu0
        %4645 = vmatprep.mubr.f32.mxu0 %v4499
        %4646 = vmatmul.mubr.f32.gmra.mrb[0].mxu0 %v4498
        %v4647 = vpop.f32.mrb[0].mxu0
        %v4648 = vadd.f32 %v4559, %v4647
        %v4649 = vpop.f32.mrb[0].mxu0
        %4650 = vmatprep.mubr.f32.mxu0 %v4501
        %4651 = vmatmul.mubr.f32.gmra.mrb[0].mxu0 %v4500
        %v4652 = vpop.f32.mrb[0].mxu0
        %v4653 = vadd.f32 %v4559, %v4652
        %v4654 = vpop.f32.mrb[0].mxu0
        %4655 = vmatprep.mubr.f32.mxu0 %v4503
        %4656 = vmatmul.mubr.f32.gmra.mrb[0].mxu0 %v4502
        %v4657 = vpop.f32.mrb[0].mxu0
        %v4658 = vadd.f32 %v4559, %v4657
        %v4659 = vpop.f32.mrb[0].mxu0
        %4660 = vmatprep.mubr.f32.mxu0 %v4505
        %4661 = vmatmul.mubr.f32.gmra.mrb[0].mxu0 %v4504
        %v4662 = vpop.f32.mrb[0].mxu0
        %v4663 = vadd.f32 %v4559, %v4662
        %v4664 = vpop.f32.mrb[0].mxu0
        %4665 = vmatprep.mubr.f32.mxu0 %v4507
        %4666 = vmatmul.mubr.f32.gmra.mrb[0].mxu0 %v4506
        %v4667 = vpop.f32.mrb[0].mxu0
        %v4668 = vadd.f32 %v4559, %v4667
        %v4669 = vpop.f32.mrb[0].mxu0
        %4670 = vmatprep.mubr.f32.mxu0 %v4509
        %4671 = vmatmul.mubr.f32.gmra.mrb[0].mxu0 %v4508
        %v4672 = vpop.f32.mrb[0].mxu0
        %v4673 = vadd.f32 %v4559, %v4672
        %v4674 = vpop.f32.mrb[0].mxu0
        %4675 = vmatprep.mubr.f32.mxu0 %v4511
        %4676 = vmatmul.mubr.f32.gmra.mrb[0].mxu0 %v4510
        %v4677 = vpop.f32.mrb[0].mxu0
        %v4678 = vadd.f32 %v4559, %v4677
        %v4679 = vpop.f32.mrb[0].mxu0
        %4680 = vmatprep.mubr.f32.mxu0 %v4513
        %4681 = vmatmul.mubr.f32.gmra.mrb[0].mxu0 %v4512
        %v4682 = vpop.f32.mrb[0].mxu0
        %v4683 = vadd.f32 %v4559, %v4682
        %v4684 = vpop.f32.mrb[0].mxu0
        %4685 = vmatprep.mubr.f32.mxu0 %v4515
        %4686 = vmatmul.mubr.f32.gmra.mrb[0].mxu0 %v4514
        %v4687 = vpop.f32.mrb[0].mxu0
        %v4688 = vadd.f32 %v4559, %v4687
        %v4689 = vpop.f32.mrb[0].mxu0
        %4690 = vmatprep.mubr.f32.mxu0 %v4517
        %4691 = vmatmul.mubr.f32.gmra.mrb[0].mxu0 %v4516
        %v4692 = vpop.f32.mrb[0].mxu0
        %v4693 = vadd.f32 %v4559, %v4692
        %v4694 = vpop.f32.mrb[0].mxu0
        %4695 = vmatprep.mubr.f32.mxu0 %v4519
        %4696 = vmatmul.mubr.f32.gmra.mrb[0].mxu0 %v4518
        %v4697 = vpop.f32.mrb[0].mxu0
        %v4698 = vadd.f32 %v4559, %v4697
        %v4699 = vpop.f32.mrb[0].mxu0
        %4700 = vmatprep.mubr.f32.mxu0 %v4521
        %4701 = vmatmul.mubr.f32.gmra.mrb[0].mxu0 %v4520
        %v4702 = vpop.f32.mrb[0].mxu0
        %v4703 = vadd.f32 %v4559, %v4702
        %v4704 = vpop.f32.mrb[0].mxu0
        %4705 = vdwg.mxu0
        %v4706 = vadd.f32 %v4628, %v4269
        %v4707 = vadd.f32 %v4633, %v4270
        %v4708 = vadd.f32 %v4638, %v4271
        %v4709 = vadd.f32 %v4643, %v4272
        %v4710 = vadd.f32 %v4648, %v4273
        %v4711 = vadd.f32 %v4653, %v4274
        %v4712 = vadd.f32 %v4658, %v4275
        %v4713 = vadd.f32 %v4663, %v4276
        %v4714 = vadd.f32 %v4668, %v4277
        %v4715 = vadd.f32 %v4673, %v4278
        %v4716 = vadd.f32 %v4678, %v4279
        %v4717 = vadd.f32 %v4683, %v4280
        %v4718 = vadd.f32 %v4688, %v4281
        %v4719 = vadd.f32 %v4693, %v4282
        %v4720 = vadd.f32 %v4698, %v4283
        %v4721 = vadd.f32 %v4703, %v4284
        %4722 = vadd.xlane.f32.xlu0 %v4706
        %v4723 = vpop.xlane.xlu0 %4722
        %4724 = vadd.xlane.f32.xlu0 %v4707
        %v4725 = vpop.xlane.xlu0 %4724
        %4726 = vadd.xlane.f32.xlu0 %v4708
        %v4727 = vpop.xlane.xlu0 %4726
        %4728 = vadd.xlane.f32.xlu0 %v4709
        %v4729 = vpop.xlane.xlu0 %4728
        %4730 = vadd.xlane.f32.xlu0 %v4710
        %v4731 = vpop.xlane.xlu0 %4730
        %4732 = vadd.xlane.f32.xlu0 %v4711
        %v4733 = vpop.xlane.xlu0 %4732
        %4734 = vadd.xlane.f32.xlu0 %v4712
        %v4735 = vpop.xlane.xlu0 %4734
        %4736 = vadd.xlane.f32.xlu0 %v4713
        %v4737 = vpop.xlane.xlu0 %4736
        %4738 = vadd.xlane.f32.xlu0 %v4714
        %v4739 = vpop.xlane.xlu0 %4738
        %4740 = vadd.xlane.f32.xlu0 %v4715
        %v4741 = vpop.xlane.xlu0 %4740
        %4742 = vadd.xlane.f32.xlu0 %v4716
        %v4743 = vpop.xlane.xlu0 %4742
        %4744 = vadd.xlane.f32.xlu0 %v4717
        %v4745 = vpop.xlane.xlu0 %4744
        %4746 = vadd.xlane.f32.xlu0 %v4718
        %v4747 = vpop.xlane.xlu0 %4746
        %4748 = vadd.xlane.f32.xlu0 %v4719
        %v4749 = vpop.xlane.xlu0 %4748
        %4750 = vadd.xlane.f32.xlu0 %v4720
        %v4751 = vpop.xlane.xlu0 %4750
        %4752 = vadd.xlane.f32.xlu0 %v4721
        %v4753 = vpop.xlane.xlu0 %4752
        %v4754 = vmul.f32 %v4723, %v4094
        %v4755 = vmul.f32 %v4725, %v4094
        %v4756 = vmul.f32 %v4727, %v4094
        %v4757 = vmul.f32 %v4729, %v4094
        %v4758 = vmul.f32 %v4731, %v4094
        %v4759 = vmul.f32 %v4733, %v4094
        %v4760 = vmul.f32 %v4735, %v4094
        %v4761 = vmul.f32 %v4737, %v4094
        %v4762 = vmul.f32 %v4739, %v4094
        %v4763 = vmul.f32 %v4741, %v4094
        %v4764 = vmul.f32 %v4743, %v4094
        %v4765 = vmul.f32 %v4745, %v4094
        %v4766 = vmul.f32 %v4747, %v4094
        %v4767 = vmul.f32 %v4749, %v4094
        %v4768 = vmul.f32 %v4751, %v4094
        %v4769 = vmul.f32 %v4753, %v4094
        %v4770 = vsub.f32 %v4706, %v4754
        %v4771 = vsub.f32 %v4707, %v4755
        %v4772 = vsub.f32 %v4708, %v4756
        %v4773 = vsub.f32 %v4709, %v4757
        %v4774 = vsub.f32 %v4710, %v4758
        %v4775 = vsub.f32 %v4711, %v4759
        %v4776 = vsub.f32 %v4712, %v4760
        %v4777 = vsub.f32 %v4713, %v4761
        %v4778 = vsub.f32 %v4714, %v4762
        %v4779 = vsub.f32 %v4715, %v4763
        %v4780 = vsub.f32 %v4716, %v4764
        %v4781 = vsub.f32 %v4717, %v4765
        %v4782 = vsub.f32 %v4718, %v4766
        %v4783 = vsub.f32 %v4719, %v4767
        %v4784 = vsub.f32 %v4720, %v4768
        %v4785 = vsub.f32 %v4721, %v4769
        %v4786 = vmul.f32 %v4770, %v4770
        %v4787 = vmul.f32 %v4771, %v4771
        %v4788 = vmul.f32 %v4772, %v4772
        %v4789 = vmul.f32 %v4773, %v4773
        %v4790 = vmul.f32 %v4774, %v4774
        %v4791 = vmul.f32 %v4775, %v4775
        %v4792 = vmul.f32 %v4776, %v4776
        %v4793 = vmul.f32 %v4777, %v4777
        %v4794 = vmul.f32 %v4778, %v4778
        %v4795 = vmul.f32 %v4779, %v4779
        %v4796 = vmul.f32 %v4780, %v4780
        %v4797 = vmul.f32 %v4781, %v4781
        %v4798 = vmul.f32 %v4782, %v4782
        %v4799 = vmul.f32 %v4783, %v4783
        %v4800 = vmul.f32 %v4784, %v4784
        %v4801 = vmul.f32 %v4785, %v4785
        %4802 = vadd.xlane.f32.xlu0 %v4786
        %v4803 = vpop.xlane.xlu0 %4802
        %4804 = vadd.xlane.f32.xlu0 %v4787
        %v4805 = vpop.xlane.xlu0 %4804
        %4806 = vadd.xlane.f32.xlu0 %v4788
        %v4807 = vpop.xlane.xlu0 %4806
        %4808 = vadd.xlane.f32.xlu0 %v4789
        %v4809 = vpop.xlane.xlu0 %4808
        %4810 = vadd.xlane.f32.xlu0 %v4790
        %v4811 = vpop.xlane.xlu0 %4810
        %4812 = vadd.xlane.f32.xlu0 %v4791
        %v4813 = vpop.xlane.xlu0 %4812
        %4814 = vadd.xlane.f32.xlu0 %v4792
        %v4815 = vpop.xlane.xlu0 %4814
        %4816 = vadd.xlane.f32.xlu0 %v4793
        %v4817 = vpop.xlane.xlu0 %4816
        %4818 = vadd.xlane.f32.xlu0 %v4794
        %v4819 = vpop.xlane.xlu0 %4818
        %4820 = vadd.xlane.f32.xlu0 %v4795
        %v4821 = vpop.xlane.xlu0 %4820
        %4822 = vadd.xlane.f32.xlu0 %v4796
        %v4823 = vpop.xlane.xlu0 %4822
        %4824 = vadd.xlane.f32.xlu0 %v4797
        %v4825 = vpop.xlane.xlu0 %4824
        %4826 = vadd.xlane.f32.xlu0 %v4798
        %v4827 = vpop.xlane.xlu0 %4826
        %4828 = vadd.xlane.f32.xlu0 %v4799
        %v4829 = vpop.xlane.xlu0 %4828
        %4830 = vadd.xlane.f32.xlu0 %v4800
        %v4831 = vpop.xlane.xlu0 %4830
        %4832 = vadd.xlane.f32.xlu0 %v4801
        %v4833 = vpop.xlane.xlu0 %4832
        %v4834 = vmul.f32 %v4803, %v4094
        %v4835 = vmul.f32 %v4805, %v4094
        %v4836 = vmul.f32 %v4807, %v4094
        %v4837 = vmul.f32 %v4809, %v4094
        %v4838 = vmul.f32 %v4811, %v4094
        %v4839 = vmul.f32 %v4813, %v4094
        %v4840 = vmul.f32 %v4815, %v4094
        %v4841 = vmul.f32 %v4817, %v4094
        %v4842 = vmul.f32 %v4819, %v4094
        %v4843 = vmul.f32 %v4821, %v4094
        %v4844 = vmul.f32 %v4823, %v4094
        %v4845 = vmul.f32 %v4825, %v4094
        %v4846 = vmul.f32 %v4827, %v4094
        %v4847 = vmul.f32 %v4829, %v4094
        %v4848 = vmul.f32 %v4831, %v4094
        %v4849 = vmul.f32 %v4833, %v4094
        %v4850 = vadd.f32 %v4834, 1e-05
        %v4851 = vadd.f32 %v4835, 1e-05
        %v4852 = vadd.f32 %v4836, 1e-05
        %v4853 = vadd.f32 %v4837, 1e-05
        %v4854 = vadd.f32 %v4838, 1e-05
        %v4855 = vadd.f32 %v4839, 1e-05
        %v4856 = vadd.f32 %v4840, 1e-05
        %v4857 = vadd.f32 %v4841, 1e-05
        %v4858 = vadd.f32 %v4842, 1e-05
        %v4859 = vadd.f32 %v4843, 1e-05
        %v4860 = vadd.f32 %v4844, 1e-05
        %v4861 = vadd.f32 %v4845, 1e-05
        %v4862 = vadd.f32 %v4846, 1e-05
        %v4863 = vadd.f32 %v4847, 1e-05
        %v4864 = vadd.f32 %v4848, 1e-05
        %v4865 = vadd.f32 %v4849, 1e-05
        %v4866 = vrsqrt.pop %v4850
        %v4867 = vrsqrt.pop %v4851
        %v4868 = vrsqrt.pop %v4852
        %v4869 = vrsqrt.pop %v4853
        %v4870 = vrsqrt.pop %v4854
        %v4871 = vrsqrt.pop %v4855
        %v4872 = vrsqrt.pop %v4856
        %v4873 = vrsqrt.pop %v4857
        %v4874 = vrsqrt.pop %v4858
        %v4875 = vrsqrt.pop %v4859
        %v4876 = vrsqrt.pop %v4860
        %v4877 = vrsqrt.pop %v4861
        %v4878 = vrsqrt.pop %v4862
        %v4879 = vrsqrt.pop %v4863
        %v4880 = vrsqrt.pop %v4864
        %v4881 = vrsqrt.pop %v4865
        %v4882 = vmul.f32 %v4770, %v4866
        %v4883 = vmul.f32 %v4771, %v4867
        %v4884 = vmul.f32 %v4772, %v4868
        %v4885 = vmul.f32 %v4773, %v4869
        %v4886 = vmul.f32 %v4774, %v4870
        %v4887 = vmul.f32 %v4775, %v4871
        %v4888 = vmul.f32 %v4776, %v4872
        %v4889 = vmul.f32 %v4777, %v4873
        %v4890 = vmul.f32 %v4778, %v4874
        %v4891 = vmul.f32 %v4779, %v4875
        %v4892 = vmul.f32 %v4780, %v4876
        %v4893 = vmul.f32 %v4781, %v4877
        %v4894 = vmul.f32 %v4782, %v4878
        %v4895 = vmul.f32 %v4783, %v4879
        %v4896 = vmul.f32 %v4784, %v4880
        %v4897 = vmul.f32 %v4785, %v4881
        %v4898 = vld [vmem:[%s9] sm:$0x1]
        %v4900 = vlaneseq
        %v4901 = vshrl.u32 %v4900, 7
        %v4902 = vsub.s32 0, %v4901
        %v4903 = vrot.slane %v4898, %v4902
        %v4905 = vmul.f32 %v4882, %v4903
        %v4906 = vmul.f32 %v4883, %v4903
        %v4907 = vmul.f32 %v4884, %v4903
        %v4908 = vmul.f32 %v4885, %v4903
        %v4909 = vmul.f32 %v4886, %v4903
        %v4910 = vmul.f32 %v4887, %v4903
        %v4911 = vmul.f32 %v4888, %v4903
        %v4912 = vmul.f32 %v4889, %v4903
        %v4913 = vmul.f32 %v4890, %v4903
        %v4914 = vmul.f32 %v4891, %v4903
        %v4915 = vmul.f32 %v4892, %v4903
        %v4916 = vmul.f32 %v4893, %v4903
        %v4917 = vmul.f32 %v4894, %v4903
        %v4918 = vmul.f32 %v4895, %v4903
        %v4919 = vmul.f32 %v4896, %v4903
        %v4920 = vmul.f32 %v4897, %v4903
        %v4921 = vld [vmem:[%s10] sm:$0x1]
        %v4923 = vlaneseq
        %v4924 = vshrl.u32 %v4923, 7
        %v4925 = vsub.s32 0, %v4924
        %v4926 = vrot.slane %v4921, %v4925
        %v4928 = vadd.f32 %v4905, %v4926
        %v4929 = vadd.f32 %v4906, %v4926
        %v4930 = vadd.f32 %v4907, %v4926
        %v4931 = vadd.f32 %v4908, %v4926
        %v4932 = vadd.f32 %v4909, %v4926
        %v4933 = vadd.f32 %v4910, %v4926
        %v4934 = vadd.f32 %v4911, %v4926
        %v4935 = vadd.f32 %v4912, %v4926
        %v4936 = vadd.f32 %v4913, %v4926
        %v4937 = vadd.f32 %v4914, %v4926
        %v4938 = vadd.f32 %v4915, %v4926
        %v4939 = vadd.f32 %v4916, %v4926
        %v4940 = vadd.f32 %v4917, %v4926
        %v4941 = vadd.f32 %v4918, %v4926
        %v4942 = vadd.f32 %v4919, %v4926
        %v4943 = vadd.f32 %v4920, %v4926
        %4944 = vst [vmem:[%s462] sm:$0xff] %v4928
        %4945 = vst [vmem:[%s462 + $0x8] sm:$0xff] %v4929
        %4946 = vst [vmem:[%s462 + $0x10] sm:$0xff] %v4930
        %4947 = vst [vmem:[%s462 + $0x18] sm:$0xff] %v4931
        %4948 = vst [vmem:[%s462 + $0x20] sm:$0xff] %v4932
        %4949 = vst [vmem:[%s462 + $0x28] sm:$0xff] %v4933
        %4950 = vst [vmem:[%s462 + $0x30] sm:$0xff] %v4934
        %4951 = vst [vmem:[%s462 + $0x38] sm:$0xff] %v4935
        %4952 = vst [vmem:[%s462 + $0x40] sm:$0xff] %v4936
        %4953 = vst [vmem:[%s462 + $0x48] sm:$0xff] %v4937
        %4954 = vst [vmem:[%s462 + $0x50] sm:$0xff] %v4938
        %4955 = vst [vmem:[%s462 + $0x58] sm:$0xff] %v4939
        %4956 = vst [vmem:[%s462 + $0x60] sm:$0xff] %v4940
        %4957 = vst [vmem:[%s462 + $0x68] sm:$0xff] %v4941
        %4958 = vst [vmem:[%s462 + $0x70] sm:$0xff] %v4942
        %4959 = vst [vmem:[%s462 + $0x78] sm:$0xff] %v4943
        %s4960 = sand.u32 %s274, 1
        %s4961 = scalar_lea.sflag [#allocation4], %s4960
        %s4962 = sand.u32 %s274, 1
        %s4963 = smul.addr %s4962, 128
        %s4964 = scalar_lea.vmem [#allocation11], %s4963
        // Predicated region
        $region85: #{tpu_custom_call.1} parent=63 // pred_check
          %p4965 = pneg %p284
        $region86: #{tpu_custom_call.1} parent=63 // pred_check_branch
          %4967 = sbr.rel (%p4965) target = $region88
        $region87: #{tpu_custom_call.1} parent=63 // pred_region
          %s4969 = ssub.s32 2048, 2048
          %4970 = vsyncadd %s4961, %s4969
          %s4971 = smul.addr %s30, 16
          %s4972 = smul.addr %s4971, 128
          %s4973 = scalar_lea.hbm %s11, %s4972
          %s4974 = sshll.u32 %s4964, 4
          %s4975 = int_to_ptr.vmem [resolvable:$true] %s4974
          %4980 = dma.vmem_to_hbm [thread:$0]  %s4975, 2048, %s4973, %s4961, 128, 128, 8
        $region88: #{tpu_custom_call.1} parent=63 // pred_fallthru
          _
      $region64: #{tpu_custom_call.1} parent=5 // pred_fallthru
        _
      %p4981 = scmp.le.s32.totalorder 2, %s25
      // Predicated region
      $region89: #{tpu_custom_call.1} parent=5 // pred_check
        %p4982 = pneg %p4981
      $region90: #{tpu_custom_call.1} parent=5 // pred_check_branch
        %4984 = sbr.rel (%p4982) target = $region92
      $region91: #{tpu_custom_call.1} parent=5 // pred_region
        %s4985 = ssub.s32 %s25, 2
        // Predicated region
        $region93: #{tpu_custom_call.1} parent=91 // pred_check
          %p4986 = pneg %p290
        $region94: #{tpu_custom_call.1} parent=91 // pred_check_branch
          %4988 = sbr.rel (%p4986) target = $region96
        $region95: #{tpu_custom_call.1} parent=91 // pred_region
          %s4989 = sand.u32 %s275, 1
          %s4990 = scalar_lea.sflag [#allocation4], %s4989
          %s4991 = sand.u32 %s275, 1
          %s4992 = smul.addr %s4991, 128
          %s4993 = scalar_lea.vmem [#allocation11], %s4992
          %4994 = dma.done %s4990, 2048
        $region96: #{tpu_custom_call.1} parent=91 // pred_fallthru
          _
      $region92: #{tpu_custom_call.1} parent=5 // pred_fallthru
        _
    $region6: #{tpu_custom_call.1} parent=1 // loop_footer
      %s29 = sadd.s32 1, %s25
    $region7: #{tpu_custom_call.1} parent=1 // loop_footer_branch
      %24 = sbr.rel target = $region3
    $region8: #{tpu_custom_call.1} parent=1 // loop_exit
      _
    %4995 = vsyncpa [#allocation3], 1
    %s4996 = scalar_lea.sflag [#allocation3], 1
    %4997 = vsyncpa %s4996, 1
    %4998 = vsyncpa [#allocation6], 1
    %4999 = vsyncpa [#allocation9], 1
    %5000 = vsyncpa [#allocation4], 1
    %s5001 = scalar_lea.sflag [#allocation4], 1
    %5002 = vsyncpa %s5001, 1

</llo_original>
